<compile_context>
chip_gen: v7x
topology: tpu7x:2x2x1
jax: 0.10.0
libtpu: 0.0.40
codegen_flags: <defaults>
</compile_context>

<pallas_src>
import numpy as np
import jax
import jax.numpy as jnp
from jax import lax
from jax.experimental import pallas as pl
from jax.experimental.pallas import tpu as pltpu


# ----------------------------------------------------------------------------
# Pallas kernel
# ----------------------------------------------------------------------------
def _store_padded(pad_ref, x):
    """pad_ref <- x with 1-px zero padding in H and circular padding in W.

    pad_ref: (H+2, W+2, C) f32 VMEM scratch;  x: (H, W, C) f32 value.
    Rows are written full-width (aligned stores); the circular W pad is built
    as a value via concatenate.
    """
    Hp, Wp, C = pad_ref.shape
    H, W = Hp - 2, Wp - 2
    # circular pad along W:  [x[:, -1], x, x[:, 0]]
    xw = jnp.concatenate([x[:, W - 1:W, :], x, x[:, 0:1, :]], axis=1)  # (H, W+2, C)
    pad_ref[1:H + 1, :, :] = xw
    zrow = jnp.zeros((1, Wp, C), pad_ref.dtype)
    pad_ref[0:1, :, :] = zrow          # zero H pad (top)
    pad_ref[Hp - 1:Hp, :, :] = zrow    # zero H pad (bottom)


def _conv3x3_bn_relu(pad_ref, w_ref, b_ref):
    """3x3 conv as 9 per-tap (H*W, Cin) x (Cin, Cout) MXU matmuls + bias + ReLU.

    pad_ref: (H+2, W+2, Cin) f32 padded input (VMEM scratch)
    w_ref:   (9, Cin, Cout)  bf16 conv weights (BN folded in)
    b_ref:   (1, Cout)       f32 bias (BN folded in)
    returns  (H*W, Cout)     f32 activations
    """
    Hp, Wp, Cin = pad_ref.shape
    H, W = Hp - 2, Wp - 2
    Cout = w_ref.shape[-1]
    acc = jnp.zeros((H * W, Cout), jnp.float32)
    for dy in range(3):            # 9 taps, statically unrolled
        for dx in range(3):
            tap = pad_ref[dy:dy + H, dx:dx + W, :].reshape(H * W, Cin)
            acc = acc + jnp.dot(tap.astype(jnp.bfloat16),
                                w_ref[dy * 3 + dx],
                                preferred_element_type=jnp.float32)
    # bias broadcast + ReLU applied once for the whole (H*W, Cout) tile
    return jnp.maximum(acc + b_ref[...], 0.0)


def _double_conv_kernel(x_ref, w1_ref, b1_ref, w2_ref, b2_ref, o_ref,
                        pad1_ref, pad2_ref):
    H, W, Cout = o_ref.shape
    Cmid = w1_ref.shape[-1]

    # conv1 => BN => ReLU
    _store_padded(pad1_ref, x_ref[...])
    h1 = _conv3x3_bn_relu(pad1_ref, w1_ref, b1_ref)          # (H*W, Cmid) f32

    # conv2 => BN => ReLU  (intermediate stays on-chip)
    _store_padded(pad2_ref, h1.reshape(H, W, Cmid))
    h2 = _conv3x3_bn_relu(pad2_ref, w2_ref, b2_ref)          # (H*W, Cout) f32

    o_ref[...] = h2.reshape(H, W, Cout).astype(o_ref.dtype)


# ----------------------------------------------------------------------------
# Wrapper
# ----------------------------------------------------------------------------
def double_conv_circular(x_nchw, params):
    """Forward of double_conv_circular (group_conv=False, dilation=1).

    x_nchw: (B, Cin, H, W) f32.  Returns (B, Cout, H, W) f32.
    params: ((w1, b1), (w2, b2)) with w in HWIO (3,3,Cin,Cout), BN folded.
    """
    (w1, b1), (w2, b2) = params
    B, Cin, H, W = x_nchw.shape
    Cmid = w1.shape[-1]
    Cout = w2.shape[-1]

    x = jnp.transpose(x_nchw, (0, 2, 3, 1)).astype(jnp.float32)      # NHWC
    w1f = w1.reshape(9, Cin, Cmid).astype(jnp.bfloat16)
    w2f = w2.reshape(9, Cmid, Cout).astype(jnp.bfloat16)
    b1f = b1.reshape(1, Cmid).astype(jnp.float32)
    b2f = b2.reshape(1, Cout).astype(jnp.float32)

    y = pl.pallas_call(
        _double_conv_kernel,
        out_shape=jax.ShapeDtypeStruct((B, H, W, Cout), jnp.float32),
        grid=(B,),
        in_specs=[
            pl.BlockSpec((None, H, W, Cin), lambda b: (b, 0, 0, 0)),
            pl.BlockSpec((9, Cin, Cmid), lambda b: (0, 0, 0)),
            pl.BlockSpec((1, Cmid), lambda b: (0, 0)),
            pl.BlockSpec((9, Cmid, Cout), lambda b: (0, 0, 0)),
            pl.BlockSpec((1, Cout), lambda b: (0, 0)),
        ],
        out_specs=pl.BlockSpec((None, H, W, Cout), lambda b: (b, 0, 0, 0)),
        scratch_shapes=[
            pltpu.VMEM((H + 2, W + 2, Cin), jnp.float32),
            pltpu.VMEM((H + 2, W + 2, Cmid), jnp.float32),
        ],
        compiler_params=pltpu.CompilerParams(
            dimension_semantics=("parallel",)),
    )(x, w1f, b1f, w2f, b2f)

    return jnp.transpose(y, (0, 3, 1, 2))                            # NCHW


# ----------------------------------------------------------------------------
# Deterministic params (BatchNorm eval-mode stats folded into conv w/b)
# ----------------------------------------------------------------------------
def _fold_bn_conv(key, cin, cout, eps=1e-5):
    ks = jax.random.split(key, 6)
    fan_in = cin * 9
    w = jax.random.normal(ks[0], (3, 3, cin, cout), jnp.float32) / np.sqrt(fan_in)
    b = 0.01 * jax.random.normal(ks[1], (cout,), jnp.float32)
    gamma = 1.0 + 0.1 * jax.random.normal(ks[2], (cout,), jnp.float32)
    beta = 0.1 * jax.random.normal(ks[3], (cout,), jnp.float32)
    mean = 0.05 * jax.random.normal(ks[4], (cout,), jnp.float32)
    var = 1.0 + 0.1 * jax.random.uniform(ks[5], (cout,), dtype=jnp.float32)
    scale = gamma / jnp.sqrt(var + eps)
    return w * scale, (b - mean) * scale + beta


def init_params(key, in_ch, out_ch):
    k1, k2 = jax.random.split(key)
    return (_fold_bn_conv(k1, in_ch, out_ch), _fold_bn_conv(k2, out_ch, out_ch))


# ----------------------------------------------------------------------------
# Pure-JAX f32 reference (matches the PyTorch module, eval-mode BN)
# ----------------------------------------------------------------------------
def ref_double_conv_circular(x_nchw, params):
    def conv_bn_relu(x, w, b):
        xp = jnp.concatenate([x[..., -1:], x, x[..., :1]], axis=-1)   # circular W
        y = lax.conv_general_dilated(
            xp, w, window_strides=(1, 1), padding=((1, 1), (0, 0)),   # zero H
            dimension_numbers=("NCHW", "HWIO", "NCHW"))
        return jnp.maximum(y + b[None, :, None, None], 0.0)

    (w1, b1), (w2, b2) = params
    return conv_bn_relu(conv_bn_relu(x_nchw, w1, b1), w2, b2)


# ----------------------------------------------------------------------------
# Main
# ----------------------------------------------------------------------------
if __name__ == "__main__":
    B, in_ch, out_ch, H, W = 2, 4, 64, 16, 16

    key = jax.random.PRNGKey(0)
    kx, kp = jax.random.split(key)
    x = jax.random.normal(kx, (B, in_ch, H, W), jnp.float32)
    params = init_params(kp, in_ch, out_ch)

    fwd = jax.jit(double_conv_circular)
    out = fwd(x, params)
    jax.block_until_ready(out)
    assert out.shape == (B, out_ch, H, W), out.shape
    assert out.dtype == jnp.float32

    ref = ref_double_conv_circular(x, params)
    max_err = float(jnp.max(jnp.abs(out - ref)))
    # bf16 MXU operands with f32 accumulation -> small deviation from f32 ref.
    assert max_err < 0.1, f"max abs error vs f32 reference: {max_err}"
    print("KERNEL_OK")
</pallas_src>

<mosaic_0001>
module attributes {stable_mosaic.version = 11 : i64} {
  func.func @_double_conv_kernel(%arg0: i32, %arg1: memref<1x16x16x4xf32, #tpu.memory_space<vmem>>, %arg2: memref<9x4x64xbf16, #tpu.memory_space<vmem>>, %arg3: memref<1x64xf32, #tpu.memory_space<vmem>>, %arg4: memref<9x64x64xbf16, #tpu.memory_space<vmem>>, %arg5: memref<1x64xf32, #tpu.memory_space<vmem>>, %arg6: memref<1x16x16x64xf32, #tpu.memory_space<vmem>>, %arg7: memref<18x18x4xf32, #tpu.memory_space<vmem>>, %arg8: memref<18x18x64xf32, #tpu.memory_space<vmem>>) attributes {dimension_semantics = [#tpu.dimension_semantics<parallel>], iteration_bounds = array<i64: 2>, scalar_prefetch = 0 : i64, scratch_operands = 2 : i64, tpu.core_type = #tpu.core_type<tc>, window_params = [{transform_indices = @transform_0, window_bounds = array<i64: 1, 16, 16, 4>}, {pipeline_mode = #tpu.pipeline_mode<synchronous>, transform_indices = @transform_1, window_bounds = array<i64: 9, 4, 64>}, {pipeline_mode = #tpu.pipeline_mode<synchronous>, transform_indices = @transform_2, window_bounds = array<i64: 1, 64>}, {pipeline_mode = #tpu.pipeline_mode<synchronous>, transform_indices = @transform_3, window_bounds = array<i64: 9, 64, 64>}, {pipeline_mode = #tpu.pipeline_mode<synchronous>, transform_indices = @transform_4, window_bounds = array<i64: 1, 64>}, {transform_indices = @transform_5, window_bounds = array<i64: 1, 16, 16, 64>}]} {
    %c0 = arith.constant 0 : index
    %c0_0 = arith.constant 0 : index
    %c0_1 = arith.constant 0 : index
    %c0_2 = arith.constant 0 : index
    %0 = vector.load %arg1[%c0, %c0_0, %c0_1, %c0_2] : memref<1x16x16x4xf32, #tpu.memory_space<vmem>>, vector<1x16x16x4xf32>
    %1 = vector.shape_cast %0 : vector<1x16x16x4xf32> to vector<16x16x4xf32>
    %2 = vector.extract_strided_slice %1 {offsets = [0, 15, 0], sizes = [16, 1, 4], strides = [1, 1, 1]} : vector<16x16x4xf32> to vector<16x1x4xf32>
    %3 = vector.extract_strided_slice %1 {offsets = [0, 0, 0], sizes = [16, 1, 4], strides = [1, 1, 1]} : vector<16x16x4xf32> to vector<16x1x4xf32>
    %4 = tpu.concatenate %2, %1, %3 in 1 : vector<16x1x4xf32>, vector<16x16x4xf32>, vector<16x1x4xf32> -> vector<16x18x4xf32>
    %c1 = arith.constant 1 : index
    %c0_3 = arith.constant 0 : index
    %c0_4 = arith.constant 0 : index
    %5 = vector.load %arg7[%c1, %c0_3, %c0_4] : memref<18x18x4xf32, #tpu.memory_space<vmem>>, vector<16x18x4xf32>
    tpu.vector_store %arg7[%c1, %c0_3, %c0_4], %4 {strides = array<i32>} : memref<18x18x4xf32, #tpu.memory_space<vmem>>, vector<16x18x4xf32>,
    %cst = arith.constant 0.000000e+00 : f32
    %6 = vector.broadcast %cst : f32 to vector<1x18x4xf32>
    %c0_5 = arith.constant 0 : index
    %c0_6 = arith.constant 0 : index
    %c0_7 = arith.constant 0 : index
    %7 = vector.load %arg7[%c0_5, %c0_6, %c0_7] : memref<18x18x4xf32, #tpu.memory_space<vmem>>, vector<1x18x4xf32>
    tpu.vector_store %arg7[%c0_5, %c0_6, %c0_7], %6 {strides = array<i32>} : memref<18x18x4xf32, #tpu.memory_space<vmem>>, vector<1x18x4xf32>,
    %c17 = arith.constant 17 : index
    %c0_8 = arith.constant 0 : index
    %c0_9 = arith.constant 0 : index
    %8 = vector.load %arg7[%c17, %c0_8, %c0_9] : memref<18x18x4xf32, #tpu.memory_space<vmem>>, vector<1x18x4xf32>
    tpu.vector_store %arg7[%c17, %c0_8, %c0_9], %6 {strides = array<i32>} : memref<18x18x4xf32, #tpu.memory_space<vmem>>, vector<1x18x4xf32>,
    %cst_10 = arith.constant 0.000000e+00 : f32
    %9 = vector.broadcast %cst_10 : f32 to vector<256x64xf32>
    %c0_11 = arith.constant 0 : index
    %c0_12 = arith.constant 0 : index
    %c0_13 = arith.constant 0 : index
    %10 = vector.load %arg7[%c0_11, %c0_12, %c0_13] : memref<18x18x4xf32, #tpu.memory_space<vmem>>, vector<16x16x4xf32>
    %11 = vector.shape_cast %10 : vector<16x16x4xf32> to vector<256x4xf32>
    %12 = arith.truncf %11 : vector<256x4xf32> to vector<256x4xbf16>
    %c0_14 = arith.constant 0 : index
    %c0_15 = arith.constant 0 : index
    %c0_16 = arith.constant 0 : index
    %13 = vector.load %arg2[%c0_14, %c0_15, %c0_16] : memref<9x4x64xbf16, #tpu.memory_space<vmem>>, vector<1x4x64xbf16>
    %14 = vector.shape_cast %13 : vector<1x4x64xbf16> to vector<4x64xbf16>
    %cst_17 = arith.constant dense<0.000000e+00> : vector<256x64xf32>
    %15 = tpu.matmul %12, %14, %cst_17 {dimension_numbers = #tpu.dot_dimension_numbers<[1], [0], [0], [1], [0, 0, 1, 1], [], []>} : vector<256x4xbf16>, vector<4x64xbf16>, vector<256x64xf32> -> vector<256x64xf32>
    %16 = arith.addf %9, %15 : vector<256x64xf32>
    %c0_18 = arith.constant 0 : index
    %c1_19 = arith.constant 1 : index
    %c0_20 = arith.constant 0 : index
    %17 = vector.load %arg7[%c0_18, %c1_19, %c0_20] : memref<18x18x4xf32, #tpu.memory_space<vmem>>, vector<16x16x4xf32>
    %18 = vector.shape_cast %17 : vector<16x16x4xf32> to vector<256x4xf32>
    %19 = arith.truncf %18 : vector<256x4xf32> to vector<256x4xbf16>
    %c1_21 = arith.constant 1 : index
    %c0_22 = arith.constant 0 : index
    %c0_23 = arith.constant 0 : index
    %20 = vector.load %arg2[%c1_21, %c0_22, %c0_23] : memref<9x4x64xbf16, #tpu.memory_space<vmem>>, vector<1x4x64xbf16>
    %21 = vector.shape_cast %20 : vector<1x4x64xbf16> to vector<4x64xbf16>
    %cst_24 = arith.constant dense<0.000000e+00> : vector<256x64xf32>
    %22 = tpu.matmul %19, %21, %cst_24 {dimension_numbers = #tpu.dot_dimension_numbers<[1], [0], [0], [1], [0, 0, 1, 1], [], []>} : vector<256x4xbf16>, vector<4x64xbf16>, vector<256x64xf32> -> vector<256x64xf32>
    %23 = arith.addf %16, %22 : vector<256x64xf32>
    %c0_25 = arith.constant 0 : index
    %c2 = arith.constant 2 : index
    %c0_26 = arith.constant 0 : index
    %24 = vector.load %arg7[%c0_25, %c2, %c0_26] : memref<18x18x4xf32, #tpu.memory_space<vmem>>, vector<16x16x4xf32>
    %25 = vector.shape_cast %24 : vector<16x16x4xf32> to vector<256x4xf32>
    %26 = arith.truncf %25 : vector<256x4xf32> to vector<256x4xbf16>
    %c2_27 = arith.constant 2 : index
    %c0_28 = arith.constant 0 : index
    %c0_29 = arith.constant 0 : index
    %27 = vector.load %arg2[%c2_27, %c0_28, %c0_29] : memref<9x4x64xbf16, #tpu.memory_space<vmem>>, vector<1x4x64xbf16>
    %28 = vector.shape_cast %27 : vector<1x4x64xbf16> to vector<4x64xbf16>
    %cst_30 = arith.constant dense<0.000000e+00> : vector<256x64xf32>
    %29 = tpu.matmul %26, %28, %cst_30 {dimension_numbers = #tpu.dot_dimension_numbers<[1], [0], [0], [1], [0, 0, 1, 1], [], []>} : vector<256x4xbf16>, vector<4x64xbf16>, vector<256x64xf32> -> vector<256x64xf32>
    %30 = arith.addf %23, %29 : vector<256x64xf32>
    %c1_31 = arith.constant 1 : index
    %c0_32 = arith.constant 0 : index
    %c0_33 = arith.constant 0 : index
    %31 = vector.load %arg7[%c1_31, %c0_32, %c0_33] : memref<18x18x4xf32, #tpu.memory_space<vmem>>, vector<16x16x4xf32>
    %32 = vector.shape_cast %31 : vector<16x16x4xf32> to vector<256x4xf32>
    %33 = arith.truncf %32 : vector<256x4xf32> to vector<256x4xbf16>
    %c3 = arith.constant 3 : index
    %c0_34 = arith.constant 0 : index
    %c0_35 = arith.constant 0 : index
    %34 = vector.load %arg2[%c3, %c0_34, %c0_35] : memref<9x4x64xbf16, #tpu.memory_space<vmem>>, vector<1x4x64xbf16>
    %35 = vector.shape_cast %34 : vector<1x4x64xbf16> to vector<4x64xbf16>
    %cst_36 = arith.constant dense<0.000000e+00> : vector<256x64xf32>
    %36 = tpu.matmul %33, %35, %cst_36 {dimension_numbers = #tpu.dot_dimension_numbers<[1], [0], [0], [1], [0, 0, 1, 1], [], []>} : vector<256x4xbf16>, vector<4x64xbf16>, vector<256x64xf32> -> vector<256x64xf32>
    %37 = arith.addf %30, %36 : vector<256x64xf32>
    %c1_37 = arith.constant 1 : index
    %c1_38 = arith.constant 1 : index
    %c0_39 = arith.constant 0 : index
    %38 = vector.load %arg7[%c1_37, %c1_38, %c0_39] : memref<18x18x4xf32, #tpu.memory_space<vmem>>, vector<16x16x4xf32>
    %39 = vector.shape_cast %38 : vector<16x16x4xf32> to vector<256x4xf32>
    %40 = arith.truncf %39 : vector<256x4xf32> to vector<256x4xbf16>
    %c4 = arith.constant 4 : index
    %c0_40 = arith.constant 0 : index
    %c0_41 = arith.constant 0 : index
    %41 = vector.load %arg2[%c4, %c0_40, %c0_41] : memref<9x4x64xbf16, #tpu.memory_space<vmem>>, vector<1x4x64xbf16>
    %42 = vector.shape_cast %41 : vector<1x4x64xbf16> to vector<4x64xbf16>
    %cst_42 = arith.constant dense<0.000000e+00> : vector<256x64xf32>
    %43 = tpu.matmul %40, %42, %cst_42 {dimension_numbers = #tpu.dot_dimension_numbers<[1], [0], [0], [1], [0, 0, 1, 1], [], []>} : vector<256x4xbf16>, vector<4x64xbf16>, vector<256x64xf32> -> vector<256x64xf32>
    %44 = arith.addf %37, %43 : vector<256x64xf32>
    %c1_43 = arith.constant 1 : index
    %c2_44 = arith.constant 2 : index
    %c0_45 = arith.constant 0 : index
    %45 = vector.load %arg7[%c1_43, %c2_44, %c0_45] : memref<18x18x4xf32, #tpu.memory_space<vmem>>, vector<16x16x4xf32>
    %46 = vector.shape_cast %45 : vector<16x16x4xf32> to vector<256x4xf32>
    %47 = arith.truncf %46 : vector<256x4xf32> to vector<256x4xbf16>
    %c5 = arith.constant 5 : index
    %c0_46 = arith.constant 0 : index
    %c0_47 = arith.constant 0 : index
    %48 = vector.load %arg2[%c5, %c0_46, %c0_47] : memref<9x4x64xbf16, #tpu.memory_space<vmem>>, vector<1x4x64xbf16>
    %49 = vector.shape_cast %48 : vector<1x4x64xbf16> to vector<4x64xbf16>
    %cst_48 = arith.constant dense<0.000000e+00> : vector<256x64xf32>
    %50 = tpu.matmul %47, %49, %cst_48 {dimension_numbers = #tpu.dot_dimension_numbers<[1], [0], [0], [1], [0, 0, 1, 1], [], []>} : vector<256x4xbf16>, vector<4x64xbf16>, vector<256x64xf32> -> vector<256x64xf32>
    %51 = arith.addf %44, %50 : vector<256x64xf32>
    %c2_49 = arith.constant 2 : index
    %c0_50 = arith.constant 0 : index
    %c0_51 = arith.constant 0 : index
    %52 = vector.load %arg7[%c2_49, %c0_50, %c0_51] : memref<18x18x4xf32, #tpu.memory_space<vmem>>, vector<16x16x4xf32>
    %53 = vector.shape_cast %52 : vector<16x16x4xf32> to vector<256x4xf32>
    %54 = arith.truncf %53 : vector<256x4xf32> to vector<256x4xbf16>
    %c6 = arith.constant 6 : index
    %c0_52 = arith.constant 0 : index
    %c0_53 = arith.constant 0 : index
    %55 = vector.load %arg2[%c6, %c0_52, %c0_53] : memref<9x4x64xbf16, #tpu.memory_space<vmem>>, vector<1x4x64xbf16>
    %56 = vector.shape_cast %55 : vector<1x4x64xbf16> to vector<4x64xbf16>
    %cst_54 = arith.constant dense<0.000000e+00> : vector<256x64xf32>
    %57 = tpu.matmul %54, %56, %cst_54 {dimension_numbers = #tpu.dot_dimension_numbers<[1], [0], [0], [1], [0, 0, 1, 1], [], []>} : vector<256x4xbf16>, vector<4x64xbf16>, vector<256x64xf32> -> vector<256x64xf32>
    %58 = arith.addf %51, %57 : vector<256x64xf32>
    %c2_55 = arith.constant 2 : index
    %c1_56 = arith.constant 1 : index
    %c0_57 = arith.constant 0 : index
    %59 = vector.load %arg7[%c2_55, %c1_56, %c0_57] : memref<18x18x4xf32, #tpu.memory_space<vmem>>, vector<16x16x4xf32>
    %60 = vector.shape_cast %59 : vector<16x16x4xf32> to vector<256x4xf32>
    %61 = arith.truncf %60 : vector<256x4xf32> to vector<256x4xbf16>
    %c7 = arith.constant 7 : index
    %c0_58 = arith.constant 0 : index
    %c0_59 = arith.constant 0 : index
    %62 = vector.load %arg2[%c7, %c0_58, %c0_59] : memref<9x4x64xbf16, #tpu.memory_space<vmem>>, vector<1x4x64xbf16>
    %63 = vector.shape_cast %62 : vector<1x4x64xbf16> to vector<4x64xbf16>
    %cst_60 = arith.constant dense<0.000000e+00> : vector<256x64xf32>
    %64 = tpu.matmul %61, %63, %cst_60 {dimension_numbers = #tpu.dot_dimension_numbers<[1], [0], [0], [1], [0, 0, 1, 1], [], []>} : vector<256x4xbf16>, vector<4x64xbf16>, vector<256x64xf32> -> vector<256x64xf32>
    %65 = arith.addf %58, %64 : vector<256x64xf32>
    %c2_61 = arith.constant 2 : index
    %c2_62 = arith.constant 2 : index
    %c0_63 = arith.constant 0 : index
    %66 = vector.load %arg7[%c2_61, %c2_62, %c0_63] : memref<18x18x4xf32, #tpu.memory_space<vmem>>, vector<16x16x4xf32>
    %67 = vector.shape_cast %66 : vector<16x16x4xf32> to vector<256x4xf32>
    %68 = arith.truncf %67 : vector<256x4xf32> to vector<256x4xbf16>
    %c8 = arith.constant 8 : index
    %c0_64 = arith.constant 0 : index
    %c0_65 = arith.constant 0 : index
    %69 = vector.load %arg2[%c8, %c0_64, %c0_65] : memref<9x4x64xbf16, #tpu.memory_space<vmem>>, vector<1x4x64xbf16>
    %70 = vector.shape_cast %69 : vector<1x4x64xbf16> to vector<4x64xbf16>
    %cst_66 = arith.constant dense<0.000000e+00> : vector<256x64xf32>
    %71 = tpu.matmul %68, %70, %cst_66 {dimension_numbers = #tpu.dot_dimension_numbers<[1], [0], [0], [1], [0, 0, 1, 1], [], []>} : vector<256x4xbf16>, vector<4x64xbf16>, vector<256x64xf32> -> vector<256x64xf32>
    %72 = arith.addf %65, %71 : vector<256x64xf32>
    %c0_67 = arith.constant 0 : index
    %c0_68 = arith.constant 0 : index
    %73 = vector.load %arg3[%c0_67, %c0_68] : memref<1x64xf32, #tpu.memory_space<vmem>>, vector<1x64xf32>
    %74 = vector.broadcast %73 : vector<1x64xf32> to vector<256x64xf32>
    %75 = arith.addf %72, %74 : vector<256x64xf32>
    %cst_69 = arith.constant 0.000000e+00 : f32
    %76 = vector.broadcast %cst_69 : f32 to vector<256x64xf32>
    %77 = arith.maximumf %75, %76 : vector<256x64xf32>
    %78 = vector.shape_cast %77 : vector<256x64xf32> to vector<16x16x64xf32>
    %79 = vector.extract_strided_slice %78 {offsets = [0, 15, 0], sizes = [16, 1, 64], strides = [1, 1, 1]} : vector<16x16x64xf32> to vector<16x1x64xf32>
    %80 = vector.extract_strided_slice %78 {offsets = [0, 0, 0], sizes = [16, 1, 64], strides = [1, 1, 1]} : vector<16x16x64xf32> to vector<16x1x64xf32>
    %81 = tpu.concatenate %79, %78, %80 in 1 : vector<16x1x64xf32>, vector<16x16x64xf32>, vector<16x1x64xf32> -> vector<16x18x64xf32>
    %c1_70 = arith.constant 1 : index
    %c0_71 = arith.constant 0 : index
    %c0_72 = arith.constant 0 : index
    %82 = vector.load %arg8[%c1_70, %c0_71, %c0_72] : memref<18x18x64xf32, #tpu.memory_space<vmem>>, vector<16x18x64xf32>
    tpu.vector_store %arg8[%c1_70, %c0_71, %c0_72], %81 {strides = array<i32>} : memref<18x18x64xf32, #tpu.memory_space<vmem>>, vector<16x18x64xf32>,
    %cst_73 = arith.constant 0.000000e+00 : f32
    %83 = vector.broadcast %cst_73 : f32 to vector<1x18x64xf32>
    %c0_74 = arith.constant 0 : index
    %c0_75 = arith.constant 0 : index
    %c0_76 = arith.constant 0 : index
    %84 = vector.load %arg8[%c0_74, %c0_75, %c0_76] : memref<18x18x64xf32, #tpu.memory_space<vmem>>, vector<1x18x64xf32>
    tpu.vector_store %arg8[%c0_74, %c0_75, %c0_76], %83 {strides = array<i32>} : memref<18x18x64xf32, #tpu.memory_space<vmem>>, vector<1x18x64xf32>,
    %c17_77 = arith.constant 17 : index
    %c0_78 = arith.constant 0 : index
    %c0_79 = arith.constant 0 : index
    %85 = vector.load %arg8[%c17_77, %c0_78, %c0_79] : memref<18x18x64xf32, #tpu.memory_space<vmem>>, vector<1x18x64xf32>
    tpu.vector_store %arg8[%c17_77, %c0_78, %c0_79], %83 {strides = array<i32>} : memref<18x18x64xf32, #tpu.memory_space<vmem>>, vector<1x18x64xf32>,
    %cst_80 = arith.constant 0.000000e+00 : f32
    %86 = vector.broadcast %cst_80 : f32 to vector<256x64xf32>
    %c0_81 = arith.constant 0 : index
    %c0_82 = arith.constant 0 : index
    %c0_83 = arith.constant 0 : index
    %87 = vector.load %arg8[%c0_81, %c0_82, %c0_83] : memref<18x18x64xf32, #tpu.memory_space<vmem>>, vector<16x16x64xf32>
    %88 = vector.shape_cast %87 : vector<16x16x64xf32> to vector<256x64xf32>
    %89 = arith.truncf %88 : vector<256x64xf32> to vector<256x64xbf16>
    %c0_84 = arith.constant 0 : index
    %c0_85 = arith.constant 0 : index
    %c0_86 = arith.constant 0 : index
    %90 = vector.load %arg4[%c0_84, %c0_85, %c0_86] : memref<9x64x64xbf16, #tpu.memory_space<vmem>>, vector<1x64x64xbf16>
    %91 = vector.shape_cast %90 : vector<1x64x64xbf16> to vector<64x64xbf16>
    %cst_87 = arith.constant dense<0.000000e+00> : vector<256x64xf32>
    %92 = tpu.matmul %89, %91, %cst_87 {dimension_numbers = #tpu.dot_dimension_numbers<[1], [0], [0], [1], [0, 0, 1, 1], [], []>} : vector<256x64xbf16>, vector<64x64xbf16>, vector<256x64xf32> -> vector<256x64xf32>
    %93 = arith.addf %86, %92 : vector<256x64xf32>
    %c0_88 = arith.constant 0 : index
    %c1_89 = arith.constant 1 : index
    %c0_90 = arith.constant 0 : index
    %94 = vector.load %arg8[%c0_88, %c1_89, %c0_90] : memref<18x18x64xf32, #tpu.memory_space<vmem>>, vector<16x16x64xf32>
    %95 = vector.shape_cast %94 : vector<16x16x64xf32> to vector<256x64xf32>
    %96 = arith.truncf %95 : vector<256x64xf32> to vector<256x64xbf16>
    %c1_91 = arith.constant 1 : index
    %c0_92 = arith.constant 0 : index
    %c0_93 = arith.constant 0 : index
    %97 = vector.load %arg4[%c1_91, %c0_92, %c0_93] : memref<9x64x64xbf16, #tpu.memory_space<vmem>>, vector<1x64x64xbf16>
    %98 = vector.shape_cast %97 : vector<1x64x64xbf16> to vector<64x64xbf16>
    %cst_94 = arith.constant dense<0.000000e+00> : vector<256x64xf32>
    %99 = tpu.matmul %96, %98, %cst_94 {dimension_numbers = #tpu.dot_dimension_numbers<[1], [0], [0], [1], [0, 0, 1, 1], [], []>} : vector<256x64xbf16>, vector<64x64xbf16>, vector<256x64xf32> -> vector<256x64xf32>
    %100 = arith.addf %93, %99 : vector<256x64xf32>
    %c0_95 = arith.constant 0 : index
    %c2_96 = arith.constant 2 : index
    %c0_97 = arith.constant 0 : index
    %101 = vector.load %arg8[%c0_95, %c2_96, %c0_97] : memref<18x18x64xf32, #tpu.memory_space<vmem>>, vector<16x16x64xf32>
    %102 = vector.shape_cast %101 : vector<16x16x64xf32> to vector<256x64xf32>
    %103 = arith.truncf %102 : vector<256x64xf32> to vector<256x64xbf16>
    %c2_98 = arith.constant 2 : index
    %c0_99 = arith.constant 0 : index
    %c0_100 = arith.constant 0 : index
    %104 = vector.load %arg4[%c2_98, %c0_99, %c0_100] : memref<9x64x64xbf16, #tpu.memory_space<vmem>>, vector<1x64x64xbf16>
    %105 = vector.shape_cast %104 : vector<1x64x64xbf16> to vector<64x64xbf16>
    %cst_101 = arith.constant dense<0.000000e+00> : vector<256x64xf32>
    %106 = tpu.matmul %103, %105, %cst_101 {dimension_numbers = #tpu.dot_dimension_numbers<[1], [0], [0], [1], [0, 0, 1, 1], [], []>} : vector<256x64xbf16>, vector<64x64xbf16>, vector<256x64xf32> -> vector<256x64xf32>
    %107 = arith.addf %100, %106 : vector<256x64xf32>
    %c1_102 = arith.constant 1 : index
    %c0_103 = arith.constant 0 : index
    %c0_104 = arith.constant 0 : index
    %108 = vector.load %arg8[%c1_102, %c0_103, %c0_104] : memref<18x18x64xf32, #tpu.memory_space<vmem>>, vector<16x16x64xf32>
    %109 = vector.shape_cast %108 : vector<16x16x64xf32> to vector<256x64xf32>
    %110 = arith.truncf %109 : vector<256x64xf32> to vector<256x64xbf16>
    %c3_105 = arith.constant 3 : index
    %c0_106 = arith.constant 0 : index
    %c0_107 = arith.constant 0 : index
    %111 = vector.load %arg4[%c3_105, %c0_106, %c0_107] : memref<9x64x64xbf16, #tpu.memory_space<vmem>>, vector<1x64x64xbf16>
    %112 = vector.shape_cast %111 : vector<1x64x64xbf16> to vector<64x64xbf16>
    %cst_108 = arith.constant dense<0.000000e+00> : vector<256x64xf32>
    %113 = tpu.matmul %110, %112, %cst_108 {dimension_numbers = #tpu.dot_dimension_numbers<[1], [0], [0], [1], [0, 0, 1, 1], [], []>} : vector<256x64xbf16>, vector<64x64xbf16>, vector<256x64xf32> -> vector<256x64xf32>
    %114 = arith.addf %107, %113 : vector<256x64xf32>
    %c1_109 = arith.constant 1 : index
    %c1_110 = arith.constant 1 : index
    %c0_111 = arith.constant 0 : index
    %115 = vector.load %arg8[%c1_109, %c1_110, %c0_111] : memref<18x18x64xf32, #tpu.memory_space<vmem>>, vector<16x16x64xf32>
    %116 = vector.shape_cast %115 : vector<16x16x64xf32> to vector<256x64xf32>
    %117 = arith.truncf %116 : vector<256x64xf32> to vector<256x64xbf16>
    %c4_112 = arith.constant 4 : index
    %c0_113 = arith.constant 0 : index
    %c0_114 = arith.constant 0 : index
    %118 = vector.load %arg4[%c4_112, %c0_113, %c0_114] : memref<9x64x64xbf16, #tpu.memory_space<vmem>>, vector<1x64x64xbf16>
    %119 = vector.shape_cast %118 : vector<1x64x64xbf16> to vector<64x64xbf16>
    %cst_115 = arith.constant dense<0.000000e+00> : vector<256x64xf32>
    %120 = tpu.matmul %117, %119, %cst_115 {dimension_numbers = #tpu.dot_dimension_numbers<[1], [0], [0], [1], [0, 0, 1, 1], [], []>} : vector<256x64xbf16>, vector<64x64xbf16>, vector<256x64xf32> -> vector<256x64xf32>
    %121 = arith.addf %114, %120 : vector<256x64xf32>
    %c1_116 = arith.constant 1 : index
    %c2_117 = arith.constant 2 : index
    %c0_118 = arith.constant 0 : index
    %122 = vector.load %arg8[%c1_116, %c2_117, %c0_118] : memref<18x18x64xf32, #tpu.memory_space<vmem>>, vector<16x16x64xf32>
    %123 = vector.shape_cast %122 : vector<16x16x64xf32> to vector<256x64xf32>
    %124 = arith.truncf %123 : vector<256x64xf32> to vector<256x64xbf16>
    %c5_119 = arith.constant 5 : index
    %c0_120 = arith.constant 0 : index
    %c0_121 = arith.constant 0 : index
    %125 = vector.load %arg4[%c5_119, %c0_120, %c0_121] : memref<9x64x64xbf16, #tpu.memory_space<vmem>>, vector<1x64x64xbf16>
    %126 = vector.shape_cast %125 : vector<1x64x64xbf16> to vector<64x64xbf16>
    %cst_122 = arith.constant dense<0.000000e+00> : vector<256x64xf32>
    %127 = tpu.matmul %124, %126, %cst_122 {dimension_numbers = #tpu.dot_dimension_numbers<[1], [0], [0], [1], [0, 0, 1, 1], [], []>} : vector<256x64xbf16>, vector<64x64xbf16>, vector<256x64xf32> -> vector<256x64xf32>
    %128 = arith.addf %121, %127 : vector<256x64xf32>
    %c2_123 = arith.constant 2 : index
    %c0_124 = arith.constant 0 : index
    %c0_125 = arith.constant 0 : index
    %129 = vector.load %arg8[%c2_123, %c0_124, %c0_125] : memref<18x18x64xf32, #tpu.memory_space<vmem>>, vector<16x16x64xf32>
    %130 = vector.shape_cast %129 : vector<16x16x64xf32> to vector<256x64xf32>
    %131 = arith.truncf %130 : vector<256x64xf32> to vector<256x64xbf16>
    %c6_126 = arith.constant 6 : index
    %c0_127 = arith.constant 0 : index
    %c0_128 = arith.constant 0 : index
    %132 = vector.load %arg4[%c6_126, %c0_127, %c0_128] : memref<9x64x64xbf16, #tpu.memory_space<vmem>>, vector<1x64x64xbf16>
    %133 = vector.shape_cast %132 : vector<1x64x64xbf16> to vector<64x64xbf16>
    %cst_129 = arith.constant dense<0.000000e+00> : vector<256x64xf32>
    %134 = tpu.matmul %131, %133, %cst_129 {dimension_numbers = #tpu.dot_dimension_numbers<[1], [0], [0], [1], [0, 0, 1, 1], [], []>} : vector<256x64xbf16>, vector<64x64xbf16>, vector<256x64xf32> -> vector<256x64xf32>
    %135 = arith.addf %128, %134 : vector<256x64xf32>
    %c2_130 = arith.constant 2 : index
    %c1_131 = arith.constant 1 : index
    %c0_132 = arith.constant 0 : index
    %136 = vector.load %arg8[%c2_130, %c1_131, %c0_132] : memref<18x18x64xf32, #tpu.memory_space<vmem>>, vector<16x16x64xf32>
    %137 = vector.shape_cast %136 : vector<16x16x64xf32> to vector<256x64xf32>
    %138 = arith.truncf %137 : vector<256x64xf32> to vector<256x64xbf16>
    %c7_133 = arith.constant 7 : index
    %c0_134 = arith.constant 0 : index
    %c0_135 = arith.constant 0 : index
    %139 = vector.load %arg4[%c7_133, %c0_134, %c0_135] : memref<9x64x64xbf16, #tpu.memory_space<vmem>>, vector<1x64x64xbf16>
    %140 = vector.shape_cast %139 : vector<1x64x64xbf16> to vector<64x64xbf16>
    %cst_136 = arith.constant dense<0.000000e+00> : vector<256x64xf32>
    %141 = tpu.matmul %138, %140, %cst_136 {dimension_numbers = #tpu.dot_dimension_numbers<[1], [0], [0], [1], [0, 0, 1, 1], [], []>} : vector<256x64xbf16>, vector<64x64xbf16>, vector<256x64xf32> -> vector<256x64xf32>
    %142 = arith.addf %135, %141 : vector<256x64xf32>
    %c2_137 = arith.constant 2 : index
    %c2_138 = arith.constant 2 : index
    %c0_139 = arith.constant 0 : index
    %143 = vector.load %arg8[%c2_137, %c2_138, %c0_139] : memref<18x18x64xf32, #tpu.memory_space<vmem>>, vector<16x16x64xf32>
    %144 = vector.shape_cast %143 : vector<16x16x64xf32> to vector<256x64xf32>
    %145 = arith.truncf %144 : vector<256x64xf32> to vector<256x64xbf16>
    %c8_140 = arith.constant 8 : index
    %c0_141 = arith.constant 0 : index
    %c0_142 = arith.constant 0 : index
    %146 = vector.load %arg4[%c8_140, %c0_141, %c0_142] : memref<9x64x64xbf16, #tpu.memory_space<vmem>>, vector<1x64x64xbf16>
    %147 = vector.shape_cast %146 : vector<1x64x64xbf16> to vector<64x64xbf16>
    %cst_143 = arith.constant dense<0.000000e+00> : vector<256x64xf32>
    %148 = tpu.matmul %145, %147, %cst_143 {dimension_numbers = #tpu.dot_dimension_numbers<[1], [0], [0], [1], [0, 0, 1, 1], [], []>} : vector<256x64xbf16>, vector<64x64xbf16>, vector<256x64xf32> -> vector<256x64xf32>
    %149 = arith.addf %142, %148 : vector<256x64xf32>
    %c0_144 = arith.constant 0 : index
    %c0_145 = arith.constant 0 : index
    %150 = vector.load %arg5[%c0_144, %c0_145] : memref<1x64xf32, #tpu.memory_space<vmem>>, vector<1x64xf32>
    %151 = vector.broadcast %150 : vector<1x64xf32> to vector<256x64xf32>
    %152 = arith.addf %149, %151 : vector<256x64xf32>
    %cst_146 = arith.constant 0.000000e+00 : f32
    %153 = vector.broadcast %cst_146 : f32 to vector<256x64xf32>
    %154 = arith.maximumf %152, %153 : vector<256x64xf32>
    %155 = vector.shape_cast %154 : vector<256x64xf32> to vector<16x16x64xf32>
    %c0_147 = arith.constant 0 : index
    %c0_148 = arith.constant 0 : index
    %c0_149 = arith.constant 0 : index
    %c0_150 = arith.constant 0 : index
    %156 = vector.load %arg6[%c0_147, %c0_148, %c0_149, %c0_150] : memref<1x16x16x64xf32, #tpu.memory_space<vmem>>, vector<1x16x16x64xf32>
    %157 = vector.shape_cast %156 : vector<1x16x16x64xf32> to vector<16x16x64xf32>
    %158 = vector.shape_cast %155 : vector<16x16x64xf32> to vector<1x16x16x64xf32>
    tpu.vector_store %arg6[%c0_147, %c0_148, %c0_149, %c0_150], %158 {strides = array<i32>} : memref<1x16x16x64xf32, #tpu.memory_space<vmem>>, vector<1x16x16x64xf32>,
    return
  }
  func.func @transform_0(%arg0: i32) -> (i32, i32, i32, i32) {
    %c0_i32 = arith.constant 0 : i32
    %c0_i32_0 = arith.constant 0 : i32
    %c0_i32_1 = arith.constant 0 : i32
    %c0_i32_2 = arith.constant 0 : i32
    return %arg0, %c0_i32, %c0_i32_0, %c0_i32_1 : i32, i32, i32, i32
  }
  func.func @transform_1(%arg0: i32) -> (i32, i32, i32) {
    %c0_i32 = arith.constant 0 : i32
    %c0_i32_0 = arith.constant 0 : i32
    %c0_i32_1 = arith.constant 0 : i32
    %c0_i32_2 = arith.constant 0 : i32
    return %c0_i32, %c0_i32_0, %c0_i32_1 : i32, i32, i32
  }
  func.func @transform_2(%arg0: i32) -> (i32, i32) {
    %c0_i32 = arith.constant 0 : i32
    %c0_i32_0 = arith.constant 0 : i32
    %c0_i32_1 = arith.constant 0 : i32
    return %c0_i32, %c0_i32_0 : i32, i32
  }
  func.func @transform_3(%arg0: i32) -> (i32, i32, i32) {
    %c0_i32 = arith.constant 0 : i32
    %c0_i32_0 = arith.constant 0 : i32
    %c0_i32_1 = arith.constant 0 : i32
    %c0_i32_2 = arith.constant 0 : i32
    return %c0_i32, %c0_i32_0, %c0_i32_1 : i32, i32, i32
  }
  func.func @transform_4(%arg0: i32) -> (i32, i32) {
    %c0_i32 = arith.constant 0 : i32
    %c0_i32_0 = arith.constant 0 : i32
    %c0_i32_1 = arith.constant 0 : i32
    return %c0_i32, %c0_i32_0 : i32, i32
  }
  func.func @transform_5(%arg0: i32) -> (i32, i32, i32, i32) {
    %c0_i32 = arith.constant 0 : i32
    %c0_i32_0 = arith.constant 0 : i32
    %c0_i32_1 = arith.constant 0 : i32
    %c0_i32_2 = arith.constant 0 : i32
    return %arg0, %c0_i32, %c0_i32_0, %c0_i32_1 : i32, i32, i32, i32
  }
}

</mosaic_0001>

<llo_original>
// kernel: double_conv_circular.1
$region0: #{double_conv_circular.1}
  #allocation0 [shape = 'u32[]', space=smem, size = 0x4, offset = 0x4, fixed_abs, tag = 'smem constant byte address 0x4 - core index']
  #allocation1 [shape = 'u32[144,128]{1,0:T(1,128)}', space=vmem, size = 0x12000, scoped, tag = 'internal scratch']
  #allocation2 [shape = 'f32[18,18,4]{2,1,0:T(8,128)}', space=vmem, size = 0x36000, scoped, tag = 'scratch operand']
  #allocation3 [shape = 'f32[18,18,64]{2,1,0:T(8,128)}', space=vmem, size = 0x36000, scoped, tag = 'scratch operand']
  %s0 = inlined_call_operand.vmem [shape: f32[2,16,16,4], index: 0, kind: input, shape index: {}]
  %s1 = inlined_call_operand.vmem [shape: bf16[9,4,64], index: 1, kind: input, shape index: {}]
  %s2 = inlined_call_operand.vmem [shape: f32[1,64], index: 2, kind: input, shape index: {}]
  %s3 = inlined_call_operand.vmem [shape: bf16[9,64,64], index: 3, kind: input, shape index: {}]
  %s4 = inlined_call_operand.vmem [shape: f32[1,64], index: 4, kind: input, shape index: {}]
  %s5 = inlined_call_operand.hbm [shape: f32[2,16,16,64], index: 5, kind: output, shape index: {}]
  %s6 = sld [smem:[#allocation0]]
  $region53: #{double_conv_circular.1} parent=0
    _
  %s8 = ssub.s32 1, %s6
  %s9 = scalar_select 0, %s8, %s6
  $region1: #{double_conv_circular.1} parent=0
    #allocation4 [shape = 'u8[262144]{0}', space=vmem, size = 0x40000, scoped, tag = 'output window, operand 0']
    #allocation5 [shape = 's32[2]{0}', space=sflag, size = 0x8, scoped, tag = 'scoped memory for double_conv_circular.1']
    %10 = vsyncpa [#allocation5], 0
    %s11 = scalar_lea.sflag [#allocation5], 1
    %12 = vsyncpa %s11, 0
    loop: start=0, step=1, limit=4
    $region2: #{double_conv_circular.1} parent=1 // loop_pre_header
      _
    $region3: #{double_conv_circular.1} parent=1 // loop_header
      %s14 = sphi 0, %s18
      %p15 = scmp.ge.s32.totalorder %s14, 4
      %s24 = sphi 0, %s26
      %s27 = sphi 0, %s24
      %s28 = sphi 0, %s27
      %s44 = sphi 0, %s28
      %s48 = sphi 0, %s48
      %s50 = sphi 0, %s48
      %s51 = sphi 0, %s50
      %s65 = sphi 0, %s51
      %s69 = sphi 0, %s69
      %s71 = sphi 0, %s69
      %s72 = sphi 0, %s71
      %s86 = sphi 0, %s72
      %s90 = sphi 0, %s90
      %s92 = sphi 0, %s90
      %s93 = sphi 0, %s92
      %s107 = sphi 0, %s93
      %s111 = sphi 0, %s111
      %s113 = sphi 0, %s111
      %s114 = sphi 0, %s113
      %s128 = sphi 0, %s114
      %s134 = sphi 0, %s136
      %s137 = sphi 0, %s134
      %s138 = sphi 0, %s137
      %s154 = sphi 0, %s138
    $region4: #{double_conv_circular.1} parent=1 // loop_header_branch
      %17 = sbr.rel (%p15) target = $region8
    $region5: #{double_conv_circular.1} parent=1 // loop_body
      %s19 = ssub.s32 %s14, 1
      %s20 = ssub.s32 %s14, 2
      %s21 = sadd.s32 %s14, 1
      %s22 = ssub.s32 %s14, %s21
      %p23 = scmp.eq.s32.totalorder %s22, 0
      %s25 = sadd.s32 %s24, 1
      %s26 = scalar_select %p23, %s24, %s25
      %p29 = pneg %p23
      %p30 = scmp.eq.s32.totalorder %s14, 1
      %p31 = por %p29, %p30
      %p32 = scmp.ne.s32.totalorder %s24, %s27
      %p33 = scmp.eq.s32.totalorder %s14, 0
      %p34 = por %p32, %p33
      %p35 = scmp.ne.s32.totalorder %s24, %s27
      %p36 = scmp.eq.s32.totalorder %s19, 1
      %p37 = por %p35, %p36
      %p38 = scmp.ne.s32.totalorder %s27, %s28
      %p39 = scmp.eq.s32.totalorder %s19, 0
      %p40 = por %p38, %p39
      %p41 = scmp.ne.s32.totalorder %s27, %s28
      %p42 = scmp.eq.s32.totalorder %s20, 1
      %p43 = por %p41, %p42
      %p45 = scmp.ne.s32.totalorder %s28, %s44
      %p46 = scmp.eq.s32.totalorder %s20, 0
      %p47 = por %p45, %p46
      %s49 = sadd.s32 %s48, 1
      %p52 = scmp.eq.s32.totalorder %s14, 1
      %p53 = scmp.ne.s32.totalorder %s48, %s50
      %p54 = scmp.eq.s32.totalorder %s14, 0
      %p55 = por %p53, %p54
      %p56 = scmp.ne.s32.totalorder %s48, %s50
      %p57 = scmp.eq.s32.totalorder %s19, 1
      %p58 = por %p56, %p57
      %p59 = scmp.ne.s32.totalorder %s50, %s51
      %p60 = scmp.eq.s32.totalorder %s19, 0
      %p61 = por %p59, %p60
      %p62 = scmp.ne.s32.totalorder %s50, %s51
      %p63 = scmp.eq.s32.totalorder %s20, 1
      %p64 = por %p62, %p63
      %p66 = scmp.ne.s32.totalorder %s51, %s65
      %p67 = scmp.eq.s32.totalorder %s20, 0
      %p68 = por %p66, %p67
      %s70 = sadd.s32 %s69, 1
      %p73 = scmp.eq.s32.totalorder %s14, 1
      %p74 = scmp.ne.s32.totalorder %s69, %s71
      %p75 = scmp.eq.s32.totalorder %s14, 0
      %p76 = por %p74, %p75
      %p77 = scmp.ne.s32.totalorder %s69, %s71
      %p78 = scmp.eq.s32.totalorder %s19, 1
      %p79 = por %p77, %p78
      %p80 = scmp.ne.s32.totalorder %s71, %s72
      %p81 = scmp.eq.s32.totalorder %s19, 0
      %p82 = por %p80, %p81
      %p83 = scmp.ne.s32.totalorder %s71, %s72
      %p84 = scmp.eq.s32.totalorder %s20, 1
      %p85 = por %p83, %p84
      %p87 = scmp.ne.s32.totalorder %s72, %s86
      %p88 = scmp.eq.s32.totalorder %s20, 0
      %p89 = por %p87, %p88
      %s91 = sadd.s32 %s90, 1
      %p94 = scmp.eq.s32.totalorder %s14, 1
      %p95 = scmp.ne.s32.totalorder %s90, %s92
      %p96 = scmp.eq.s32.totalorder %s14, 0
      %p97 = por %p95, %p96
      %p98 = scmp.ne.s32.totalorder %s90, %s92
      %p99 = scmp.eq.s32.totalorder %s19, 1
      %p100 = por %p98, %p99
      %p101 = scmp.ne.s32.totalorder %s92, %s93
      %p102 = scmp.eq.s32.totalorder %s19, 0
      %p103 = por %p101, %p102
      %p104 = scmp.ne.s32.totalorder %s92, %s93
      %p105 = scmp.eq.s32.totalorder %s20, 1
      %p106 = por %p104, %p105
      %p108 = scmp.ne.s32.totalorder %s93, %s107
      %p109 = scmp.eq.s32.totalorder %s20, 0
      %p110 = por %p108, %p109
      %s112 = sadd.s32 %s111, 1
      %p115 = scmp.eq.s32.totalorder %s14, 1
      %p116 = scmp.ne.s32.totalorder %s111, %s113
      %p117 = scmp.eq.s32.totalorder %s14, 0
      %p118 = por %p116, %p117
      %p119 = scmp.ne.s32.totalorder %s111, %s113
      %p120 = scmp.eq.s32.totalorder %s19, 1
      %p121 = por %p119, %p120
      %p122 = scmp.ne.s32.totalorder %s113, %s114
      %p123 = scmp.eq.s32.totalorder %s19, 0
      %p124 = por %p122, %p123
      %p125 = scmp.ne.s32.totalorder %s113, %s114
      %p126 = scmp.eq.s32.totalorder %s20, 1
      %p127 = por %p125, %p126
      %p129 = scmp.ne.s32.totalorder %s114, %s128
      %p130 = scmp.eq.s32.totalorder %s20, 0
      %p131 = por %p129, %p130
      %s132 = ssub.s32 %s14, %s21
      %p133 = scmp.eq.s32.totalorder %s132, 0
      %s135 = sadd.s32 %s134, 1
      %s136 = scalar_select %p133, %s134, %s135
      %p139 = pneg %p133
      %p140 = scmp.eq.s32.totalorder %s14, 1
      %p141 = por %p139, %p140
      %p142 = scmp.ne.s32.totalorder %s134, %s137
      %p143 = scmp.eq.s32.totalorder %s14, 0
      %p144 = por %p142, %p143
      %p145 = scmp.ne.s32.totalorder %s134, %s137
      %p146 = scmp.eq.s32.totalorder %s19, 1
      %p147 = por %p145, %p146
      %p148 = scmp.ne.s32.totalorder %s137, %s138
      %p149 = scmp.eq.s32.totalorder %s19, 0
      %p150 = por %p148, %p149
      %p151 = scmp.ne.s32.totalorder %s137, %s138
      %p152 = scmp.eq.s32.totalorder %s20, 1
      %p153 = por %p151, %p152
      %p155 = scmp.ne.s32.totalorder %s138, %s154
      %p156 = scmp.eq.s32.totalorder %s20, 0
      %p157 = por %p155, %p156
      %p158 = scmp.le.s32.totalorder 1, %s14
      %p159 = scmp.lt.s32.totalorder %s14, 3
      %p160 = pnand %p158, %p159
      %p161 = pneg %p160
      // Predicated region
      $region9: #{double_conv_circular.1} parent=5 // pred_check
        _
      $region10: #{double_conv_circular.1} parent=5 // pred_check_branch
        %163 = sbr.rel (%p160) target = $region12
      $region11: #{double_conv_circular.1} parent=5 // pred_region
        %s164 = ssub.s32 %s14, 1
        // Predicated region
        $region13: #{double_conv_circular.1} parent=11 // pred_check
          %p165 = pneg %p61
        $region14: #{double_conv_circular.1} parent=11 // pred_check_branch
          %167 = sbr.rel (%p165) target = $region16
        $region15: #{double_conv_circular.1} parent=11 // pred_region
          _
        $region16: #{double_conv_circular.1} parent=11 // pred_fallthru
          _
        // Predicated region
        $region17: #{double_conv_circular.1} parent=11 // pred_check
          %p168 = pneg %p82
        $region18: #{double_conv_circular.1} parent=11 // pred_check_branch
          %170 = sbr.rel (%p168) target = $region20
        $region19: #{double_conv_circular.1} parent=11 // pred_region
          _
        $region20: #{double_conv_circular.1} parent=11 // pred_fallthru
          _
        // Predicated region
        $region21: #{double_conv_circular.1} parent=11 // pred_check
          %p171 = pneg %p103
        $region22: #{double_conv_circular.1} parent=11 // pred_check_branch
          %173 = sbr.rel (%p171) target = $region24
        $region23: #{double_conv_circular.1} parent=11 // pred_region
          _
        $region24: #{double_conv_circular.1} parent=11 // pred_fallthru
          _
        // Predicated region
        $region25: #{double_conv_circular.1} parent=11 // pred_check
          %p174 = pneg %p124
        $region26: #{double_conv_circular.1} parent=11 // pred_check_branch
          %176 = sbr.rel (%p174) target = $region28
        $region27: #{double_conv_circular.1} parent=11 // pred_region
          _
        $region28: #{double_conv_circular.1} parent=11 // pred_fallthru
          _
      $region12: #{double_conv_circular.1} parent=5 // pred_fallthru
        _
      %p177 = scmp.lt.s32.totalorder %s14, 2
      // Predicated region
      $region29: #{double_conv_circular.1} parent=5 // pred_check
        %p178 = pneg %p177
      $region30: #{double_conv_circular.1} parent=5 // pred_check_branch
        %180 = sbr.rel (%p178) target = $region32
      $region31: #{double_conv_circular.1} parent=5 // pred_region
        // Predicated region
        $region33: #{double_conv_circular.1} parent=31 // pred_check
          %p181 = pneg %p34
        $region34: #{double_conv_circular.1} parent=31 // pred_check_branch
          %183 = sbr.rel (%p181) target = $region36
        $region35: #{double_conv_circular.1} parent=31 // pred_region
          %p184 = scmp.lt.s32.totalorder %s14, 1
          %s185 = scalar_select %p184, %s14, 1
          %s186 = smul.addr %s185, 32
          %s187 = smul.addr %s186, 8
          %s188 = scalar_lea.vmem %s0, %s187
        $region36: #{double_conv_circular.1} parent=31 // pred_fallthru
          _
      $region32: #{double_conv_circular.1} parent=5 // pred_fallthru
        _
      %p189 = scmp.le.s32.totalorder 1, %s14
      %p190 = scmp.lt.s32.totalorder %s14, 3
      %p191 = pnand %p189, %p190
      %p192 = pneg %p191
      // Predicated region
      $region37: #{double_conv_circular.1} parent=5 // pred_check
        _
      $region38: #{double_conv_circular.1} parent=5 // pred_check_branch
        %194 = sbr.rel (%p191) target = $region40
      $region39: #{double_conv_circular.1} parent=5 // pred_region
        %s195 = ssub.s32 %s14, 1
        %p196 = scmp.lt.s32.totalorder %s19, 1
        %s197 = scalar_select %p196, %s19, 1
        %s198 = smul.addr %s197, 32
        %s199 = smul.addr %s198, 8
        %s200 = scalar_lea.vmem %s0, %s199
        %p201 = pneg %p40
        %p202 = pneg %p37
        %p203 = pneg %p61
        %p204 = pneg %p58
        %p205 = pneg %p82
        %p206 = pneg %p79
        %p207 = pneg %p103
        %p208 = pneg %p100
        %p209 = pneg %p124
        %p210 = pneg %p121
        %p211 = pneg %p150
        %p212 = pneg %p147
        %s213 = sand.u32 %s137, 1
        %s214 = scalar_lea.sflag [#allocation5], %s213
        %s215 = sand.u32 %s137, 1
        %s216 = smul.addr %s215, 256
        %s217 = scalar_lea.vmem [#allocation4], %s216
        %p218 = scmp.lt.s32.totalorder %s19, 1
        %s219 = scalar_select %p218, %s19, 1
        %s220 = smul.addr %s219, 32
        %s221 = smul.addr %s220, 8
        %s222 = scalar_lea.vmem %s0, %s221
        %v224 = vld [vmem:[%s222] sm:$0xff]
        %v225 = vld [vmem:[%s222 + $0x8] sm:$0xff]
        %v226 = vld [vmem:[%s222 + $0x10] sm:$0xff]
        %v227 = vld [vmem:[%s222 + $0x18] sm:$0xff]
        %v228 = vld [vmem:[%s222 + $0x20] sm:$0xff]
        %v229 = vld [vmem:[%s222 + $0x28] sm:$0xff]
        %v230 = vld [vmem:[%s222 + $0x30] sm:$0xff]
        %v231 = vld [vmem:[%s222 + $0x38] sm:$0xff]
        %v232 = vld [vmem:[%s222 + $0x40] sm:$0xff]
        %v233 = vld [vmem:[%s222 + $0x48] sm:$0xff]
        %v234 = vld [vmem:[%s222 + $0x50] sm:$0xff]
        %v235 = vld [vmem:[%s222 + $0x58] sm:$0xff]
        %v236 = vld [vmem:[%s222 + $0x60] sm:$0xff]
        %v237 = vld [vmem:[%s222 + $0x68] sm:$0xff]
        %v238 = vld [vmem:[%s222 + $0x70] sm:$0xff]
        %v239 = vld [vmem:[%s222 + $0x78] sm:$0xff]
        %v240 = vld [vmem:[%s222 + $0x80] sm:$0xff]
        %v241 = vld [vmem:[%s222 + $0x88] sm:$0xff]
        %v242 = vld [vmem:[%s222 + $0x90] sm:$0xff]
        %v243 = vld [vmem:[%s222 + $0x98] sm:$0xff]
        %v244 = vld [vmem:[%s222 + $0xa0] sm:$0xff]
        %v245 = vld [vmem:[%s222 + $0xa8] sm:$0xff]
        %v246 = vld [vmem:[%s222 + $0xb0] sm:$0xff]
        %v247 = vld [vmem:[%s222 + $0xb8] sm:$0xff]
        %v248 = vld [vmem:[%s222 + $0xc0] sm:$0xff]
        %v249 = vld [vmem:[%s222 + $0xc8] sm:$0xff]
        %v250 = vld [vmem:[%s222 + $0xd0] sm:$0xff]
        %v251 = vld [vmem:[%s222 + $0xd8] sm:$0xff]
        %v252 = vld [vmem:[%s222 + $0xe0] sm:$0xff]
        %v253 = vld [vmem:[%s222 + $0xe8] sm:$0xff]
        %v254 = vld [vmem:[%s222 + $0xf0] sm:$0xff]
        %v255 = vld [vmem:[%s222 + $0xf8] sm:$0xff]
        %v272 = vrot.slane %v225, 7
        %v273 = vrot.slane %v227, 7
        %v274 = vrot.slane %v229, 7
        %v275 = vrot.slane %v231, 7
        %v276 = vrot.slane %v233, 7
        %v277 = vrot.slane %v235, 7
        %v278 = vrot.slane %v237, 7
        %v279 = vrot.slane %v239, 7
        %v280 = vrot.slane %v241, 7
        %v281 = vrot.slane %v243, 7
        %v282 = vrot.slane %v245, 7
        %v283 = vrot.slane %v247, 7
        %v284 = vrot.slane %v249, 7
        %v285 = vrot.slane %v251, 7
        %v286 = vrot.slane %v253, 7
        %v287 = vrot.slane %v255, 7
        %vm320 = vcmask 1040384
        %v321 = vrot.slane %v224, 7
        %v322 = vsel %vm320, %v321, %v272
        %v323 = vrot.slane %v226, 7
        %v324 = vsel %vm320, %v323, %v273
        %v325 = vrot.slane %v228, 7
        %v326 = vsel %vm320, %v325, %v274
        %v327 = vrot.slane %v230, 7
        %v328 = vsel %vm320, %v327, %v275
        %v329 = vrot.slane %v232, 7
        %v330 = vsel %vm320, %v329, %v276
        %v331 = vrot.slane %v234, 7
        %v332 = vsel %vm320, %v331, %v277
        %v333 = vrot.slane %v236, 7
        %v334 = vsel %vm320, %v333, %v278
        %v335 = vrot.slane %v238, 7
        %v336 = vsel %vm320, %v335, %v279
        %v337 = vrot.slane %v240, 7
        %v338 = vsel %vm320, %v337, %v280
        %v339 = vrot.slane %v242, 7
        %v340 = vsel %vm320, %v339, %v281
        %v341 = vrot.slane %v244, 7
        %v342 = vsel %vm320, %v341, %v282
        %v343 = vrot.slane %v246, 7
        %v344 = vsel %vm320, %v343, %v283
        %v345 = vrot.slane %v248, 7
        %v346 = vsel %vm320, %v345, %v284
        %v347 = vrot.slane %v250, 7
        %v348 = vsel %vm320, %v347, %v285
        %v349 = vrot.slane %v252, 7
        %v350 = vsel %vm320, %v349, %v286
        %v351 = vrot.slane %v254, 7
        %v352 = vsel %vm320, %v351, %v287
        %v385 = vsel %vm320, %v272, %v321
        %v386 = vsel %vm320, %v273, %v323
        %v387 = vsel %vm320, %v274, %v325
        %v388 = vsel %vm320, %v275, %v327
        %v389 = vsel %vm320, %v276, %v329
        %v390 = vsel %vm320, %v277, %v331
        %v391 = vsel %vm320, %v278, %v333
        %v392 = vsel %vm320, %v279, %v335
        %v393 = vsel %vm320, %v280, %v337
        %v394 = vsel %vm320, %v281, %v339
        %v395 = vsel %vm320, %v282, %v341
        %v396 = vsel %vm320, %v283, %v343
        %v397 = vsel %vm320, %v284, %v345
        %v398 = vsel %vm320, %v285, %v347
        %v399 = vsel %vm320, %v286, %v349
        %v400 = vsel %vm320, %v287, %v351
        %s401 = scalar_lea.vmem [#allocation2], 24
        %vm402 = vcmask 31744
        %403 = vst.msk [vmem:[%s401] sm:$0xff] %vm402, %v385
        %404 = vst.msk [vmem:[%s401 + $0x8] sm:$0xff] %vm402, %v322
        %vm405 = vcmask 25600
        %406 = vst.msk [vmem:[%s401 + $0x10] sm:$0x3] %vm405, %v385
        %407 = vst.msk [vmem:[%s401 + $0x18] sm:$0xff] %vm402, %v386
        %408 = vst.msk [vmem:[%s401 + $0x20] sm:$0xff] %vm402, %v324
        %409 = vst.msk [vmem:[%s401 + $0x28] sm:$0x3] %vm405, %v386
        %410 = vst.msk [vmem:[%s401 + $0x30] sm:$0xff] %vm402, %v387
        %411 = vst.msk [vmem:[%s401 + $0x38] sm:$0xff] %vm402, %v326
        %412 = vst.msk [vmem:[%s401 + $0x40] sm:$0x3] %vm405, %v387
        %413 = vst.msk [vmem:[%s401 + $0x48] sm:$0xff] %vm402, %v388
        %414 = vst.msk [vmem:[%s401 + $0x50] sm:$0xff] %vm402, %v328
        %415 = vst.msk [vmem:[%s401 + $0x58] sm:$0x3] %vm405, %v388
        %416 = vst.msk [vmem:[%s401 + $0x60] sm:$0xff] %vm402, %v389
        %417 = vst.msk [vmem:[%s401 + $0x68] sm:$0xff] %vm402, %v330
        %418 = vst.msk [vmem:[%s401 + $0x70] sm:$0x3] %vm405, %v389
        %419 = vst.msk [vmem:[%s401 + $0x78] sm:$0xff] %vm402, %v390
        %420 = vst.msk [vmem:[%s401 + $0x80] sm:$0xff] %vm402, %v332
        %421 = vst.msk [vmem:[%s401 + $0x88] sm:$0x3] %vm405, %v390
        %422 = vst.msk [vmem:[%s401 + $0x90] sm:$0xff] %vm402, %v391
        %423 = vst.msk [vmem:[%s401 + $0x98] sm:$0xff] %vm402, %v334
        %424 = vst.msk [vmem:[%s401 + $0xa0] sm:$0x3] %vm405, %v391
        %425 = vst.msk [vmem:[%s401 + $0xa8] sm:$0xff] %vm402, %v392
        %426 = vst.msk [vmem:[%s401 + $0xb0] sm:$0xff] %vm402, %v336
        %427 = vst.msk [vmem:[%s401 + $0xb8] sm:$0x3] %vm405, %v392
        %428 = vst.msk [vmem:[%s401 + $0xc0] sm:$0xff] %vm402, %v393
        %429 = vst.msk [vmem:[%s401 + $0xc8] sm:$0xff] %vm402, %v338
        %430 = vst.msk [vmem:[%s401 + $0xd0] sm:$0x3] %vm405, %v393
        %431 = vst.msk [vmem:[%s401 + $0xd8] sm:$0xff] %vm402, %v394
        %432 = vst.msk [vmem:[%s401 + $0xe0] sm:$0xff] %vm402, %v340
        %433 = vst.msk [vmem:[%s401 + $0xe8] sm:$0x3] %vm405, %v394
        %434 = vst.msk [vmem:[%s401 + $0xf0] sm:$0xff] %vm402, %v395
        %435 = vst.msk [vmem:[%s401 + $0xf8] sm:$0xff] %vm402, %v342
        %436 = vst.msk [vmem:[%s401 + $0x100] sm:$0x3] %vm405, %v395
        %437 = vst.msk [vmem:[%s401 + $0x108] sm:$0xff] %vm402, %v396
        %438 = vst.msk [vmem:[%s401 + $0x110] sm:$0xff] %vm402, %v344
        %439 = vst.msk [vmem:[%s401 + $0x118] sm:$0x3] %vm405, %v396
        %440 = vst.msk [vmem:[%s401 + $0x120] sm:$0xff] %vm402, %v397
        %441 = vst.msk [vmem:[%s401 + $0x128] sm:$0xff] %vm402, %v346
        %442 = vst.msk [vmem:[%s401 + $0x130] sm:$0x3] %vm405, %v397
        %443 = vst.msk [vmem:[%s401 + $0x138] sm:$0xff] %vm402, %v398
        %444 = vst.msk [vmem:[%s401 + $0x140] sm:$0xff] %vm402, %v348
        %445 = vst.msk [vmem:[%s401 + $0x148] sm:$0x3] %vm405, %v398
        %446 = vst.msk [vmem:[%s401 + $0x150] sm:$0xff] %vm402, %v399
        %447 = vst.msk [vmem:[%s401 + $0x158] sm:$0xff] %vm402, %v350
        %448 = vst.msk [vmem:[%s401 + $0x160] sm:$0x3] %vm405, %v399
        %449 = vst.msk [vmem:[%s401 + $0x168] sm:$0xff] %vm402, %v400
        %450 = vst.msk [vmem:[%s401 + $0x170] sm:$0xff] %vm402, %v352
        %451 = vst.msk [vmem:[%s401 + $0x178] sm:$0x3] %vm405, %v400
        %452 = vst.msk [vmem:[#allocation2] sm:$0xff] %vm402, 0.0
        %453 = vst.msk [vmem:[#allocation2 + $0x8] sm:$0xff] %vm402, 0.0
        %454 = vst.msk [vmem:[#allocation2 + $0x10] sm:$0x3] %vm405, 0.0
        %s455 = scalar_lea.vmem [#allocation2], 408
        %456 = vst.msk [vmem:[%s455] sm:$0xff] %vm402, 0.0
        %457 = vst.msk [vmem:[%s455 + $0x8] sm:$0xff] %vm402, 0.0
        %458 = vst.msk [vmem:[%s455 + $0x10] sm:$0x3] %vm405, 0.0
        %v459 = vld [vmem:[#allocation2] sm:$0xff]
        %v460 = vld [vmem:[#allocation2 + $0x8] sm:$0xff]
        %v461 = vld [vmem:[#allocation2 + $0x18] sm:$0xff]
        %v462 = vld [vmem:[#allocation2 + $0x20] sm:$0xff]
        %v463 = vld [vmem:[#allocation2 + $0x30] sm:$0xff]
        %v464 = vld [vmem:[#allocation2 + $0x38] sm:$0xff]
        %v465 = vld [vmem:[#allocation2 + $0x48] sm:$0xff]
        %v466 = vld [vmem:[#allocation2 + $0x50] sm:$0xff]
        %v467 = vld [vmem:[#allocation2 + $0x60] sm:$0xff]
        %v468 = vld [vmem:[#allocation2 + $0x68] sm:$0xff]
        %v469 = vld [vmem:[#allocation2 + $0x78] sm:$0xff]
        %v470 = vld [vmem:[#allocation2 + $0x80] sm:$0xff]
        %v471 = vld [vmem:[#allocation2 + $0x90] sm:$0xff]
        %v472 = vld [vmem:[#allocation2 + $0x98] sm:$0xff]
        %v473 = vld [vmem:[#allocation2 + $0xa8] sm:$0xff]
        %v474 = vld [vmem:[#allocation2 + $0xb0] sm:$0xff]
        %v475 = vld [vmem:[#allocation2 + $0xc0] sm:$0xff]
        %v476 = vld [vmem:[#allocation2 + $0xc8] sm:$0xff]
        %v477 = vld [vmem:[#allocation2 + $0xd8] sm:$0xff]
        %v478 = vld [vmem:[#allocation2 + $0xe0] sm:$0xff]
        %v479 = vld [vmem:[#allocation2 + $0xf0] sm:$0xff]
        %v480 = vld [vmem:[#allocation2 + $0xf8] sm:$0xff]
        %v481 = vld [vmem:[#allocation2 + $0x108] sm:$0xff]
        %v482 = vld [vmem:[#allocation2 + $0x110] sm:$0xff]
        %v483 = vld [vmem:[#allocation2 + $0x120] sm:$0xff]
        %v484 = vld [vmem:[#allocation2 + $0x128] sm:$0xff]
        %v485 = vld [vmem:[#allocation2 + $0x138] sm:$0xff]
        %v486 = vld [vmem:[#allocation2 + $0x140] sm:$0xff]
        %v487 = vld [vmem:[#allocation2 + $0x150] sm:$0xff]
        %v488 = vld [vmem:[#allocation2 + $0x158] sm:$0xff]
        %v489 = vld [vmem:[#allocation2 + $0x168] sm:$0xff]
        %v490 = vld [vmem:[#allocation2 + $0x170] sm:$0xff]
        %v491 = vpack.c.bf16 %v460, %v459
        %v492 = vpack.c.bf16 %v462, %v461
        %v493 = vpack.c.bf16 %v464, %v463
        %v494 = vpack.c.bf16 %v466, %v465
        %v495 = vpack.c.bf16 %v468, %v467
        %v496 = vpack.c.bf16 %v470, %v469
        %v497 = vpack.c.bf16 %v472, %v471
        %v498 = vpack.c.bf16 %v474, %v473
        %v499 = vpack.c.bf16 %v476, %v475
        %v500 = vpack.c.bf16 %v478, %v477
        %v501 = vpack.c.bf16 %v480, %v479
        %v502 = vpack.c.bf16 %v482, %v481
        %v503 = vpack.c.bf16 %v484, %v483
        %v504 = vpack.c.bf16 %v486, %v485
        %v505 = vpack.c.bf16 %v488, %v487
        %v506 = vpack.c.bf16 %v490, %v489
        %v507 = vld [vmem:[%s1] sm:$0x3]
        %v508 = vld [vmem:[#allocation2 + $0x1] sm:$0xff]
        %v509 = vld [vmem:[#allocation2 + $0x9] sm:$0xff]
        %v510 = vld [vmem:[#allocation2 + $0x19] sm:$0xff]
        %v511 = vld [vmem:[#allocation2 + $0x21] sm:$0xff]
        %v512 = vld [vmem:[#allocation2 + $0x31] sm:$0xff]
        %v513 = vld [vmem:[#allocation2 + $0x39] sm:$0xff]
        %v514 = vld [vmem:[#allocation2 + $0x49] sm:$0xff]
        %v515 = vld [vmem:[#allocation2 + $0x51] sm:$0xff]
        %v516 = vld [vmem:[#allocation2 + $0x61] sm:$0xff]
        %v517 = vld [vmem:[#allocation2 + $0x69] sm:$0xff]
        %v518 = vld [vmem:[#allocation2 + $0x79] sm:$0xff]
        %v519 = vld [vmem:[#allocation2 + $0x81] sm:$0xff]
        %v520 = vld [vmem:[#allocation2 + $0x91] sm:$0xff]
        %v521 = vld [vmem:[#allocation2 + $0x99] sm:$0xff]
        %v522 = vld [vmem:[#allocation2 + $0xa9] sm:$0xff]
        %v523 = vld [vmem:[#allocation2 + $0xb1] sm:$0xff]
        %v524 = vld [vmem:[#allocation2 + $0xc1] sm:$0xff]
        %v525 = vld [vmem:[#allocation2 + $0xc9] sm:$0xff]
        %v526 = vld [vmem:[#allocation2 + $0xd9] sm:$0xff]
        %v527 = vld [vmem:[#allocation2 + $0xe1] sm:$0xff]
        %v528 = vld [vmem:[#allocation2 + $0xf1] sm:$0xff]
        %v529 = vld [vmem:[#allocation2 + $0xf9] sm:$0xff]
        %v530 = vld [vmem:[#allocation2 + $0x109] sm:$0xff]
        %v531 = vld [vmem:[#allocation2 + $0x111] sm:$0xff]
        %v532 = vld [vmem:[#allocation2 + $0x121] sm:$0xff]
        %v533 = vld [vmem:[#allocation2 + $0x129] sm:$0xff]
        %v534 = vld [vmem:[#allocation2 + $0x139] sm:$0xff]
        %v535 = vld [vmem:[#allocation2 + $0x141] sm:$0xff]
        %v536 = vld [vmem:[#allocation2 + $0x151] sm:$0xff]
        %v537 = vld [vmem:[#allocation2 + $0x159] sm:$0xff]
        %v538 = vld [vmem:[#allocation2 + $0x169] sm:$0xff]
        %v539 = vld [vmem:[#allocation2 + $0x171] sm:$0xff]
        %v540 = vpack.c.bf16 %v509, %v508
        %v541 = vpack.c.bf16 %v511, %v510
        %v542 = vpack.c.bf16 %v513, %v512
        %v543 = vpack.c.bf16 %v515, %v514
        %v544 = vpack.c.bf16 %v517, %v516
        %v545 = vpack.c.bf16 %v519, %v518
        %v546 = vpack.c.bf16 %v521, %v520
        %v547 = vpack.c.bf16 %v523, %v522
        %v548 = vpack.c.bf16 %v525, %v524
        %v549 = vpack.c.bf16 %v527, %v526
        %v550 = vpack.c.bf16 %v529, %v528
        %v551 = vpack.c.bf16 %v531, %v530
        %v552 = vpack.c.bf16 %v533, %v532
        %v553 = vpack.c.bf16 %v535, %v534
        %v554 = vpack.c.bf16 %v537, %v536
        %v555 = vpack.c.bf16 %v539, %v538
        %s556 = scalar_lea.vmem %s1, 2
        %v557 = vld [vmem:[%s556] sm:$0x3]
        %v559 = vsel %vm402, %v540, 0
        %v562 = vsel %vm402, %v541, 0
        %v565 = vsel %vm402, %v542, 0
        %v568 = vsel %vm402, %v543, 0
        %v571 = vsel %vm402, %v544, 0
        %v574 = vsel %vm402, %v545, 0
        %v577 = vsel %vm402, %v546, 0
        %v580 = vsel %vm402, %v547, 0
        %v583 = vsel %vm402, %v548, 0
        %v586 = vsel %vm402, %v549, 0
        %v589 = vsel %vm402, %v550, 0
        %v592 = vsel %vm402, %v551, 0
        %v595 = vsel %vm402, %v552, 0
        %v598 = vsel %vm402, %v553, 0
        %v601 = vsel %vm402, %v554, 0
        %v604 = vsel %vm402, %v555, 0
        %vm606 = vcmask 1041408
        %v608 = vsel %vm606, %v557, 0
        %610 = vmatprep.subr.bf16.mxu0 0
        %611 = vmatpush1.bf16.msra.mxu0 %v608
        %612 = vmatprep.subr.bf16.mxu0 0
        %613 = vmatpush1.bf16.msra.mxu0 0
        %614 = vmatprep.subr.bf16.mxu0 0
        %615 = vmatpush1.bf16.msra.mxu0 0
        %616 = vmatprep.subr.bf16.mxu0 0
        %617 = vmatpush1.bf16.msra.mxu0 0
        %618 = vmatprep.subr.bf16.mxu0 0
        %619 = vmatpush1.bf16.msra.mxu0 0
        %620 = vmatprep.subr.bf16.mxu0 0
        %621 = vmatpush1.bf16.msra.mxu0 0
        %622 = vmatprep.subr.bf16.mxu0 0
        %623 = vmatpush1.bf16.msra.mxu0 0
        %624 = vmatprep.subr.bf16.mxu0 0
        %625 = vmatpush1.bf16.msra.mxu0 0
        %626 = vmatprep.subr.bf16.mxu0 0
        %627 = vmatpush1.bf16.msra.mxu0 0
        %628 = vmatprep.subr.bf16.mxu0 0
        %629 = vmatpush1.bf16.msra.mxu0 0
        %630 = vmatprep.subr.bf16.mxu0 0
        %631 = vmatpush1.bf16.msra.mxu0 0
        %632 = vmatprep.subr.bf16.mxu0 0
        %633 = vmatpush1.bf16.msra.mxu0 0
        %634 = vmatprep.subr.bf16.mxu0 0
        %635 = vmatpush1.bf16.msra.mxu0 0
        %636 = vmatprep.subr.bf16.mxu0 0
        %637 = vmatpush1.bf16.msra.mxu0 0
        %638 = vmatprep.subr.bf16.mxu0 0
        %639 = vmatpush1.bf16.msra.mxu0 0
        %640 = vmatprep.subr.bf16.mxu0 0
        %641 = vmatpush1.bf16.msra.mxu0 0
        %642 = vmatprep.mubr.bf16.mxu0 0
        %643 = vmatmul.mubr.bf16.gmra.mrb[0].mxu0 %v559
        %v644 = vpop.f32.mrb[0].mxu0
        %v645 = vadd.f32 0.0, %v644
        %v646 = vpop.f32.mrb[0].mxu0
        %v647 = vpop.f32.mrb[0].mxu0
        %v648 = vadd.f32 0.0, %v647
        %v649 = vpop.f32.mrb[0].mxu0
        %650 = vmatprep.mubr.bf16.mxu0 0
        %651 = vmatmul.mubr.bf16.gmra.mrb[0].mxu0 %v562
        %v652 = vpop.f32.mrb[0].mxu0
        %v653 = vadd.f32 0.0, %v652
        %v654 = vpop.f32.mrb[0].mxu0
        %v655 = vpop.f32.mrb[0].mxu0
        %v656 = vadd.f32 0.0, %v655
        %v657 = vpop.f32.mrb[0].mxu0
        %658 = vmatprep.mubr.bf16.mxu0 0
        %659 = vmatmul.mubr.bf16.gmra.mrb[0].mxu0 %v565
        %v660 = vpop.f32.mrb[0].mxu0
        %v661 = vadd.f32 0.0, %v660
        %v662 = vpop.f32.mrb[0].mxu0
        %v663 = vpop.f32.mrb[0].mxu0
        %v664 = vadd.f32 0.0, %v663
        %v665 = vpop.f32.mrb[0].mxu0
        %666 = vmatprep.mubr.bf16.mxu0 0
        %667 = vmatmul.mubr.bf16.gmra.mrb[0].mxu0 %v568
        %v668 = vpop.f32.mrb[0].mxu0
        %v669 = vadd.f32 0.0, %v668
        %v670 = vpop.f32.mrb[0].mxu0
        %v671 = vpop.f32.mrb[0].mxu0
        %v672 = vadd.f32 0.0, %v671
        %v673 = vpop.f32.mrb[0].mxu0
        %674 = vmatprep.mubr.bf16.mxu0 0
        %675 = vmatmul.mubr.bf16.gmra.mrb[0].mxu0 %v571
        %v676 = vpop.f32.mrb[0].mxu0
        %v677 = vadd.f32 0.0, %v676
        %v678 = vpop.f32.mrb[0].mxu0
        %v679 = vpop.f32.mrb[0].mxu0
        %v680 = vadd.f32 0.0, %v679
        %v681 = vpop.f32.mrb[0].mxu0
        %682 = vmatprep.mubr.bf16.mxu0 0
        %683 = vmatmul.mubr.bf16.gmra.mrb[0].mxu0 %v574
        %v684 = vpop.f32.mrb[0].mxu0
        %v685 = vadd.f32 0.0, %v684
        %v686 = vpop.f32.mrb[0].mxu0
        %v687 = vpop.f32.mrb[0].mxu0
        %v688 = vadd.f32 0.0, %v687
        %v689 = vpop.f32.mrb[0].mxu0
        %690 = vmatprep.mubr.bf16.mxu0 0
        %691 = vmatmul.mubr.bf16.gmra.mrb[0].mxu0 %v577
        %v692 = vpop.f32.mrb[0].mxu0
        %v693 = vadd.f32 0.0, %v692
        %v694 = vpop.f32.mrb[0].mxu0
        %v695 = vpop.f32.mrb[0].mxu0
        %v696 = vadd.f32 0.0, %v695
        %v697 = vpop.f32.mrb[0].mxu0
        %698 = vmatprep.mubr.bf16.mxu0 0
        %699 = vmatmul.mubr.bf16.gmra.mrb[0].mxu0 %v580
        %v700 = vpop.f32.mrb[0].mxu0
        %v701 = vadd.f32 0.0, %v700
        %v702 = vpop.f32.mrb[0].mxu0
        %v703 = vpop.f32.mrb[0].mxu0
        %v704 = vadd.f32 0.0, %v703
        %v705 = vpop.f32.mrb[0].mxu0
        %706 = vmatprep.mubr.bf16.mxu0 0
        %707 = vmatmul.mubr.bf16.gmra.mrb[0].mxu0 %v583
        %v708 = vpop.f32.mrb[0].mxu0
        %v709 = vadd.f32 0.0, %v708
        %v710 = vpop.f32.mrb[0].mxu0
        %v711 = vpop.f32.mrb[0].mxu0
        %v712 = vadd.f32 0.0, %v711
        %v713 = vpop.f32.mrb[0].mxu0
        %714 = vmatprep.mubr.bf16.mxu0 0
        %715 = vmatmul.mubr.bf16.gmra.mrb[0].mxu0 %v586
        %v716 = vpop.f32.mrb[0].mxu0
        %v717 = vadd.f32 0.0, %v716
        %v718 = vpop.f32.mrb[0].mxu0
        %v719 = vpop.f32.mrb[0].mxu0
        %v720 = vadd.f32 0.0, %v719
        %v721 = vpop.f32.mrb[0].mxu0
        %722 = vmatprep.mubr.bf16.mxu0 0
        %723 = vmatmul.mubr.bf16.gmra.mrb[0].mxu0 %v589
        %v724 = vpop.f32.mrb[0].mxu0
        %v725 = vadd.f32 0.0, %v724
        %v726 = vpop.f32.mrb[0].mxu0
        %v727 = vpop.f32.mrb[0].mxu0
        %v728 = vadd.f32 0.0, %v727
        %v729 = vpop.f32.mrb[0].mxu0
        %730 = vmatprep.mubr.bf16.mxu0 0
        %731 = vmatmul.mubr.bf16.gmra.mrb[0].mxu0 %v592
        %v732 = vpop.f32.mrb[0].mxu0
        %v733 = vadd.f32 0.0, %v732
        %v734 = vpop.f32.mrb[0].mxu0
        %v735 = vpop.f32.mrb[0].mxu0
        %v736 = vadd.f32 0.0, %v735
        %v737 = vpop.f32.mrb[0].mxu0
        %738 = vmatprep.mubr.bf16.mxu0 0
        %739 = vmatmul.mubr.bf16.gmra.mrb[0].mxu0 %v595
        %v740 = vpop.f32.mrb[0].mxu0
        %v741 = vadd.f32 0.0, %v740
        %v742 = vpop.f32.mrb[0].mxu0
        %v743 = vpop.f32.mrb[0].mxu0
        %v744 = vadd.f32 0.0, %v743
        %v745 = vpop.f32.mrb[0].mxu0
        %746 = vmatprep.mubr.bf16.mxu0 0
        %747 = vmatmul.mubr.bf16.gmra.mrb[0].mxu0 %v598
        %v748 = vpop.f32.mrb[0].mxu0
        %v749 = vadd.f32 0.0, %v748
        %v750 = vpop.f32.mrb[0].mxu0
        %v751 = vpop.f32.mrb[0].mxu0
        %v752 = vadd.f32 0.0, %v751
        %v753 = vpop.f32.mrb[0].mxu0
        %754 = vmatprep.mubr.bf16.mxu0 0
        %755 = vmatmul.mubr.bf16.gmra.mrb[0].mxu0 %v601
        %v756 = vpop.f32.mrb[0].mxu0
        %v757 = vadd.f32 0.0, %v756
        %v758 = vpop.f32.mrb[0].mxu0
        %v759 = vpop.f32.mrb[0].mxu0
        %v760 = vadd.f32 0.0, %v759
        %v761 = vpop.f32.mrb[0].mxu0
        %762 = vmatprep.mubr.bf16.mxu0 0
        %763 = vmatmul.mubr.bf16.gmra.mrb[0].mxu0 %v604
        %v764 = vpop.f32.mrb[0].mxu0
        %v765 = vadd.f32 0.0, %v764
        %v766 = vpop.f32.mrb[0].mxu0
        %v767 = vpop.f32.mrb[0].mxu0
        %v768 = vadd.f32 0.0, %v767
        %v769 = vpop.f32.mrb[0].mxu0
        %770 = vdwg.mxu0
        %v772 = vsel %vm402, %v491, 0
        %v775 = vsel %vm402, %v492, 0
        %v778 = vsel %vm402, %v493, 0
        %v781 = vsel %vm402, %v494, 0
        %v784 = vsel %vm402, %v495, 0
        %v787 = vsel %vm402, %v496, 0
        %v790 = vsel %vm402, %v497, 0
        %v793 = vsel %vm402, %v498, 0
        %v796 = vsel %vm402, %v499, 0
        %v799 = vsel %vm402, %v500, 0
        %v802 = vsel %vm402, %v501, 0
        %v805 = vsel %vm402, %v502, 0
        %v808 = vsel %vm402, %v503, 0
        %v811 = vsel %vm402, %v504, 0
        %v814 = vsel %vm402, %v505, 0
        %v817 = vsel %vm402, %v506, 0
        %v820 = vsel %vm606, %v507, 0
        %822 = vmatprep.subr.bf16.mxu0 0
        %823 = vmatpush1.bf16.msra.mxu0 %v820
        %824 = vmatprep.subr.bf16.mxu0 0
        %825 = vmatpush1.bf16.msra.mxu0 0
        %826 = vmatprep.subr.bf16.mxu0 0
        %827 = vmatpush1.bf16.msra.mxu0 0
        %828 = vmatprep.subr.bf16.mxu0 0
        %829 = vmatpush1.bf16.msra.mxu0 0
        %830 = vmatprep.subr.bf16.mxu0 0
        %831 = vmatpush1.bf16.msra.mxu0 0
        %832 = vmatprep.subr.bf16.mxu0 0
        %833 = vmatpush1.bf16.msra.mxu0 0
        %834 = vmatprep.subr.bf16.mxu0 0
        %835 = vmatpush1.bf16.msra.mxu0 0
        %836 = vmatprep.subr.bf16.mxu0 0
        %837 = vmatpush1.bf16.msra.mxu0 0
        %838 = vmatprep.subr.bf16.mxu0 0
        %839 = vmatpush1.bf16.msra.mxu0 0
        %840 = vmatprep.subr.bf16.mxu0 0
        %841 = vmatpush1.bf16.msra.mxu0 0
        %842 = vmatprep.subr.bf16.mxu0 0
        %843 = vmatpush1.bf16.msra.mxu0 0
        %844 = vmatprep.subr.bf16.mxu0 0
        %845 = vmatpush1.bf16.msra.mxu0 0
        %846 = vmatprep.subr.bf16.mxu0 0
        %847 = vmatpush1.bf16.msra.mxu0 0
        %848 = vmatprep.subr.bf16.mxu0 0
        %849 = vmatpush1.bf16.msra.mxu0 0
        %850 = vmatprep.subr.bf16.mxu0 0
        %851 = vmatpush1.bf16.msra.mxu0 0
        %852 = vmatprep.subr.bf16.mxu0 0
        %853 = vmatpush1.bf16.msra.mxu0 0
        %854 = vmatprep.mubr.bf16.mxu0 0
        %855 = vmatmul.mubr.bf16.gmra.mrb[0].mxu0 %v772
        %v856 = vpop.f32.mrb[0].mxu0
        %v857 = vadd.f32 %v645, %v856
        %v858 = vpop.f32.mrb[0].mxu0
        %v859 = vpop.f32.mrb[0].mxu0
        %v860 = vadd.f32 %v648, %v859
        %v861 = vpop.f32.mrb[0].mxu0
        %862 = vmatprep.mubr.bf16.mxu0 0
        %863 = vmatmul.mubr.bf16.gmra.mrb[0].mxu0 %v775
        %v864 = vpop.f32.mrb[0].mxu0
        %v865 = vadd.f32 %v653, %v864
        %v866 = vpop.f32.mrb[0].mxu0
        %v867 = vpop.f32.mrb[0].mxu0
        %v868 = vadd.f32 %v656, %v867
        %v869 = vpop.f32.mrb[0].mxu0
        %870 = vmatprep.mubr.bf16.mxu0 0
        %871 = vmatmul.mubr.bf16.gmra.mrb[0].mxu0 %v778
        %v872 = vpop.f32.mrb[0].mxu0
        %v873 = vadd.f32 %v661, %v872
        %v874 = vpop.f32.mrb[0].mxu0
        %v875 = vpop.f32.mrb[0].mxu0
        %v876 = vadd.f32 %v664, %v875
        %v877 = vpop.f32.mrb[0].mxu0
        %878 = vmatprep.mubr.bf16.mxu0 0
        %879 = vmatmul.mubr.bf16.gmra.mrb[0].mxu0 %v781
        %v880 = vpop.f32.mrb[0].mxu0
        %v881 = vadd.f32 %v669, %v880
        %v882 = vpop.f32.mrb[0].mxu0
        %v883 = vpop.f32.mrb[0].mxu0
        %v884 = vadd.f32 %v672, %v883
        %v885 = vpop.f32.mrb[0].mxu0
        %886 = vmatprep.mubr.bf16.mxu0 0
        %887 = vmatmul.mubr.bf16.gmra.mrb[0].mxu0 %v784
        %v888 = vpop.f32.mrb[0].mxu0
        %v889 = vadd.f32 %v677, %v888
        %v890 = vpop.f32.mrb[0].mxu0
        %v891 = vpop.f32.mrb[0].mxu0
        %v892 = vadd.f32 %v680, %v891
        %v893 = vpop.f32.mrb[0].mxu0
        %894 = vmatprep.mubr.bf16.mxu0 0
        %895 = vmatmul.mubr.bf16.gmra.mrb[0].mxu0 %v787
        %v896 = vpop.f32.mrb[0].mxu0
        %v897 = vadd.f32 %v685, %v896
        %v898 = vpop.f32.mrb[0].mxu0
        %v899 = vpop.f32.mrb[0].mxu0
        %v900 = vadd.f32 %v688, %v899
        %v901 = vpop.f32.mrb[0].mxu0
        %902 = vmatprep.mubr.bf16.mxu0 0
        %903 = vmatmul.mubr.bf16.gmra.mrb[0].mxu0 %v790
        %v904 = vpop.f32.mrb[0].mxu0
        %v905 = vadd.f32 %v693, %v904
        %v906 = vpop.f32.mrb[0].mxu0
        %v907 = vpop.f32.mrb[0].mxu0
        %v908 = vadd.f32 %v696, %v907
        %v909 = vpop.f32.mrb[0].mxu0
        %910 = vmatprep.mubr.bf16.mxu0 0
        %911 = vmatmul.mubr.bf16.gmra.mrb[0].mxu0 %v793
        %v912 = vpop.f32.mrb[0].mxu0
        %v913 = vadd.f32 %v701, %v912
        %v914 = vpop.f32.mrb[0].mxu0
        %v915 = vpop.f32.mrb[0].mxu0
        %v916 = vadd.f32 %v704, %v915
        %v917 = vpop.f32.mrb[0].mxu0
        %918 = vmatprep.mubr.bf16.mxu0 0
        %919 = vmatmul.mubr.bf16.gmra.mrb[0].mxu0 %v796
        %v920 = vpop.f32.mrb[0].mxu0
        %v921 = vadd.f32 %v709, %v920
        %v922 = vpop.f32.mrb[0].mxu0
        %v923 = vpop.f32.mrb[0].mxu0
        %v924 = vadd.f32 %v712, %v923
        %v925 = vpop.f32.mrb[0].mxu0
        %926 = vmatprep.mubr.bf16.mxu0 0
        %927 = vmatmul.mubr.bf16.gmra.mrb[0].mxu0 %v799
        %v928 = vpop.f32.mrb[0].mxu0
        %v929 = vadd.f32 %v717, %v928
        %v930 = vpop.f32.mrb[0].mxu0
        %v931 = vpop.f32.mrb[0].mxu0
        %v932 = vadd.f32 %v720, %v931
        %v933 = vpop.f32.mrb[0].mxu0
        %934 = vmatprep.mubr.bf16.mxu0 0
        %935 = vmatmul.mubr.bf16.gmra.mrb[0].mxu0 %v802
        %v936 = vpop.f32.mrb[0].mxu0
        %v937 = vadd.f32 %v725, %v936
        %v938 = vpop.f32.mrb[0].mxu0
        %v939 = vpop.f32.mrb[0].mxu0
        %v940 = vadd.f32 %v728, %v939
        %v941 = vpop.f32.mrb[0].mxu0
        %942 = vmatprep.mubr.bf16.mxu0 0
        %943 = vmatmul.mubr.bf16.gmra.mrb[0].mxu0 %v805
        %v944 = vpop.f32.mrb[0].mxu0
        %v945 = vadd.f32 %v733, %v944
        %v946 = vpop.f32.mrb[0].mxu0
        %v947 = vpop.f32.mrb[0].mxu0
        %v948 = vadd.f32 %v736, %v947
        %v949 = vpop.f32.mrb[0].mxu0
        %950 = vmatprep.mubr.bf16.mxu0 0
        %951 = vmatmul.mubr.bf16.gmra.mrb[0].mxu0 %v808
        %v952 = vpop.f32.mrb[0].mxu0
        %v953 = vadd.f32 %v741, %v952
        %v954 = vpop.f32.mrb[0].mxu0
        %v955 = vpop.f32.mrb[0].mxu0
        %v956 = vadd.f32 %v744, %v955
        %v957 = vpop.f32.mrb[0].mxu0
        %958 = vmatprep.mubr.bf16.mxu0 0
        %959 = vmatmul.mubr.bf16.gmra.mrb[0].mxu0 %v811
        %v960 = vpop.f32.mrb[0].mxu0
        %v961 = vadd.f32 %v749, %v960
        %v962 = vpop.f32.mrb[0].mxu0
        %v963 = vpop.f32.mrb[0].mxu0
        %v964 = vadd.f32 %v752, %v963
        %v965 = vpop.f32.mrb[0].mxu0
        %966 = vmatprep.mubr.bf16.mxu0 0
        %967 = vmatmul.mubr.bf16.gmra.mrb[0].mxu0 %v814
        %v968 = vpop.f32.mrb[0].mxu0
        %v969 = vadd.f32 %v757, %v968
        %v970 = vpop.f32.mrb[0].mxu0
        %v971 = vpop.f32.mrb[0].mxu0
        %v972 = vadd.f32 %v760, %v971
        %v973 = vpop.f32.mrb[0].mxu0
        %974 = vmatprep.mubr.bf16.mxu0 0
        %975 = vmatmul.mubr.bf16.gmra.mrb[0].mxu0 %v817
        %v976 = vpop.f32.mrb[0].mxu0
        %v977 = vadd.f32 %v765, %v976
        %v978 = vpop.f32.mrb[0].mxu0
        %v979 = vpop.f32.mrb[0].mxu0
        %v980 = vadd.f32 %v768, %v979
        %v981 = vpop.f32.mrb[0].mxu0
        %982 = vdwg.mxu0
        %v983 = vld [vmem:[#allocation2 + $0x2] sm:$0xff]
        %v984 = vld [vmem:[#allocation2 + $0xa] sm:$0xff]
        %v985 = vld [vmem:[#allocation2 + $0x1a] sm:$0xff]
        %v986 = vld [vmem:[#allocation2 + $0x22] sm:$0xff]
        %v987 = vld [vmem:[#allocation2 + $0x32] sm:$0xff]
        %v988 = vld [vmem:[#allocation2 + $0x3a] sm:$0xff]
        %v989 = vld [vmem:[#allocation2 + $0x4a] sm:$0xff]
        %v990 = vld [vmem:[#allocation2 + $0x52] sm:$0xff]
        %v991 = vld [vmem:[#allocation2 + $0x62] sm:$0xff]
        %v992 = vld [vmem:[#allocation2 + $0x6a] sm:$0xff]
        %v993 = vld [vmem:[#allocation2 + $0x7a] sm:$0xff]
        %v994 = vld [vmem:[#allocation2 + $0x82] sm:$0xff]
        %v995 = vld [vmem:[#allocation2 + $0x92] sm:$0xff]
        %v996 = vld [vmem:[#allocation2 + $0x9a] sm:$0xff]
        %v997 = vld [vmem:[#allocation2 + $0xaa] sm:$0xff]
        %v998 = vld [vmem:[#allocation2 + $0xb2] sm:$0xff]
        %v999 = vld [vmem:[#allocation2 + $0xc2] sm:$0xff]
        %v1000 = vld [vmem:[#allocation2 + $0xca] sm:$0xff]
        %v1001 = vld [vmem:[#allocation2 + $0xda] sm:$0xff]
        %v1002 = vld [vmem:[#allocation2 + $0xe2] sm:$0xff]
        %v1003 = vld [vmem:[#allocation2 + $0xf2] sm:$0xff]
        %v1004 = vld [vmem:[#allocation2 + $0xfa] sm:$0xff]
        %v1005 = vld [vmem:[#allocation2 + $0x10a] sm:$0xff]
        %v1006 = vld [vmem:[#allocation2 + $0x112] sm:$0xff]
        %v1007 = vld [vmem:[#allocation2 + $0x122] sm:$0xff]
        %v1008 = vld [vmem:[#allocation2 + $0x12a] sm:$0xff]
        %v1009 = vld [vmem:[#allocation2 + $0x13a] sm:$0xff]
        %v1010 = vld [vmem:[#allocation2 + $0x142] sm:$0xff]
        %v1011 = vld [vmem:[#allocation2 + $0x152] sm:$0xff]
        %v1012 = vld [vmem:[#allocation2 + $0x15a] sm:$0xff]
        %v1013 = vld [vmem:[#allocation2 + $0x16a] sm:$0xff]
        %v1014 = vld [vmem:[#allocation2 + $0x172] sm:$0xff]
        %v1015 = vpack.c.bf16 %v984, %v983
        %v1016 = vpack.c.bf16 %v986, %v985
        %v1017 = vpack.c.bf16 %v988, %v987
        %v1018 = vpack.c.bf16 %v990, %v989
        %v1019 = vpack.c.bf16 %v992, %v991
        %v1020 = vpack.c.bf16 %v994, %v993
        %v1021 = vpack.c.bf16 %v996, %v995
        %v1022 = vpack.c.bf16 %v998, %v997
        %v1023 = vpack.c.bf16 %v1000, %v999
        %v1024 = vpack.c.bf16 %v1002, %v1001
        %v1025 = vpack.c.bf16 %v1004, %v1003
        %v1026 = vpack.c.bf16 %v1006, %v1005
        %v1027 = vpack.c.bf16 %v1008, %v1007
        %v1028 = vpack.c.bf16 %v1010, %v1009
        %v1029 = vpack.c.bf16 %v1012, %v1011
        %v1030 = vpack.c.bf16 %v1014, %v1013
        %s1031 = scalar_lea.vmem %s1, 4
        %v1032 = vld [vmem:[%s1031] sm:$0x3]
        %v1034 = vsel %vm402, %v1015, 0
        %v1037 = vsel %vm402, %v1016, 0
        %v1040 = vsel %vm402, %v1017, 0
        %v1043 = vsel %vm402, %v1018, 0
        %v1046 = vsel %vm402, %v1019, 0
        %v1049 = vsel %vm402, %v1020, 0
        %v1052 = vsel %vm402, %v1021, 0
        %v1055 = vsel %vm402, %v1022, 0
        %v1058 = vsel %vm402, %v1023, 0
        %v1061 = vsel %vm402, %v1024, 0
        %v1064 = vsel %vm402, %v1025, 0
        %v1067 = vsel %vm402, %v1026, 0
        %v1070 = vsel %vm402, %v1027, 0
        %v1073 = vsel %vm402, %v1028, 0
        %v1076 = vsel %vm402, %v1029, 0
        %v1079 = vsel %vm402, %v1030, 0
        %v1082 = vsel %vm606, %v1032, 0
        %1084 = vmatprep.subr.bf16.mxu0 0
        %1085 = vmatpush1.bf16.msra.mxu0 %v1082
        %1086 = vmatprep.subr.bf16.mxu0 0
        %1087 = vmatpush1.bf16.msra.mxu0 0
        %1088 = vmatprep.subr.bf16.mxu0 0
        %1089 = vmatpush1.bf16.msra.mxu0 0
        %1090 = vmatprep.subr.bf16.mxu0 0
        %1091 = vmatpush1.bf16.msra.mxu0 0
        %1092 = vmatprep.subr.bf16.mxu0 0
        %1093 = vmatpush1.bf16.msra.mxu0 0
        %1094 = vmatprep.subr.bf16.mxu0 0
        %1095 = vmatpush1.bf16.msra.mxu0 0
        %1096 = vmatprep.subr.bf16.mxu0 0
        %1097 = vmatpush1.bf16.msra.mxu0 0
        %1098 = vmatprep.subr.bf16.mxu0 0
        %1099 = vmatpush1.bf16.msra.mxu0 0
        %1100 = vmatprep.subr.bf16.mxu0 0
        %1101 = vmatpush1.bf16.msra.mxu0 0
        %1102 = vmatprep.subr.bf16.mxu0 0
        %1103 = vmatpush1.bf16.msra.mxu0 0
        %1104 = vmatprep.subr.bf16.mxu0 0
        %1105 = vmatpush1.bf16.msra.mxu0 0
        %1106 = vmatprep.subr.bf16.mxu0 0
        %1107 = vmatpush1.bf16.msra.mxu0 0
        %1108 = vmatprep.subr.bf16.mxu0 0
        %1109 = vmatpush1.bf16.msra.mxu0 0
        %1110 = vmatprep.subr.bf16.mxu0 0
        %1111 = vmatpush1.bf16.msra.mxu0 0
        %1112 = vmatprep.subr.bf16.mxu0 0
        %1113 = vmatpush1.bf16.msra.mxu0 0
        %1114 = vmatprep.subr.bf16.mxu0 0
        %1115 = vmatpush1.bf16.msra.mxu0 0
        %1116 = vmatprep.mubr.bf16.mxu0 0
        %1117 = vmatmul.mubr.bf16.gmra.mrb[0].mxu0 %v1034
        %v1118 = vpop.f32.mrb[0].mxu0
        %v1119 = vadd.f32 0.0, %v1118
        %v1120 = vpop.f32.mrb[0].mxu0
        %v1121 = vpop.f32.mrb[0].mxu0
        %v1122 = vadd.f32 0.0, %v1121
        %v1123 = vpop.f32.mrb[0].mxu0
        %1124 = vmatprep.mubr.bf16.mxu0 0
        %1125 = vmatmul.mubr.bf16.gmra.mrb[0].mxu0 %v1037
        %v1126 = vpop.f32.mrb[0].mxu0
        %v1127 = vadd.f32 0.0, %v1126
        %v1128 = vpop.f32.mrb[0].mxu0
        %v1129 = vpop.f32.mrb[0].mxu0
        %v1130 = vadd.f32 0.0, %v1129
        %v1131 = vpop.f32.mrb[0].mxu0
        %1132 = vmatprep.mubr.bf16.mxu0 0
        %1133 = vmatmul.mubr.bf16.gmra.mrb[0].mxu0 %v1040
        %v1134 = vpop.f32.mrb[0].mxu0
        %v1135 = vadd.f32 0.0, %v1134
        %v1136 = vpop.f32.mrb[0].mxu0
        %v1137 = vpop.f32.mrb[0].mxu0
        %v1138 = vadd.f32 0.0, %v1137
        %v1139 = vpop.f32.mrb[0].mxu0
        %1140 = vmatprep.mubr.bf16.mxu0 0
        %1141 = vmatmul.mubr.bf16.gmra.mrb[0].mxu0 %v1043
        %v1142 = vpop.f32.mrb[0].mxu0
        %v1143 = vadd.f32 0.0, %v1142
        %v1144 = vpop.f32.mrb[0].mxu0
        %v1145 = vpop.f32.mrb[0].mxu0
        %v1146 = vadd.f32 0.0, %v1145
        %v1147 = vpop.f32.mrb[0].mxu0
        %1148 = vmatprep.mubr.bf16.mxu0 0
        %1149 = vmatmul.mubr.bf16.gmra.mrb[0].mxu0 %v1046
        %v1150 = vpop.f32.mrb[0].mxu0
        %v1151 = vadd.f32 0.0, %v1150
        %v1152 = vpop.f32.mrb[0].mxu0
        %v1153 = vpop.f32.mrb[0].mxu0
        %v1154 = vadd.f32 0.0, %v1153
        %v1155 = vpop.f32.mrb[0].mxu0
        %1156 = vmatprep.mubr.bf16.mxu0 0
        %1157 = vmatmul.mubr.bf16.gmra.mrb[0].mxu0 %v1049
        %v1158 = vpop.f32.mrb[0].mxu0
        %v1159 = vadd.f32 0.0, %v1158
        %v1160 = vpop.f32.mrb[0].mxu0
        %v1161 = vpop.f32.mrb[0].mxu0
        %v1162 = vadd.f32 0.0, %v1161
        %v1163 = vpop.f32.mrb[0].mxu0
        %1164 = vmatprep.mubr.bf16.mxu0 0
        %1165 = vmatmul.mubr.bf16.gmra.mrb[0].mxu0 %v1052
        %v1166 = vpop.f32.mrb[0].mxu0
        %v1167 = vadd.f32 0.0, %v1166
        %v1168 = vpop.f32.mrb[0].mxu0
        %v1169 = vpop.f32.mrb[0].mxu0
        %v1170 = vadd.f32 0.0, %v1169
        %v1171 = vpop.f32.mrb[0].mxu0
        %1172 = vmatprep.mubr.bf16.mxu0 0
        %1173 = vmatmul.mubr.bf16.gmra.mrb[0].mxu0 %v1055
        %v1174 = vpop.f32.mrb[0].mxu0
        %v1175 = vadd.f32 0.0, %v1174
        %v1176 = vpop.f32.mrb[0].mxu0
        %v1177 = vpop.f32.mrb[0].mxu0
        %v1178 = vadd.f32 0.0, %v1177
        %v1179 = vpop.f32.mrb[0].mxu0
        %1180 = vmatprep.mubr.bf16.mxu0 0
        %1181 = vmatmul.mubr.bf16.gmra.mrb[0].mxu0 %v1058
        %v1182 = vpop.f32.mrb[0].mxu0
        %v1183 = vadd.f32 0.0, %v1182
        %v1184 = vpop.f32.mrb[0].mxu0
        %v1185 = vpop.f32.mrb[0].mxu0
        %v1186 = vadd.f32 0.0, %v1185
        %v1187 = vpop.f32.mrb[0].mxu0
        %1188 = vmatprep.mubr.bf16.mxu0 0
        %1189 = vmatmul.mubr.bf16.gmra.mrb[0].mxu0 %v1061
        %v1190 = vpop.f32.mrb[0].mxu0
        %v1191 = vadd.f32 0.0, %v1190
        %v1192 = vpop.f32.mrb[0].mxu0
        %v1193 = vpop.f32.mrb[0].mxu0
        %v1194 = vadd.f32 0.0, %v1193
        %v1195 = vpop.f32.mrb[0].mxu0
        %1196 = vmatprep.mubr.bf16.mxu0 0
        %1197 = vmatmul.mubr.bf16.gmra.mrb[0].mxu0 %v1064
        %v1198 = vpop.f32.mrb[0].mxu0
        %v1199 = vadd.f32 0.0, %v1198
        %v1200 = vpop.f32.mrb[0].mxu0
        %v1201 = vpop.f32.mrb[0].mxu0
        %v1202 = vadd.f32 0.0, %v1201
        %v1203 = vpop.f32.mrb[0].mxu0
        %1204 = vmatprep.mubr.bf16.mxu0 0
        %1205 = vmatmul.mubr.bf16.gmra.mrb[0].mxu0 %v1067
        %v1206 = vpop.f32.mrb[0].mxu0
        %v1207 = vadd.f32 0.0, %v1206
        %v1208 = vpop.f32.mrb[0].mxu0
        %v1209 = vpop.f32.mrb[0].mxu0
        %v1210 = vadd.f32 0.0, %v1209
        %v1211 = vpop.f32.mrb[0].mxu0
        %1212 = vmatprep.mubr.bf16.mxu0 0
        %1213 = vmatmul.mubr.bf16.gmra.mrb[0].mxu0 %v1070
        %v1214 = vpop.f32.mrb[0].mxu0
        %v1215 = vadd.f32 0.0, %v1214
        %v1216 = vpop.f32.mrb[0].mxu0
        %v1217 = vpop.f32.mrb[0].mxu0
        %v1218 = vadd.f32 0.0, %v1217
        %v1219 = vpop.f32.mrb[0].mxu0
        %1220 = vmatprep.mubr.bf16.mxu0 0
        %1221 = vmatmul.mubr.bf16.gmra.mrb[0].mxu0 %v1073
        %v1222 = vpop.f32.mrb[0].mxu0
        %v1223 = vadd.f32 0.0, %v1222
        %v1224 = vpop.f32.mrb[0].mxu0
        %v1225 = vpop.f32.mrb[0].mxu0
        %v1226 = vadd.f32 0.0, %v1225
        %v1227 = vpop.f32.mrb[0].mxu0
        %1228 = vmatprep.mubr.bf16.mxu0 0
        %1229 = vmatmul.mubr.bf16.gmra.mrb[0].mxu0 %v1076
        %v1230 = vpop.f32.mrb[0].mxu0
        %v1231 = vadd.f32 0.0, %v1230
        %v1232 = vpop.f32.mrb[0].mxu0
        %v1233 = vpop.f32.mrb[0].mxu0
        %v1234 = vadd.f32 0.0, %v1233
        %v1235 = vpop.f32.mrb[0].mxu0
        %1236 = vmatprep.mubr.bf16.mxu0 0
        %1237 = vmatmul.mubr.bf16.gmra.mrb[0].mxu0 %v1079
        %v1238 = vpop.f32.mrb[0].mxu0
        %v1239 = vadd.f32 0.0, %v1238
        %v1240 = vpop.f32.mrb[0].mxu0
        %v1241 = vpop.f32.mrb[0].mxu0
        %v1242 = vadd.f32 0.0, %v1241
        %v1243 = vpop.f32.mrb[0].mxu0
        %1244 = vdwg.mxu0
        %v1245 = vadd.f32 %v857, %v1119
        %v1246 = vadd.f32 %v860, %v1122
        %v1247 = vadd.f32 %v865, %v1127
        %v1248 = vadd.f32 %v868, %v1130
        %v1249 = vadd.f32 %v873, %v1135
        %v1250 = vadd.f32 %v876, %v1138
        %v1251 = vadd.f32 %v881, %v1143
        %v1252 = vadd.f32 %v884, %v1146
        %v1253 = vadd.f32 %v889, %v1151
        %v1254 = vadd.f32 %v892, %v1154
        %v1255 = vadd.f32 %v897, %v1159
        %v1256 = vadd.f32 %v900, %v1162
        %v1257 = vadd.f32 %v905, %v1167
        %v1258 = vadd.f32 %v908, %v1170
        %v1259 = vadd.f32 %v913, %v1175
        %v1260 = vadd.f32 %v916, %v1178
        %v1261 = vadd.f32 %v921, %v1183
        %v1262 = vadd.f32 %v924, %v1186
        %v1263 = vadd.f32 %v929, %v1191
        %v1264 = vadd.f32 %v932, %v1194
        %v1265 = vadd.f32 %v937, %v1199
        %v1266 = vadd.f32 %v940, %v1202
        %v1267 = vadd.f32 %v945, %v1207
        %v1268 = vadd.f32 %v948, %v1210
        %v1269 = vadd.f32 %v953, %v1215
        %v1270 = vadd.f32 %v956, %v1218
        %v1271 = vadd.f32 %v961, %v1223
        %v1272 = vadd.f32 %v964, %v1226
        %v1273 = vadd.f32 %v969, %v1231
        %v1274 = vadd.f32 %v972, %v1234
        %v1275 = vadd.f32 %v977, %v1239
        %v1276 = vadd.f32 %v980, %v1242
        %v1277 = vld [vmem:[%s401] sm:$0xff]
        %v1278 = vld [vmem:[%s401 + $0x8] sm:$0xff]
        %v1279 = vld [vmem:[%s401 + $0x18] sm:$0xff]
        %v1280 = vld [vmem:[%s401 + $0x20] sm:$0xff]
        %v1281 = vld [vmem:[%s401 + $0x30] sm:$0xff]
        %v1282 = vld [vmem:[%s401 + $0x38] sm:$0xff]
        %v1283 = vld [vmem:[%s401 + $0x48] sm:$0xff]
        %v1284 = vld [vmem:[%s401 + $0x50] sm:$0xff]
        %v1285 = vld [vmem:[%s401 + $0x60] sm:$0xff]
        %v1286 = vld [vmem:[%s401 + $0x68] sm:$0xff]
        %v1287 = vld [vmem:[%s401 + $0x78] sm:$0xff]
        %v1288 = vld [vmem:[%s401 + $0x80] sm:$0xff]
        %v1289 = vld [vmem:[%s401 + $0x90] sm:$0xff]
        %v1290 = vld [vmem:[%s401 + $0x98] sm:$0xff]
        %v1291 = vld [vmem:[%s401 + $0xa8] sm:$0xff]
        %v1292 = vld [vmem:[%s401 + $0xb0] sm:$0xff]
        %v1293 = vld [vmem:[%s401 + $0xc0] sm:$0xff]
        %v1294 = vld [vmem:[%s401 + $0xc8] sm:$0xff]
        %v1295 = vld [vmem:[%s401 + $0xd8] sm:$0xff]
        %v1296 = vld [vmem:[%s401 + $0xe0] sm:$0xff]
        %v1297 = vld [vmem:[%s401 + $0xf0] sm:$0xff]
        %v1298 = vld [vmem:[%s401 + $0xf8] sm:$0xff]
        %v1299 = vld [vmem:[%s401 + $0x108] sm:$0xff]
        %v1300 = vld [vmem:[%s401 + $0x110] sm:$0xff]
        %v1301 = vld [vmem:[%s401 + $0x120] sm:$0xff]
        %v1302 = vld [vmem:[%s401 + $0x128] sm:$0xff]
        %v1303 = vld [vmem:[%s401 + $0x138] sm:$0xff]
        %v1304 = vld [vmem:[%s401 + $0x140] sm:$0xff]
        %v1305 = vld [vmem:[%s401 + $0x150] sm:$0xff]
        %v1306 = vld [vmem:[%s401 + $0x158] sm:$0xff]
        %v1307 = vld [vmem:[%s401 + $0x168] sm:$0xff]
        %v1308 = vld [vmem:[%s401 + $0x170] sm:$0xff]
        %v1309 = vpack.c.bf16 %v1278, %v1277
        %v1310 = vpack.c.bf16 %v1280, %v1279
        %v1311 = vpack.c.bf16 %v1282, %v1281
        %v1312 = vpack.c.bf16 %v1284, %v1283
        %v1313 = vpack.c.bf16 %v1286, %v1285
        %v1314 = vpack.c.bf16 %v1288, %v1287
        %v1315 = vpack.c.bf16 %v1290, %v1289
        %v1316 = vpack.c.bf16 %v1292, %v1291
        %v1317 = vpack.c.bf16 %v1294, %v1293
        %v1318 = vpack.c.bf16 %v1296, %v1295
        %v1319 = vpack.c.bf16 %v1298, %v1297
        %v1320 = vpack.c.bf16 %v1300, %v1299
        %v1321 = vpack.c.bf16 %v1302, %v1301
        %v1322 = vpack.c.bf16 %v1304, %v1303
        %v1323 = vpack.c.bf16 %v1306, %v1305
        %v1324 = vpack.c.bf16 %v1308, %v1307
        %s1325 = scalar_lea.vmem %s1, 6
        %v1326 = vld [vmem:[%s1325] sm:$0x3]
        %v1328 = vsel %vm402, %v1309, 0
        %v1331 = vsel %vm402, %v1310, 0
        %v1334 = vsel %vm402, %v1311, 0
        %v1337 = vsel %vm402, %v1312, 0
        %v1340 = vsel %vm402, %v1313, 0
        %v1343 = vsel %vm402, %v1314, 0
        %v1346 = vsel %vm402, %v1315, 0
        %v1349 = vsel %vm402, %v1316, 0
        %v1352 = vsel %vm402, %v1317, 0
        %v1355 = vsel %vm402, %v1318, 0
        %v1358 = vsel %vm402, %v1319, 0
        %v1361 = vsel %vm402, %v1320, 0
        %v1364 = vsel %vm402, %v1321, 0
        %v1367 = vsel %vm402, %v1322, 0
        %v1370 = vsel %vm402, %v1323, 0
        %v1373 = vsel %vm402, %v1324, 0
        %v1376 = vsel %vm606, %v1326, 0
        %1378 = vmatprep.subr.bf16.mxu0 0
        %1379 = vmatpush1.bf16.msra.mxu0 %v1376
        %1380 = vmatprep.subr.bf16.mxu0 0
        %1381 = vmatpush1.bf16.msra.mxu0 0
        %1382 = vmatprep.subr.bf16.mxu0 0
        %1383 = vmatpush1.bf16.msra.mxu0 0
        %1384 = vmatprep.subr.bf16.mxu0 0
        %1385 = vmatpush1.bf16.msra.mxu0 0
        %1386 = vmatprep.subr.bf16.mxu0 0
        %1387 = vmatpush1.bf16.msra.mxu0 0
        %1388 = vmatprep.subr.bf16.mxu0 0
        %1389 = vmatpush1.bf16.msra.mxu0 0
        %1390 = vmatprep.subr.bf16.mxu0 0
        %1391 = vmatpush1.bf16.msra.mxu0 0
        %1392 = vmatprep.subr.bf16.mxu0 0
        %1393 = vmatpush1.bf16.msra.mxu0 0
        %1394 = vmatprep.subr.bf16.mxu0 0
        %1395 = vmatpush1.bf16.msra.mxu0 0
        %1396 = vmatprep.subr.bf16.mxu0 0
        %1397 = vmatpush1.bf16.msra.mxu0 0
        %1398 = vmatprep.subr.bf16.mxu0 0
        %1399 = vmatpush1.bf16.msra.mxu0 0
        %1400 = vmatprep.subr.bf16.mxu0 0
        %1401 = vmatpush1.bf16.msra.mxu0 0
        %1402 = vmatprep.subr.bf16.mxu0 0
        %1403 = vmatpush1.bf16.msra.mxu0 0
        %1404 = vmatprep.subr.bf16.mxu0 0
        %1405 = vmatpush1.bf16.msra.mxu0 0
        %1406 = vmatprep.subr.bf16.mxu0 0
        %1407 = vmatpush1.bf16.msra.mxu0 0
        %1408 = vmatprep.subr.bf16.mxu0 0
        %1409 = vmatpush1.bf16.msra.mxu0 0
        %1410 = vmatprep.mubr.bf16.mxu0 0
        %1411 = vmatmul.mubr.bf16.gmra.mrb[0].mxu0 %v1328
        %v1412 = vpop.f32.mrb[0].mxu0
        %v1413 = vadd.f32 0.0, %v1412
        %v1414 = vpop.f32.mrb[0].mxu0
        %v1415 = vpop.f32.mrb[0].mxu0
        %v1416 = vadd.f32 0.0, %v1415
        %v1417 = vpop.f32.mrb[0].mxu0
        %1418 = vmatprep.mubr.bf16.mxu0 0
        %1419 = vmatmul.mubr.bf16.gmra.mrb[0].mxu0 %v1331
        %v1420 = vpop.f32.mrb[0].mxu0
        %v1421 = vadd.f32 0.0, %v1420
        %v1422 = vpop.f32.mrb[0].mxu0
        %v1423 = vpop.f32.mrb[0].mxu0
        %v1424 = vadd.f32 0.0, %v1423
        %v1425 = vpop.f32.mrb[0].mxu0
        %1426 = vmatprep.mubr.bf16.mxu0 0
        %1427 = vmatmul.mubr.bf16.gmra.mrb[0].mxu0 %v1334
        %v1428 = vpop.f32.mrb[0].mxu0
        %v1429 = vadd.f32 0.0, %v1428
        %v1430 = vpop.f32.mrb[0].mxu0
        %v1431 = vpop.f32.mrb[0].mxu0
        %v1432 = vadd.f32 0.0, %v1431
        %v1433 = vpop.f32.mrb[0].mxu0
        %1434 = vmatprep.mubr.bf16.mxu0 0
        %1435 = vmatmul.mubr.bf16.gmra.mrb[0].mxu0 %v1337
        %v1436 = vpop.f32.mrb[0].mxu0
        %v1437 = vadd.f32 0.0, %v1436
        %v1438 = vpop.f32.mrb[0].mxu0
        %v1439 = vpop.f32.mrb[0].mxu0
        %v1440 = vadd.f32 0.0, %v1439
        %v1441 = vpop.f32.mrb[0].mxu0
        %1442 = vmatprep.mubr.bf16.mxu0 0
        %1443 = vmatmul.mubr.bf16.gmra.mrb[0].mxu0 %v1340
        %v1444 = vpop.f32.mrb[0].mxu0
        %v1445 = vadd.f32 0.0, %v1444
        %v1446 = vpop.f32.mrb[0].mxu0
        %v1447 = vpop.f32.mrb[0].mxu0
        %v1448 = vadd.f32 0.0, %v1447
        %v1449 = vpop.f32.mrb[0].mxu0
        %1450 = vmatprep.mubr.bf16.mxu0 0
        %1451 = vmatmul.mubr.bf16.gmra.mrb[0].mxu0 %v1343
        %v1452 = vpop.f32.mrb[0].mxu0
        %v1453 = vadd.f32 0.0, %v1452
        %v1454 = vpop.f32.mrb[0].mxu0
        %v1455 = vpop.f32.mrb[0].mxu0
        %v1456 = vadd.f32 0.0, %v1455
        %v1457 = vpop.f32.mrb[0].mxu0
        %1458 = vmatprep.mubr.bf16.mxu0 0
        %1459 = vmatmul.mubr.bf16.gmra.mrb[0].mxu0 %v1346
        %v1460 = vpop.f32.mrb[0].mxu0
        %v1461 = vadd.f32 0.0, %v1460
        %v1462 = vpop.f32.mrb[0].mxu0
        %v1463 = vpop.f32.mrb[0].mxu0
        %v1464 = vadd.f32 0.0, %v1463
        %v1465 = vpop.f32.mrb[0].mxu0
        %1466 = vmatprep.mubr.bf16.mxu0 0
        %1467 = vmatmul.mubr.bf16.gmra.mrb[0].mxu0 %v1349
        %v1468 = vpop.f32.mrb[0].mxu0
        %v1469 = vadd.f32 0.0, %v1468
        %v1470 = vpop.f32.mrb[0].mxu0
        %v1471 = vpop.f32.mrb[0].mxu0
        %v1472 = vadd.f32 0.0, %v1471
        %v1473 = vpop.f32.mrb[0].mxu0
        %1474 = vmatprep.mubr.bf16.mxu0 0
        %1475 = vmatmul.mubr.bf16.gmra.mrb[0].mxu0 %v1352
        %v1476 = vpop.f32.mrb[0].mxu0
        %v1477 = vadd.f32 0.0, %v1476
        %v1478 = vpop.f32.mrb[0].mxu0
        %v1479 = vpop.f32.mrb[0].mxu0
        %v1480 = vadd.f32 0.0, %v1479
        %v1481 = vpop.f32.mrb[0].mxu0
        %1482 = vmatprep.mubr.bf16.mxu0 0
        %1483 = vmatmul.mubr.bf16.gmra.mrb[0].mxu0 %v1355
        %v1484 = vpop.f32.mrb[0].mxu0
        %v1485 = vadd.f32 0.0, %v1484
        %v1486 = vpop.f32.mrb[0].mxu0
        %v1487 = vpop.f32.mrb[0].mxu0
        %v1488 = vadd.f32 0.0, %v1487
        %v1489 = vpop.f32.mrb[0].mxu0
        %1490 = vmatprep.mubr.bf16.mxu0 0
        %1491 = vmatmul.mubr.bf16.gmra.mrb[0].mxu0 %v1358
        %v1492 = vpop.f32.mrb[0].mxu0
        %v1493 = vadd.f32 0.0, %v1492
        %v1494 = vpop.f32.mrb[0].mxu0
        %v1495 = vpop.f32.mrb[0].mxu0
        %v1496 = vadd.f32 0.0, %v1495
        %v1497 = vpop.f32.mrb[0].mxu0
        %1498 = vmatprep.mubr.bf16.mxu0 0
        %1499 = vmatmul.mubr.bf16.gmra.mrb[0].mxu0 %v1361
        %v1500 = vpop.f32.mrb[0].mxu0
        %v1501 = vadd.f32 0.0, %v1500
        %v1502 = vpop.f32.mrb[0].mxu0
        %v1503 = vpop.f32.mrb[0].mxu0
        %v1504 = vadd.f32 0.0, %v1503
        %v1505 = vpop.f32.mrb[0].mxu0
        %1506 = vmatprep.mubr.bf16.mxu0 0
        %1507 = vmatmul.mubr.bf16.gmra.mrb[0].mxu0 %v1364
        %v1508 = vpop.f32.mrb[0].mxu0
        %v1509 = vadd.f32 0.0, %v1508
        %v1510 = vpop.f32.mrb[0].mxu0
        %v1511 = vpop.f32.mrb[0].mxu0
        %v1512 = vadd.f32 0.0, %v1511
        %v1513 = vpop.f32.mrb[0].mxu0
        %1514 = vmatprep.mubr.bf16.mxu0 0
        %1515 = vmatmul.mubr.bf16.gmra.mrb[0].mxu0 %v1367
        %v1516 = vpop.f32.mrb[0].mxu0
        %v1517 = vadd.f32 0.0, %v1516
        %v1518 = vpop.f32.mrb[0].mxu0
        %v1519 = vpop.f32.mrb[0].mxu0
        %v1520 = vadd.f32 0.0, %v1519
        %v1521 = vpop.f32.mrb[0].mxu0
        %1522 = vmatprep.mubr.bf16.mxu0 0
        %1523 = vmatmul.mubr.bf16.gmra.mrb[0].mxu0 %v1370
        %v1524 = vpop.f32.mrb[0].mxu0
        %v1525 = vadd.f32 0.0, %v1524
        %v1526 = vpop.f32.mrb[0].mxu0
        %v1527 = vpop.f32.mrb[0].mxu0
        %v1528 = vadd.f32 0.0, %v1527
        %v1529 = vpop.f32.mrb[0].mxu0
        %1530 = vmatprep.mubr.bf16.mxu0 0
        %1531 = vmatmul.mubr.bf16.gmra.mrb[0].mxu0 %v1373
        %v1532 = vpop.f32.mrb[0].mxu0
        %v1533 = vadd.f32 0.0, %v1532
        %v1534 = vpop.f32.mrb[0].mxu0
        %v1535 = vpop.f32.mrb[0].mxu0
        %v1536 = vadd.f32 0.0, %v1535
        %v1537 = vpop.f32.mrb[0].mxu0
        %1538 = vdwg.mxu0
        %v1539 = vadd.f32 %v1245, %v1413
        %v1540 = vadd.f32 %v1246, %v1416
        %v1541 = vadd.f32 %v1247, %v1421
        %v1542 = vadd.f32 %v1248, %v1424
        %v1543 = vadd.f32 %v1249, %v1429
        %v1544 = vadd.f32 %v1250, %v1432
        %v1545 = vadd.f32 %v1251, %v1437
        %v1546 = vadd.f32 %v1252, %v1440
        %v1547 = vadd.f32 %v1253, %v1445
        %v1548 = vadd.f32 %v1254, %v1448
        %v1549 = vadd.f32 %v1255, %v1453
        %v1550 = vadd.f32 %v1256, %v1456
        %v1551 = vadd.f32 %v1257, %v1461
        %v1552 = vadd.f32 %v1258, %v1464
        %v1553 = vadd.f32 %v1259, %v1469
        %v1554 = vadd.f32 %v1260, %v1472
        %v1555 = vadd.f32 %v1261, %v1477
        %v1556 = vadd.f32 %v1262, %v1480
        %v1557 = vadd.f32 %v1263, %v1485
        %v1558 = vadd.f32 %v1264, %v1488
        %v1559 = vadd.f32 %v1265, %v1493
        %v1560 = vadd.f32 %v1266, %v1496
        %v1561 = vadd.f32 %v1267, %v1501
        %v1562 = vadd.f32 %v1268, %v1504
        %v1563 = vadd.f32 %v1269, %v1509
        %v1564 = vadd.f32 %v1270, %v1512
        %v1565 = vadd.f32 %v1271, %v1517
        %v1566 = vadd.f32 %v1272, %v1520
        %v1567 = vadd.f32 %v1273, %v1525
        %v1568 = vadd.f32 %v1274, %v1528
        %v1569 = vadd.f32 %v1275, %v1533
        %v1570 = vadd.f32 %v1276, %v1536
        %v1571 = vld [vmem:[%s401 + $0x1] sm:$0xff]
        %v1572 = vld [vmem:[%s401 + $0x9] sm:$0xff]
        %v1573 = vld [vmem:[%s401 + $0x19] sm:$0xff]
        %v1574 = vld [vmem:[%s401 + $0x21] sm:$0xff]
        %v1575 = vld [vmem:[%s401 + $0x31] sm:$0xff]
        %v1576 = vld [vmem:[%s401 + $0x39] sm:$0xff]
        %v1577 = vld [vmem:[%s401 + $0x49] sm:$0xff]
        %v1578 = vld [vmem:[%s401 + $0x51] sm:$0xff]
        %v1579 = vld [vmem:[%s401 + $0x61] sm:$0xff]
        %v1580 = vld [vmem:[%s401 + $0x69] sm:$0xff]
        %v1581 = vld [vmem:[%s401 + $0x79] sm:$0xff]
        %v1582 = vld [vmem:[%s401 + $0x81] sm:$0xff]
        %v1583 = vld [vmem:[%s401 + $0x91] sm:$0xff]
        %v1584 = vld [vmem:[%s401 + $0x99] sm:$0xff]
        %v1585 = vld [vmem:[%s401 + $0xa9] sm:$0xff]
        %v1586 = vld [vmem:[%s401 + $0xb1] sm:$0xff]
        %v1587 = vld [vmem:[%s401 + $0xc1] sm:$0xff]
        %v1588 = vld [vmem:[%s401 + $0xc9] sm:$0xff]
        %v1589 = vld [vmem:[%s401 + $0xd9] sm:$0xff]
        %v1590 = vld [vmem:[%s401 + $0xe1] sm:$0xff]
        %v1591 = vld [vmem:[%s401 + $0xf1] sm:$0xff]
        %v1592 = vld [vmem:[%s401 + $0xf9] sm:$0xff]
        %v1593 = vld [vmem:[%s401 + $0x109] sm:$0xff]
        %v1594 = vld [vmem:[%s401 + $0x111] sm:$0xff]
        %v1595 = vld [vmem:[%s401 + $0x121] sm:$0xff]
        %v1596 = vld [vmem:[%s401 + $0x129] sm:$0xff]
        %v1597 = vld [vmem:[%s401 + $0x139] sm:$0xff]
        %v1598 = vld [vmem:[%s401 + $0x141] sm:$0xff]
        %v1599 = vld [vmem:[%s401 + $0x151] sm:$0xff]
        %v1600 = vld [vmem:[%s401 + $0x159] sm:$0xff]
        %v1601 = vld [vmem:[%s401 + $0x169] sm:$0xff]
        %v1602 = vld [vmem:[%s401 + $0x171] sm:$0xff]
        %v1603 = vpack.c.bf16 %v1572, %v1571
        %v1604 = vpack.c.bf16 %v1574, %v1573
        %v1605 = vpack.c.bf16 %v1576, %v1575
        %v1606 = vpack.c.bf16 %v1578, %v1577
        %v1607 = vpack.c.bf16 %v1580, %v1579
        %v1608 = vpack.c.bf16 %v1582, %v1581
        %v1609 = vpack.c.bf16 %v1584, %v1583
        %v1610 = vpack.c.bf16 %v1586, %v1585
        %v1611 = vpack.c.bf16 %v1588, %v1587
        %v1612 = vpack.c.bf16 %v1590, %v1589
        %v1613 = vpack.c.bf16 %v1592, %v1591
        %v1614 = vpack.c.bf16 %v1594, %v1593
        %v1615 = vpack.c.bf16 %v1596, %v1595
        %v1616 = vpack.c.bf16 %v1598, %v1597
        %v1617 = vpack.c.bf16 %v1600, %v1599
        %v1618 = vpack.c.bf16 %v1602, %v1601
        %s1619 = scalar_lea.vmem %s1, 8
        %v1620 = vld [vmem:[%s1619] sm:$0x3]
        %v1622 = vsel %vm402, %v1603, 0
        %v1625 = vsel %vm402, %v1604, 0
        %v1628 = vsel %vm402, %v1605, 0
        %v1631 = vsel %vm402, %v1606, 0
        %v1634 = vsel %vm402, %v1607, 0
        %v1637 = vsel %vm402, %v1608, 0
        %v1640 = vsel %vm402, %v1609, 0
        %v1643 = vsel %vm402, %v1610, 0
        %v1646 = vsel %vm402, %v1611, 0
        %v1649 = vsel %vm402, %v1612, 0
        %v1652 = vsel %vm402, %v1613, 0
        %v1655 = vsel %vm402, %v1614, 0
        %v1658 = vsel %vm402, %v1615, 0
        %v1661 = vsel %vm402, %v1616, 0
        %v1664 = vsel %vm402, %v1617, 0
        %v1667 = vsel %vm402, %v1618, 0
        %v1670 = vsel %vm606, %v1620, 0
        %1672 = vmatprep.subr.bf16.mxu0 0
        %1673 = vmatpush1.bf16.msra.mxu0 %v1670
        %1674 = vmatprep.subr.bf16.mxu0 0
        %1675 = vmatpush1.bf16.msra.mxu0 0
        %1676 = vmatprep.subr.bf16.mxu0 0
        %1677 = vmatpush1.bf16.msra.mxu0 0
        %1678 = vmatprep.subr.bf16.mxu0 0
        %1679 = vmatpush1.bf16.msra.mxu0 0
        %1680 = vmatprep.subr.bf16.mxu0 0
        %1681 = vmatpush1.bf16.msra.mxu0 0
        %1682 = vmatprep.subr.bf16.mxu0 0
        %1683 = vmatpush1.bf16.msra.mxu0 0
        %1684 = vmatprep.subr.bf16.mxu0 0
        %1685 = vmatpush1.bf16.msra.mxu0 0
        %1686 = vmatprep.subr.bf16.mxu0 0
        %1687 = vmatpush1.bf16.msra.mxu0 0
        %1688 = vmatprep.subr.bf16.mxu0 0
        %1689 = vmatpush1.bf16.msra.mxu0 0
        %1690 = vmatprep.subr.bf16.mxu0 0
        %1691 = vmatpush1.bf16.msra.mxu0 0
        %1692 = vmatprep.subr.bf16.mxu0 0
        %1693 = vmatpush1.bf16.msra.mxu0 0
        %1694 = vmatprep.subr.bf16.mxu0 0
        %1695 = vmatpush1.bf16.msra.mxu0 0
        %1696 = vmatprep.subr.bf16.mxu0 0
        %1697 = vmatpush1.bf16.msra.mxu0 0
        %1698 = vmatprep.subr.bf16.mxu0 0
        %1699 = vmatpush1.bf16.msra.mxu0 0
        %1700 = vmatprep.subr.bf16.mxu0 0
        %1701 = vmatpush1.bf16.msra.mxu0 0
        %1702 = vmatprep.subr.bf16.mxu0 0
        %1703 = vmatpush1.bf16.msra.mxu0 0
        %1704 = vmatprep.mubr.bf16.mxu0 0
        %1705 = vmatmul.mubr.bf16.gmra.mrb[0].mxu0 %v1622
        %v1706 = vpop.f32.mrb[0].mxu0
        %v1707 = vadd.f32 0.0, %v1706
        %v1708 = vpop.f32.mrb[0].mxu0
        %v1709 = vpop.f32.mrb[0].mxu0
        %v1710 = vadd.f32 0.0, %v1709
        %v1711 = vpop.f32.mrb[0].mxu0
        %1712 = vmatprep.mubr.bf16.mxu0 0
        %1713 = vmatmul.mubr.bf16.gmra.mrb[0].mxu0 %v1625
        %v1714 = vpop.f32.mrb[0].mxu0
        %v1715 = vadd.f32 0.0, %v1714
        %v1716 = vpop.f32.mrb[0].mxu0
        %v1717 = vpop.f32.mrb[0].mxu0
        %v1718 = vadd.f32 0.0, %v1717
        %v1719 = vpop.f32.mrb[0].mxu0
        %1720 = vmatprep.mubr.bf16.mxu0 0
        %1721 = vmatmul.mubr.bf16.gmra.mrb[0].mxu0 %v1628
        %v1722 = vpop.f32.mrb[0].mxu0
        %v1723 = vadd.f32 0.0, %v1722
        %v1724 = vpop.f32.mrb[0].mxu0
        %v1725 = vpop.f32.mrb[0].mxu0
        %v1726 = vadd.f32 0.0, %v1725
        %v1727 = vpop.f32.mrb[0].mxu0
        %1728 = vmatprep.mubr.bf16.mxu0 0
        %1729 = vmatmul.mubr.bf16.gmra.mrb[0].mxu0 %v1631
        %v1730 = vpop.f32.mrb[0].mxu0
        %v1731 = vadd.f32 0.0, %v1730
        %v1732 = vpop.f32.mrb[0].mxu0
        %v1733 = vpop.f32.mrb[0].mxu0
        %v1734 = vadd.f32 0.0, %v1733
        %v1735 = vpop.f32.mrb[0].mxu0
        %1736 = vmatprep.mubr.bf16.mxu0 0
        %1737 = vmatmul.mubr.bf16.gmra.mrb[0].mxu0 %v1634
        %v1738 = vpop.f32.mrb[0].mxu0
        %v1739 = vadd.f32 0.0, %v1738
        %v1740 = vpop.f32.mrb[0].mxu0
        %v1741 = vpop.f32.mrb[0].mxu0
        %v1742 = vadd.f32 0.0, %v1741
        %v1743 = vpop.f32.mrb[0].mxu0
        %1744 = vmatprep.mubr.bf16.mxu0 0
        %1745 = vmatmul.mubr.bf16.gmra.mrb[0].mxu0 %v1637
        %v1746 = vpop.f32.mrb[0].mxu0
        %v1747 = vadd.f32 0.0, %v1746
        %v1748 = vpop.f32.mrb[0].mxu0
        %v1749 = vpop.f32.mrb[0].mxu0
        %v1750 = vadd.f32 0.0, %v1749
        %v1751 = vpop.f32.mrb[0].mxu0
        %1752 = vmatprep.mubr.bf16.mxu0 0
        %1753 = vmatmul.mubr.bf16.gmra.mrb[0].mxu0 %v1640
        %v1754 = vpop.f32.mrb[0].mxu0
        %v1755 = vadd.f32 0.0, %v1754
        %v1756 = vpop.f32.mrb[0].mxu0
        %v1757 = vpop.f32.mrb[0].mxu0
        %v1758 = vadd.f32 0.0, %v1757
        %v1759 = vpop.f32.mrb[0].mxu0
        %1760 = vmatprep.mubr.bf16.mxu0 0
        %1761 = vmatmul.mubr.bf16.gmra.mrb[0].mxu0 %v1643
        %v1762 = vpop.f32.mrb[0].mxu0
        %v1763 = vadd.f32 0.0, %v1762
        %v1764 = vpop.f32.mrb[0].mxu0
        %v1765 = vpop.f32.mrb[0].mxu0
        %v1766 = vadd.f32 0.0, %v1765
        %v1767 = vpop.f32.mrb[0].mxu0
        %1768 = vmatprep.mubr.bf16.mxu0 0
        %1769 = vmatmul.mubr.bf16.gmra.mrb[0].mxu0 %v1646
        %v1770 = vpop.f32.mrb[0].mxu0
        %v1771 = vadd.f32 0.0, %v1770
        %v1772 = vpop.f32.mrb[0].mxu0
        %v1773 = vpop.f32.mrb[0].mxu0
        %v1774 = vadd.f32 0.0, %v1773
        %v1775 = vpop.f32.mrb[0].mxu0
        %1776 = vmatprep.mubr.bf16.mxu0 0
        %1777 = vmatmul.mubr.bf16.gmra.mrb[0].mxu0 %v1649
        %v1778 = vpop.f32.mrb[0].mxu0
        %v1779 = vadd.f32 0.0, %v1778
        %v1780 = vpop.f32.mrb[0].mxu0
        %v1781 = vpop.f32.mrb[0].mxu0
        %v1782 = vadd.f32 0.0, %v1781
        %v1783 = vpop.f32.mrb[0].mxu0
        %1784 = vmatprep.mubr.bf16.mxu0 0
        %1785 = vmatmul.mubr.bf16.gmra.mrb[0].mxu0 %v1652
        %v1786 = vpop.f32.mrb[0].mxu0
        %v1787 = vadd.f32 0.0, %v1786
        %v1788 = vpop.f32.mrb[0].mxu0
        %v1789 = vpop.f32.mrb[0].mxu0
        %v1790 = vadd.f32 0.0, %v1789
        %v1791 = vpop.f32.mrb[0].mxu0
        %1792 = vmatprep.mubr.bf16.mxu0 0
        %1793 = vmatmul.mubr.bf16.gmra.mrb[0].mxu0 %v1655
        %v1794 = vpop.f32.mrb[0].mxu0
        %v1795 = vadd.f32 0.0, %v1794
        %v1796 = vpop.f32.mrb[0].mxu0
        %v1797 = vpop.f32.mrb[0].mxu0
        %v1798 = vadd.f32 0.0, %v1797
        %v1799 = vpop.f32.mrb[0].mxu0
        %1800 = vmatprep.mubr.bf16.mxu0 0
        %1801 = vmatmul.mubr.bf16.gmra.mrb[0].mxu0 %v1658
        %v1802 = vpop.f32.mrb[0].mxu0
        %v1803 = vadd.f32 0.0, %v1802
        %v1804 = vpop.f32.mrb[0].mxu0
        %v1805 = vpop.f32.mrb[0].mxu0
        %v1806 = vadd.f32 0.0, %v1805
        %v1807 = vpop.f32.mrb[0].mxu0
        %1808 = vmatprep.mubr.bf16.mxu0 0
        %1809 = vmatmul.mubr.bf16.gmra.mrb[0].mxu0 %v1661
        %v1810 = vpop.f32.mrb[0].mxu0
        %v1811 = vadd.f32 0.0, %v1810
        %v1812 = vpop.f32.mrb[0].mxu0
        %v1813 = vpop.f32.mrb[0].mxu0
        %v1814 = vadd.f32 0.0, %v1813
        %v1815 = vpop.f32.mrb[0].mxu0
        %1816 = vmatprep.mubr.bf16.mxu0 0
        %1817 = vmatmul.mubr.bf16.gmra.mrb[0].mxu0 %v1664
        %v1818 = vpop.f32.mrb[0].mxu0
        %v1819 = vadd.f32 0.0, %v1818
        %v1820 = vpop.f32.mrb[0].mxu0
        %v1821 = vpop.f32.mrb[0].mxu0
        %v1822 = vadd.f32 0.0, %v1821
        %v1823 = vpop.f32.mrb[0].mxu0
        %1824 = vmatprep.mubr.bf16.mxu0 0
        %1825 = vmatmul.mubr.bf16.gmra.mrb[0].mxu0 %v1667
        %v1826 = vpop.f32.mrb[0].mxu0
        %v1827 = vadd.f32 0.0, %v1826
        %v1828 = vpop.f32.mrb[0].mxu0
        %v1829 = vpop.f32.mrb[0].mxu0
        %v1830 = vadd.f32 0.0, %v1829
        %v1831 = vpop.f32.mrb[0].mxu0
        %1832 = vdwg.mxu0
        %v1833 = vadd.f32 %v1539, %v1707
        %v1834 = vadd.f32 %v1540, %v1710
        %v1835 = vadd.f32 %v1541, %v1715
        %v1836 = vadd.f32 %v1542, %v1718
        %v1837 = vadd.f32 %v1543, %v1723
        %v1838 = vadd.f32 %v1544, %v1726
        %v1839 = vadd.f32 %v1545, %v1731
        %v1840 = vadd.f32 %v1546, %v1734
        %v1841 = vadd.f32 %v1547, %v1739
        %v1842 = vadd.f32 %v1548, %v1742
        %v1843 = vadd.f32 %v1549, %v1747
        %v1844 = vadd.f32 %v1550, %v1750
        %v1845 = vadd.f32 %v1551, %v1755
        %v1846 = vadd.f32 %v1552, %v1758
        %v1847 = vadd.f32 %v1553, %v1763
        %v1848 = vadd.f32 %v1554, %v1766
        %v1849 = vadd.f32 %v1555, %v1771
        %v1850 = vadd.f32 %v1556, %v1774
        %v1851 = vadd.f32 %v1557, %v1779
        %v1852 = vadd.f32 %v1558, %v1782
        %v1853 = vadd.f32 %v1559, %v1787
        %v1854 = vadd.f32 %v1560, %v1790
        %v1855 = vadd.f32 %v1561, %v1795
        %v1856 = vadd.f32 %v1562, %v1798
        %v1857 = vadd.f32 %v1563, %v1803
        %v1858 = vadd.f32 %v1564, %v1806
        %v1859 = vadd.f32 %v1565, %v1811
        %v1860 = vadd.f32 %v1566, %v1814
        %v1861 = vadd.f32 %v1567, %v1819
        %v1862 = vadd.f32 %v1568, %v1822
        %v1863 = vadd.f32 %v1569, %v1827
        %v1864 = vadd.f32 %v1570, %v1830
        %v1865 = vld [vmem:[%s401 + $0x2] sm:$0xff]
        %v1866 = vld [vmem:[%s401 + $0xa] sm:$0xff]
        %v1867 = vld [vmem:[%s401 + $0x1a] sm:$0xff]
        %v1868 = vld [vmem:[%s401 + $0x22] sm:$0xff]
        %v1869 = vld [vmem:[%s401 + $0x32] sm:$0xff]
        %v1870 = vld [vmem:[%s401 + $0x3a] sm:$0xff]
        %v1871 = vld [vmem:[%s401 + $0x4a] sm:$0xff]
        %v1872 = vld [vmem:[%s401 + $0x52] sm:$0xff]
        %v1873 = vld [vmem:[%s401 + $0x62] sm:$0xff]
        %v1874 = vld [vmem:[%s401 + $0x6a] sm:$0xff]
        %v1875 = vld [vmem:[%s401 + $0x7a] sm:$0xff]
        %v1876 = vld [vmem:[%s401 + $0x82] sm:$0xff]
        %v1877 = vld [vmem:[%s401 + $0x92] sm:$0xff]
        %v1878 = vld [vmem:[%s401 + $0x9a] sm:$0xff]
        %v1879 = vld [vmem:[%s401 + $0xaa] sm:$0xff]
        %v1880 = vld [vmem:[%s401 + $0xb2] sm:$0xff]
        %v1881 = vld [vmem:[%s401 + $0xc2] sm:$0xff]
        %v1882 = vld [vmem:[%s401 + $0xca] sm:$0xff]
        %v1883 = vld [vmem:[%s401 + $0xda] sm:$0xff]
        %v1884 = vld [vmem:[%s401 + $0xe2] sm:$0xff]
        %v1885 = vld [vmem:[%s401 + $0xf2] sm:$0xff]
        %v1886 = vld [vmem:[%s401 + $0xfa] sm:$0xff]
        %v1887 = vld [vmem:[%s401 + $0x10a] sm:$0xff]
        %v1888 = vld [vmem:[%s401 + $0x112] sm:$0xff]
        %v1889 = vld [vmem:[%s401 + $0x122] sm:$0xff]
        %v1890 = vld [vmem:[%s401 + $0x12a] sm:$0xff]
        %v1891 = vld [vmem:[%s401 + $0x13a] sm:$0xff]
        %v1892 = vld [vmem:[%s401 + $0x142] sm:$0xff]
        %v1893 = vld [vmem:[%s401 + $0x152] sm:$0xff]
        %v1894 = vld [vmem:[%s401 + $0x15a] sm:$0xff]
        %v1895 = vld [vmem:[%s401 + $0x16a] sm:$0xff]
        %v1896 = vld [vmem:[%s401 + $0x172] sm:$0xff]
        %v1897 = vpack.c.bf16 %v1866, %v1865
        %v1898 = vpack.c.bf16 %v1868, %v1867
        %v1899 = vpack.c.bf16 %v1870, %v1869
        %v1900 = vpack.c.bf16 %v1872, %v1871
        %v1901 = vpack.c.bf16 %v1874, %v1873
        %v1902 = vpack.c.bf16 %v1876, %v1875
        %v1903 = vpack.c.bf16 %v1878, %v1877
        %v1904 = vpack.c.bf16 %v1880, %v1879
        %v1905 = vpack.c.bf16 %v1882, %v1881
        %v1906 = vpack.c.bf16 %v1884, %v1883
        %v1907 = vpack.c.bf16 %v1886, %v1885
        %v1908 = vpack.c.bf16 %v1888, %v1887
        %v1909 = vpack.c.bf16 %v1890, %v1889
        %v1910 = vpack.c.bf16 %v1892, %v1891
        %v1911 = vpack.c.bf16 %v1894, %v1893
        %v1912 = vpack.c.bf16 %v1896, %v1895
        %s1913 = scalar_lea.vmem %s1, 10
        %v1914 = vld [vmem:[%s1913] sm:$0x3]
        %v1916 = vsel %vm402, %v1897, 0
        %v1919 = vsel %vm402, %v1898, 0
        %v1922 = vsel %vm402, %v1899, 0
        %v1925 = vsel %vm402, %v1900, 0
        %v1928 = vsel %vm402, %v1901, 0
        %v1931 = vsel %vm402, %v1902, 0
        %v1934 = vsel %vm402, %v1903, 0
        %v1937 = vsel %vm402, %v1904, 0
        %v1940 = vsel %vm402, %v1905, 0
        %v1943 = vsel %vm402, %v1906, 0
        %v1946 = vsel %vm402, %v1907, 0
        %v1949 = vsel %vm402, %v1908, 0
        %v1952 = vsel %vm402, %v1909, 0
        %v1955 = vsel %vm402, %v1910, 0
        %v1958 = vsel %vm402, %v1911, 0
        %v1961 = vsel %vm402, %v1912, 0
        %v1964 = vsel %vm606, %v1914, 0
        %1966 = vmatprep.subr.bf16.mxu0 0
        %1967 = vmatpush1.bf16.msra.mxu0 %v1964
        %1968 = vmatprep.subr.bf16.mxu0 0
        %1969 = vmatpush1.bf16.msra.mxu0 0
        %1970 = vmatprep.subr.bf16.mxu0 0
        %1971 = vmatpush1.bf16.msra.mxu0 0
        %1972 = vmatprep.subr.bf16.mxu0 0
        %1973 = vmatpush1.bf16.msra.mxu0 0
        %1974 = vmatprep.subr.bf16.mxu0 0
        %1975 = vmatpush1.bf16.msra.mxu0 0
        %1976 = vmatprep.subr.bf16.mxu0 0
        %1977 = vmatpush1.bf16.msra.mxu0 0
        %1978 = vmatprep.subr.bf16.mxu0 0
        %1979 = vmatpush1.bf16.msra.mxu0 0
        %1980 = vmatprep.subr.bf16.mxu0 0
        %1981 = vmatpush1.bf16.msra.mxu0 0
        %1982 = vmatprep.subr.bf16.mxu0 0
        %1983 = vmatpush1.bf16.msra.mxu0 0
        %1984 = vmatprep.subr.bf16.mxu0 0
        %1985 = vmatpush1.bf16.msra.mxu0 0
        %1986 = vmatprep.subr.bf16.mxu0 0
        %1987 = vmatpush1.bf16.msra.mxu0 0
        %1988 = vmatprep.subr.bf16.mxu0 0
        %1989 = vmatpush1.bf16.msra.mxu0 0
        %1990 = vmatprep.subr.bf16.mxu0 0
        %1991 = vmatpush1.bf16.msra.mxu0 0
        %1992 = vmatprep.subr.bf16.mxu0 0
        %1993 = vmatpush1.bf16.msra.mxu0 0
        %1994 = vmatprep.subr.bf16.mxu0 0
        %1995 = vmatpush1.bf16.msra.mxu0 0
        %1996 = vmatprep.subr.bf16.mxu0 0
        %1997 = vmatpush1.bf16.msra.mxu0 0
        %1998 = vmatprep.mubr.bf16.mxu0 0
        %1999 = vmatmul.mubr.bf16.gmra.mrb[0].mxu0 %v1916
        %v2000 = vpop.f32.mrb[0].mxu0
        %v2001 = vadd.f32 0.0, %v2000
        %v2002 = vpop.f32.mrb[0].mxu0
        %v2003 = vpop.f32.mrb[0].mxu0
        %v2004 = vadd.f32 0.0, %v2003
        %v2005 = vpop.f32.mrb[0].mxu0
        %2006 = vmatprep.mubr.bf16.mxu0 0
        %2007 = vmatmul.mubr.bf16.gmra.mrb[0].mxu0 %v1919
        %v2008 = vpop.f32.mrb[0].mxu0
        %v2009 = vadd.f32 0.0, %v2008
        %v2010 = vpop.f32.mrb[0].mxu0
        %v2011 = vpop.f32.mrb[0].mxu0
        %v2012 = vadd.f32 0.0, %v2011
        %v2013 = vpop.f32.mrb[0].mxu0
        %2014 = vmatprep.mubr.bf16.mxu0 0
        %2015 = vmatmul.mubr.bf16.gmra.mrb[0].mxu0 %v1922
        %v2016 = vpop.f32.mrb[0].mxu0
        %v2017 = vadd.f32 0.0, %v2016
        %v2018 = vpop.f32.mrb[0].mxu0
        %v2019 = vpop.f32.mrb[0].mxu0
        %v2020 = vadd.f32 0.0, %v2019
        %v2021 = vpop.f32.mrb[0].mxu0
        %2022 = vmatprep.mubr.bf16.mxu0 0
        %2023 = vmatmul.mubr.bf16.gmra.mrb[0].mxu0 %v1925
        %v2024 = vpop.f32.mrb[0].mxu0
        %v2025 = vadd.f32 0.0, %v2024
        %v2026 = vpop.f32.mrb[0].mxu0
        %v2027 = vpop.f32.mrb[0].mxu0
        %v2028 = vadd.f32 0.0, %v2027
        %v2029 = vpop.f32.mrb[0].mxu0
        %2030 = vmatprep.mubr.bf16.mxu0 0
        %2031 = vmatmul.mubr.bf16.gmra.mrb[0].mxu0 %v1928
        %v2032 = vpop.f32.mrb[0].mxu0
        %v2033 = vadd.f32 0.0, %v2032
        %v2034 = vpop.f32.mrb[0].mxu0
        %v2035 = vpop.f32.mrb[0].mxu0
        %v2036 = vadd.f32 0.0, %v2035
        %v2037 = vpop.f32.mrb[0].mxu0
        %2038 = vmatprep.mubr.bf16.mxu0 0
        %2039 = vmatmul.mubr.bf16.gmra.mrb[0].mxu0 %v1931
        %v2040 = vpop.f32.mrb[0].mxu0
        %v2041 = vadd.f32 0.0, %v2040
        %v2042 = vpop.f32.mrb[0].mxu0
        %v2043 = vpop.f32.mrb[0].mxu0
        %v2044 = vadd.f32 0.0, %v2043
        %v2045 = vpop.f32.mrb[0].mxu0
        %2046 = vmatprep.mubr.bf16.mxu0 0
        %2047 = vmatmul.mubr.bf16.gmra.mrb[0].mxu0 %v1934
        %v2048 = vpop.f32.mrb[0].mxu0
        %v2049 = vadd.f32 0.0, %v2048
        %v2050 = vpop.f32.mrb[0].mxu0
        %v2051 = vpop.f32.mrb[0].mxu0
        %v2052 = vadd.f32 0.0, %v2051
        %v2053 = vpop.f32.mrb[0].mxu0
        %2054 = vmatprep.mubr.bf16.mxu0 0
        %2055 = vmatmul.mubr.bf16.gmra.mrb[0].mxu0 %v1937
        %v2056 = vpop.f32.mrb[0].mxu0
        %v2057 = vadd.f32 0.0, %v2056
        %v2058 = vpop.f32.mrb[0].mxu0
        %v2059 = vpop.f32.mrb[0].mxu0
        %v2060 = vadd.f32 0.0, %v2059
        %v2061 = vpop.f32.mrb[0].mxu0
        %2062 = vmatprep.mubr.bf16.mxu0 0
        %2063 = vmatmul.mubr.bf16.gmra.mrb[0].mxu0 %v1940
        %v2064 = vpop.f32.mrb[0].mxu0
        %v2065 = vadd.f32 0.0, %v2064
        %v2066 = vpop.f32.mrb[0].mxu0
        %v2067 = vpop.f32.mrb[0].mxu0
        %v2068 = vadd.f32 0.0, %v2067
        %v2069 = vpop.f32.mrb[0].mxu0
        %2070 = vmatprep.mubr.bf16.mxu0 0
        %2071 = vmatmul.mubr.bf16.gmra.mrb[0].mxu0 %v1943
        %v2072 = vpop.f32.mrb[0].mxu0
        %v2073 = vadd.f32 0.0, %v2072
        %v2074 = vpop.f32.mrb[0].mxu0
        %v2075 = vpop.f32.mrb[0].mxu0
        %v2076 = vadd.f32 0.0, %v2075
        %v2077 = vpop.f32.mrb[0].mxu0
        %2078 = vmatprep.mubr.bf16.mxu0 0
        %2079 = vmatmul.mubr.bf16.gmra.mrb[0].mxu0 %v1946
        %v2080 = vpop.f32.mrb[0].mxu0
        %v2081 = vadd.f32 0.0, %v2080
        %v2082 = vpop.f32.mrb[0].mxu0
        %v2083 = vpop.f32.mrb[0].mxu0
        %v2084 = vadd.f32 0.0, %v2083
        %v2085 = vpop.f32.mrb[0].mxu0
        %2086 = vmatprep.mubr.bf16.mxu0 0
        %2087 = vmatmul.mubr.bf16.gmra.mrb[0].mxu0 %v1949
        %v2088 = vpop.f32.mrb[0].mxu0
        %v2089 = vadd.f32 0.0, %v2088
        %v2090 = vpop.f32.mrb[0].mxu0
        %v2091 = vpop.f32.mrb[0].mxu0
        %v2092 = vadd.f32 0.0, %v2091
        %v2093 = vpop.f32.mrb[0].mxu0
        %2094 = vmatprep.mubr.bf16.mxu0 0
        %2095 = vmatmul.mubr.bf16.gmra.mrb[0].mxu0 %v1952
        %v2096 = vpop.f32.mrb[0].mxu0
        %v2097 = vadd.f32 0.0, %v2096
        %v2098 = vpop.f32.mrb[0].mxu0
        %v2099 = vpop.f32.mrb[0].mxu0
        %v2100 = vadd.f32 0.0, %v2099
        %v2101 = vpop.f32.mrb[0].mxu0
        %2102 = vmatprep.mubr.bf16.mxu0 0
        %2103 = vmatmul.mubr.bf16.gmra.mrb[0].mxu0 %v1955
        %v2104 = vpop.f32.mrb[0].mxu0
        %v2105 = vadd.f32 0.0, %v2104
        %v2106 = vpop.f32.mrb[0].mxu0
        %v2107 = vpop.f32.mrb[0].mxu0
        %v2108 = vadd.f32 0.0, %v2107
        %v2109 = vpop.f32.mrb[0].mxu0
        %2110 = vmatprep.mubr.bf16.mxu0 0
        %2111 = vmatmul.mubr.bf16.gmra.mrb[0].mxu0 %v1958
        %v2112 = vpop.f32.mrb[0].mxu0
        %v2113 = vadd.f32 0.0, %v2112
        %v2114 = vpop.f32.mrb[0].mxu0
        %v2115 = vpop.f32.mrb[0].mxu0
        %v2116 = vadd.f32 0.0, %v2115
        %v2117 = vpop.f32.mrb[0].mxu0
        %2118 = vmatprep.mubr.bf16.mxu0 0
        %2119 = vmatmul.mubr.bf16.gmra.mrb[0].mxu0 %v1961
        %v2120 = vpop.f32.mrb[0].mxu0
        %v2121 = vadd.f32 0.0, %v2120
        %v2122 = vpop.f32.mrb[0].mxu0
        %v2123 = vpop.f32.mrb[0].mxu0
        %v2124 = vadd.f32 0.0, %v2123
        %v2125 = vpop.f32.mrb[0].mxu0
        %2126 = vdwg.mxu0
        %v2127 = vadd.f32 %v1833, %v2001
        %v2128 = vadd.f32 %v1834, %v2004
        %v2129 = vadd.f32 %v1835, %v2009
        %v2130 = vadd.f32 %v1836, %v2012
        %v2131 = vadd.f32 %v1837, %v2017
        %v2132 = vadd.f32 %v1838, %v2020
        %v2133 = vadd.f32 %v1839, %v2025
        %v2134 = vadd.f32 %v1840, %v2028
        %v2135 = vadd.f32 %v1841, %v2033
        %v2136 = vadd.f32 %v1842, %v2036
        %v2137 = vadd.f32 %v1843, %v2041
        %v2138 = vadd.f32 %v1844, %v2044
        %v2139 = vadd.f32 %v1845, %v2049
        %v2140 = vadd.f32 %v1846, %v2052
        %v2141 = vadd.f32 %v1847, %v2057
        %v2142 = vadd.f32 %v1848, %v2060
        %v2143 = vadd.f32 %v1849, %v2065
        %v2144 = vadd.f32 %v1850, %v2068
        %v2145 = vadd.f32 %v1851, %v2073
        %v2146 = vadd.f32 %v1852, %v2076
        %v2147 = vadd.f32 %v1853, %v2081
        %v2148 = vadd.f32 %v1854, %v2084
        %v2149 = vadd.f32 %v1855, %v2089
        %v2150 = vadd.f32 %v1856, %v2092
        %v2151 = vadd.f32 %v1857, %v2097
        %v2152 = vadd.f32 %v1858, %v2100
        %v2153 = vadd.f32 %v1859, %v2105
        %v2154 = vadd.f32 %v1860, %v2108
        %v2155 = vadd.f32 %v1861, %v2113
        %v2156 = vadd.f32 %v1862, %v2116
        %v2157 = vadd.f32 %v1863, %v2121
        %v2158 = vadd.f32 %v1864, %v2124
        %s2159 = scalar_lea.vmem [#allocation2], 48
        %v2160 = vld [vmem:[%s2159] sm:$0xff]
        %v2161 = vld [vmem:[%s2159 + $0x8] sm:$0xff]
        %v2162 = vld [vmem:[%s2159 + $0x18] sm:$0xff]
        %v2163 = vld [vmem:[%s2159 + $0x20] sm:$0xff]
        %v2164 = vld [vmem:[%s2159 + $0x30] sm:$0xff]
        %v2165 = vld [vmem:[%s2159 + $0x38] sm:$0xff]
        %v2166 = vld [vmem:[%s2159 + $0x48] sm:$0xff]
        %v2167 = vld [vmem:[%s2159 + $0x50] sm:$0xff]
        %v2168 = vld [vmem:[%s2159 + $0x60] sm:$0xff]
        %v2169 = vld [vmem:[%s2159 + $0x68] sm:$0xff]
        %v2170 = vld [vmem:[%s2159 + $0x78] sm:$0xff]
        %v2171 = vld [vmem:[%s2159 + $0x80] sm:$0xff]
        %v2172 = vld [vmem:[%s2159 + $0x90] sm:$0xff]
        %v2173 = vld [vmem:[%s2159 + $0x98] sm:$0xff]
        %v2174 = vld [vmem:[%s2159 + $0xa8] sm:$0xff]
        %v2175 = vld [vmem:[%s2159 + $0xb0] sm:$0xff]
        %v2176 = vld [vmem:[%s2159 + $0xc0] sm:$0xff]
        %v2177 = vld [vmem:[%s2159 + $0xc8] sm:$0xff]
        %v2178 = vld [vmem:[%s2159 + $0xd8] sm:$0xff]
        %v2179 = vld [vmem:[%s2159 + $0xe0] sm:$0xff]
        %v2180 = vld [vmem:[%s2159 + $0xf0] sm:$0xff]
        %v2181 = vld [vmem:[%s2159 + $0xf8] sm:$0xff]
        %v2182 = vld [vmem:[%s2159 + $0x108] sm:$0xff]
        %v2183 = vld [vmem:[%s2159 + $0x110] sm:$0xff]
        %v2184 = vld [vmem:[%s2159 + $0x120] sm:$0xff]
        %v2185 = vld [vmem:[%s2159 + $0x128] sm:$0xff]
        %v2186 = vld [vmem:[%s2159 + $0x138] sm:$0xff]
        %v2187 = vld [vmem:[%s2159 + $0x140] sm:$0xff]
        %v2188 = vld [vmem:[%s2159 + $0x150] sm:$0xff]
        %v2189 = vld [vmem:[%s2159 + $0x158] sm:$0xff]
        %v2190 = vld [vmem:[%s2159 + $0x168] sm:$0xff]
        %v2191 = vld [vmem:[%s2159 + $0x170] sm:$0xff]
        %v2192 = vpack.c.bf16 %v2161, %v2160
        %v2193 = vpack.c.bf16 %v2163, %v2162
        %v2194 = vpack.c.bf16 %v2165, %v2164
        %v2195 = vpack.c.bf16 %v2167, %v2166
        %v2196 = vpack.c.bf16 %v2169, %v2168
        %v2197 = vpack.c.bf16 %v2171, %v2170
        %v2198 = vpack.c.bf16 %v2173, %v2172
        %v2199 = vpack.c.bf16 %v2175, %v2174
        %v2200 = vpack.c.bf16 %v2177, %v2176
        %v2201 = vpack.c.bf16 %v2179, %v2178
        %v2202 = vpack.c.bf16 %v2181, %v2180
        %v2203 = vpack.c.bf16 %v2183, %v2182
        %v2204 = vpack.c.bf16 %v2185, %v2184
        %v2205 = vpack.c.bf16 %v2187, %v2186
        %v2206 = vpack.c.bf16 %v2189, %v2188
        %v2207 = vpack.c.bf16 %v2191, %v2190
        %s2208 = scalar_lea.vmem %s1, 12
        %v2209 = vld [vmem:[%s2208] sm:$0x3]
        %v2211 = vsel %vm402, %v2192, 0
        %v2214 = vsel %vm402, %v2193, 0
        %v2217 = vsel %vm402, %v2194, 0
        %v2220 = vsel %vm402, %v2195, 0
        %v2223 = vsel %vm402, %v2196, 0
        %v2226 = vsel %vm402, %v2197, 0
        %v2229 = vsel %vm402, %v2198, 0
        %v2232 = vsel %vm402, %v2199, 0
        %v2235 = vsel %vm402, %v2200, 0
        %v2238 = vsel %vm402, %v2201, 0
        %v2241 = vsel %vm402, %v2202, 0
        %v2244 = vsel %vm402, %v2203, 0
        %v2247 = vsel %vm402, %v2204, 0
        %v2250 = vsel %vm402, %v2205, 0
        %v2253 = vsel %vm402, %v2206, 0
        %v2256 = vsel %vm402, %v2207, 0
        %v2259 = vsel %vm606, %v2209, 0
        %2261 = vmatprep.subr.bf16.mxu0 0
        %2262 = vmatpush1.bf16.msra.mxu0 %v2259
        %2263 = vmatprep.subr.bf16.mxu0 0
        %2264 = vmatpush1.bf16.msra.mxu0 0
        %2265 = vmatprep.subr.bf16.mxu0 0
        %2266 = vmatpush1.bf16.msra.mxu0 0
        %2267 = vmatprep.subr.bf16.mxu0 0
        %2268 = vmatpush1.bf16.msra.mxu0 0
        %2269 = vmatprep.subr.bf16.mxu0 0
        %2270 = vmatpush1.bf16.msra.mxu0 0
        %2271 = vmatprep.subr.bf16.mxu0 0
        %2272 = vmatpush1.bf16.msra.mxu0 0
        %2273 = vmatprep.subr.bf16.mxu0 0
        %2274 = vmatpush1.bf16.msra.mxu0 0
        %2275 = vmatprep.subr.bf16.mxu0 0
        %2276 = vmatpush1.bf16.msra.mxu0 0
        %2277 = vmatprep.subr.bf16.mxu0 0
        %2278 = vmatpush1.bf16.msra.mxu0 0
        %2279 = vmatprep.subr.bf16.mxu0 0
        %2280 = vmatpush1.bf16.msra.mxu0 0
        %2281 = vmatprep.subr.bf16.mxu0 0
        %2282 = vmatpush1.bf16.msra.mxu0 0
        %2283 = vmatprep.subr.bf16.mxu0 0
        %2284 = vmatpush1.bf16.msra.mxu0 0
        %2285 = vmatprep.subr.bf16.mxu0 0
        %2286 = vmatpush1.bf16.msra.mxu0 0
        %2287 = vmatprep.subr.bf16.mxu0 0
        %2288 = vmatpush1.bf16.msra.mxu0 0
        %2289 = vmatprep.subr.bf16.mxu0 0
        %2290 = vmatpush1.bf16.msra.mxu0 0
        %2291 = vmatprep.subr.bf16.mxu0 0
        %2292 = vmatpush1.bf16.msra.mxu0 0
        %2293 = vmatprep.mubr.bf16.mxu0 0
        %2294 = vmatmul.mubr.bf16.gmra.mrb[0].mxu0 %v2211
        %v2295 = vpop.f32.mrb[0].mxu0
        %v2296 = vadd.f32 0.0, %v2295
        %v2297 = vpop.f32.mrb[0].mxu0
        %v2298 = vpop.f32.mrb[0].mxu0
        %v2299 = vadd.f32 0.0, %v2298
        %v2300 = vpop.f32.mrb[0].mxu0
        %2301 = vmatprep.mubr.bf16.mxu0 0
        %2302 = vmatmul.mubr.bf16.gmra.mrb[0].mxu0 %v2214
        %v2303 = vpop.f32.mrb[0].mxu0
        %v2304 = vadd.f32 0.0, %v2303
        %v2305 = vpop.f32.mrb[0].mxu0
        %v2306 = vpop.f32.mrb[0].mxu0
        %v2307 = vadd.f32 0.0, %v2306
        %v2308 = vpop.f32.mrb[0].mxu0
        %2309 = vmatprep.mubr.bf16.mxu0 0
        %2310 = vmatmul.mubr.bf16.gmra.mrb[0].mxu0 %v2217
        %v2311 = vpop.f32.mrb[0].mxu0
        %v2312 = vadd.f32 0.0, %v2311
        %v2313 = vpop.f32.mrb[0].mxu0
        %v2314 = vpop.f32.mrb[0].mxu0
        %v2315 = vadd.f32 0.0, %v2314
        %v2316 = vpop.f32.mrb[0].mxu0
        %2317 = vmatprep.mubr.bf16.mxu0 0
        %2318 = vmatmul.mubr.bf16.gmra.mrb[0].mxu0 %v2220
        %v2319 = vpop.f32.mrb[0].mxu0
        %v2320 = vadd.f32 0.0, %v2319
        %v2321 = vpop.f32.mrb[0].mxu0
        %v2322 = vpop.f32.mrb[0].mxu0
        %v2323 = vadd.f32 0.0, %v2322
        %v2324 = vpop.f32.mrb[0].mxu0
        %2325 = vmatprep.mubr.bf16.mxu0 0
        %2326 = vmatmul.mubr.bf16.gmra.mrb[0].mxu0 %v2223
        %v2327 = vpop.f32.mrb[0].mxu0
        %v2328 = vadd.f32 0.0, %v2327
        %v2329 = vpop.f32.mrb[0].mxu0
        %v2330 = vpop.f32.mrb[0].mxu0
        %v2331 = vadd.f32 0.0, %v2330
        %v2332 = vpop.f32.mrb[0].mxu0
        %2333 = vmatprep.mubr.bf16.mxu0 0
        %2334 = vmatmul.mubr.bf16.gmra.mrb[0].mxu0 %v2226
        %v2335 = vpop.f32.mrb[0].mxu0
        %v2336 = vadd.f32 0.0, %v2335
        %v2337 = vpop.f32.mrb[0].mxu0
        %v2338 = vpop.f32.mrb[0].mxu0
        %v2339 = vadd.f32 0.0, %v2338
        %v2340 = vpop.f32.mrb[0].mxu0
        %2341 = vmatprep.mubr.bf16.mxu0 0
        %2342 = vmatmul.mubr.bf16.gmra.mrb[0].mxu0 %v2229
        %v2343 = vpop.f32.mrb[0].mxu0
        %v2344 = vadd.f32 0.0, %v2343
        %v2345 = vpop.f32.mrb[0].mxu0
        %v2346 = vpop.f32.mrb[0].mxu0
        %v2347 = vadd.f32 0.0, %v2346
        %v2348 = vpop.f32.mrb[0].mxu0
        %2349 = vmatprep.mubr.bf16.mxu0 0
        %2350 = vmatmul.mubr.bf16.gmra.mrb[0].mxu0 %v2232
        %v2351 = vpop.f32.mrb[0].mxu0
        %v2352 = vadd.f32 0.0, %v2351
        %v2353 = vpop.f32.mrb[0].mxu0
        %v2354 = vpop.f32.mrb[0].mxu0
        %v2355 = vadd.f32 0.0, %v2354
        %v2356 = vpop.f32.mrb[0].mxu0
        %2357 = vmatprep.mubr.bf16.mxu0 0
        %2358 = vmatmul.mubr.bf16.gmra.mrb[0].mxu0 %v2235
        %v2359 = vpop.f32.mrb[0].mxu0
        %v2360 = vadd.f32 0.0, %v2359
        %v2361 = vpop.f32.mrb[0].mxu0
        %v2362 = vpop.f32.mrb[0].mxu0
        %v2363 = vadd.f32 0.0, %v2362
        %v2364 = vpop.f32.mrb[0].mxu0
        %2365 = vmatprep.mubr.bf16.mxu0 0
        %2366 = vmatmul.mubr.bf16.gmra.mrb[0].mxu0 %v2238
        %v2367 = vpop.f32.mrb[0].mxu0
        %v2368 = vadd.f32 0.0, %v2367
        %v2369 = vpop.f32.mrb[0].mxu0
        %v2370 = vpop.f32.mrb[0].mxu0
        %v2371 = vadd.f32 0.0, %v2370
        %v2372 = vpop.f32.mrb[0].mxu0
        %2373 = vmatprep.mubr.bf16.mxu0 0
        %2374 = vmatmul.mubr.bf16.gmra.mrb[0].mxu0 %v2241
        %v2375 = vpop.f32.mrb[0].mxu0
        %v2376 = vadd.f32 0.0, %v2375
        %v2377 = vpop.f32.mrb[0].mxu0
        %v2378 = vpop.f32.mrb[0].mxu0
        %v2379 = vadd.f32 0.0, %v2378
        %v2380 = vpop.f32.mrb[0].mxu0
        %2381 = vmatprep.mubr.bf16.mxu0 0
        %2382 = vmatmul.mubr.bf16.gmra.mrb[0].mxu0 %v2244
        %v2383 = vpop.f32.mrb[0].mxu0
        %v2384 = vadd.f32 0.0, %v2383
        %v2385 = vpop.f32.mrb[0].mxu0
        %v2386 = vpop.f32.mrb[0].mxu0
        %v2387 = vadd.f32 0.0, %v2386
        %v2388 = vpop.f32.mrb[0].mxu0
        %2389 = vmatprep.mubr.bf16.mxu0 0
        %2390 = vmatmul.mubr.bf16.gmra.mrb[0].mxu0 %v2247
        %v2391 = vpop.f32.mrb[0].mxu0
        %v2392 = vadd.f32 0.0, %v2391
        %v2393 = vpop.f32.mrb[0].mxu0
        %v2394 = vpop.f32.mrb[0].mxu0
        %v2395 = vadd.f32 0.0, %v2394
        %v2396 = vpop.f32.mrb[0].mxu0
        %2397 = vmatprep.mubr.bf16.mxu0 0
        %2398 = vmatmul.mubr.bf16.gmra.mrb[0].mxu0 %v2250
        %v2399 = vpop.f32.mrb[0].mxu0
        %v2400 = vadd.f32 0.0, %v2399
        %v2401 = vpop.f32.mrb[0].mxu0
        %v2402 = vpop.f32.mrb[0].mxu0
        %v2403 = vadd.f32 0.0, %v2402
        %v2404 = vpop.f32.mrb[0].mxu0
        %2405 = vmatprep.mubr.bf16.mxu0 0
        %2406 = vmatmul.mubr.bf16.gmra.mrb[0].mxu0 %v2253
        %v2407 = vpop.f32.mrb[0].mxu0
        %v2408 = vadd.f32 0.0, %v2407
        %v2409 = vpop.f32.mrb[0].mxu0
        %v2410 = vpop.f32.mrb[0].mxu0
        %v2411 = vadd.f32 0.0, %v2410
        %v2412 = vpop.f32.mrb[0].mxu0
        %2413 = vmatprep.mubr.bf16.mxu0 0
        %2414 = vmatmul.mubr.bf16.gmra.mrb[0].mxu0 %v2256
        %v2415 = vpop.f32.mrb[0].mxu0
        %v2416 = vadd.f32 0.0, %v2415
        %v2417 = vpop.f32.mrb[0].mxu0
        %v2418 = vpop.f32.mrb[0].mxu0
        %v2419 = vadd.f32 0.0, %v2418
        %v2420 = vpop.f32.mrb[0].mxu0
        %2421 = vdwg.mxu0
        %v2422 = vadd.f32 %v2127, %v2296
        %v2423 = vadd.f32 %v2128, %v2299
        %v2424 = vadd.f32 %v2129, %v2304
        %v2425 = vadd.f32 %v2130, %v2307
        %v2426 = vadd.f32 %v2131, %v2312
        %v2427 = vadd.f32 %v2132, %v2315
        %v2428 = vadd.f32 %v2133, %v2320
        %v2429 = vadd.f32 %v2134, %v2323
        %v2430 = vadd.f32 %v2135, %v2328
        %v2431 = vadd.f32 %v2136, %v2331
        %v2432 = vadd.f32 %v2137, %v2336
        %v2433 = vadd.f32 %v2138, %v2339
        %v2434 = vadd.f32 %v2139, %v2344
        %v2435 = vadd.f32 %v2140, %v2347
        %v2436 = vadd.f32 %v2141, %v2352
        %v2437 = vadd.f32 %v2142, %v2355
        %v2438 = vadd.f32 %v2143, %v2360
        %v2439 = vadd.f32 %v2144, %v2363
        %v2440 = vadd.f32 %v2145, %v2368
        %v2441 = vadd.f32 %v2146, %v2371
        %v2442 = vadd.f32 %v2147, %v2376
        %v2443 = vadd.f32 %v2148, %v2379
        %v2444 = vadd.f32 %v2149, %v2384
        %v2445 = vadd.f32 %v2150, %v2387
        %v2446 = vadd.f32 %v2151, %v2392
        %v2447 = vadd.f32 %v2152, %v2395
        %v2448 = vadd.f32 %v2153, %v2400
        %v2449 = vadd.f32 %v2154, %v2403
        %v2450 = vadd.f32 %v2155, %v2408
        %v2451 = vadd.f32 %v2156, %v2411
        %v2452 = vadd.f32 %v2157, %v2416
        %v2453 = vadd.f32 %v2158, %v2419
        %v2454 = vld [vmem:[%s2159 + $0x1] sm:$0xff]
        %v2455 = vld [vmem:[%s2159 + $0x9] sm:$0xff]
        %v2456 = vld [vmem:[%s2159 + $0x19] sm:$0xff]
        %v2457 = vld [vmem:[%s2159 + $0x21] sm:$0xff]
        %v2458 = vld [vmem:[%s2159 + $0x31] sm:$0xff]
        %v2459 = vld [vmem:[%s2159 + $0x39] sm:$0xff]
        %v2460 = vld [vmem:[%s2159 + $0x49] sm:$0xff]
        %v2461 = vld [vmem:[%s2159 + $0x51] sm:$0xff]
        %v2462 = vld [vmem:[%s2159 + $0x61] sm:$0xff]
        %v2463 = vld [vmem:[%s2159 + $0x69] sm:$0xff]
        %v2464 = vld [vmem:[%s2159 + $0x79] sm:$0xff]
        %v2465 = vld [vmem:[%s2159 + $0x81] sm:$0xff]
        %v2466 = vld [vmem:[%s2159 + $0x91] sm:$0xff]
        %v2467 = vld [vmem:[%s2159 + $0x99] sm:$0xff]
        %v2468 = vld [vmem:[%s2159 + $0xa9] sm:$0xff]
        %v2469 = vld [vmem:[%s2159 + $0xb1] sm:$0xff]
        %v2470 = vld [vmem:[%s2159 + $0xc1] sm:$0xff]
        %v2471 = vld [vmem:[%s2159 + $0xc9] sm:$0xff]
        %v2472 = vld [vmem:[%s2159 + $0xd9] sm:$0xff]
        %v2473 = vld [vmem:[%s2159 + $0xe1] sm:$0xff]
        %v2474 = vld [vmem:[%s2159 + $0xf1] sm:$0xff]
        %v2475 = vld [vmem:[%s2159 + $0xf9] sm:$0xff]
        %v2476 = vld [vmem:[%s2159 + $0x109] sm:$0xff]
        %v2477 = vld [vmem:[%s2159 + $0x111] sm:$0xff]
        %v2478 = vld [vmem:[%s2159 + $0x121] sm:$0xff]
        %v2479 = vld [vmem:[%s2159 + $0x129] sm:$0xff]
        %v2480 = vld [vmem:[%s2159 + $0x139] sm:$0xff]
        %v2481 = vld [vmem:[%s2159 + $0x141] sm:$0xff]
        %v2482 = vld [vmem:[%s2159 + $0x151] sm:$0xff]
        %v2483 = vld [vmem:[%s2159 + $0x159] sm:$0xff]
        %v2484 = vld [vmem:[%s2159 + $0x169] sm:$0xff]
        %v2485 = vld [vmem:[%s2159 + $0x171] sm:$0xff]
        %v2486 = vpack.c.bf16 %v2455, %v2454
        %v2487 = vpack.c.bf16 %v2457, %v2456
        %v2488 = vpack.c.bf16 %v2459, %v2458
        %v2489 = vpack.c.bf16 %v2461, %v2460
        %v2490 = vpack.c.bf16 %v2463, %v2462
        %v2491 = vpack.c.bf16 %v2465, %v2464
        %v2492 = vpack.c.bf16 %v2467, %v2466
        %v2493 = vpack.c.bf16 %v2469, %v2468
        %v2494 = vpack.c.bf16 %v2471, %v2470
        %v2495 = vpack.c.bf16 %v2473, %v2472
        %v2496 = vpack.c.bf16 %v2475, %v2474
        %v2497 = vpack.c.bf16 %v2477, %v2476
        %v2498 = vpack.c.bf16 %v2479, %v2478
        %v2499 = vpack.c.bf16 %v2481, %v2480
        %v2500 = vpack.c.bf16 %v2483, %v2482
        %v2501 = vpack.c.bf16 %v2485, %v2484
        %s2502 = scalar_lea.vmem %s1, 14
        %v2503 = vld [vmem:[%s2502] sm:$0x3]
        %v2505 = vsel %vm402, %v2486, 0
        %v2508 = vsel %vm402, %v2487, 0
        %v2511 = vsel %vm402, %v2488, 0
        %v2514 = vsel %vm402, %v2489, 0
        %v2517 = vsel %vm402, %v2490, 0
        %v2520 = vsel %vm402, %v2491, 0
        %v2523 = vsel %vm402, %v2492, 0
        %v2526 = vsel %vm402, %v2493, 0
        %v2529 = vsel %vm402, %v2494, 0
        %v2532 = vsel %vm402, %v2495, 0
        %v2535 = vsel %vm402, %v2496, 0
        %v2538 = vsel %vm402, %v2497, 0
        %v2541 = vsel %vm402, %v2498, 0
        %v2544 = vsel %vm402, %v2499, 0
        %v2547 = vsel %vm402, %v2500, 0
        %v2550 = vsel %vm402, %v2501, 0
        %v2553 = vsel %vm606, %v2503, 0
        %2555 = vmatprep.subr.bf16.mxu0 0
        %2556 = vmatpush1.bf16.msra.mxu0 %v2553
        %2557 = vmatprep.subr.bf16.mxu0 0
        %2558 = vmatpush1.bf16.msra.mxu0 0
        %2559 = vmatprep.subr.bf16.mxu0 0
        %2560 = vmatpush1.bf16.msra.mxu0 0
        %2561 = vmatprep.subr.bf16.mxu0 0
        %2562 = vmatpush1.bf16.msra.mxu0 0
        %2563 = vmatprep.subr.bf16.mxu0 0
        %2564 = vmatpush1.bf16.msra.mxu0 0
        %2565 = vmatprep.subr.bf16.mxu0 0
        %2566 = vmatpush1.bf16.msra.mxu0 0
        %2567 = vmatprep.subr.bf16.mxu0 0
        %2568 = vmatpush1.bf16.msra.mxu0 0
        %2569 = vmatprep.subr.bf16.mxu0 0
        %2570 = vmatpush1.bf16.msra.mxu0 0
        %2571 = vmatprep.subr.bf16.mxu0 0
        %2572 = vmatpush1.bf16.msra.mxu0 0
        %2573 = vmatprep.subr.bf16.mxu0 0
        %2574 = vmatpush1.bf16.msra.mxu0 0
        %2575 = vmatprep.subr.bf16.mxu0 0
        %2576 = vmatpush1.bf16.msra.mxu0 0
        %2577 = vmatprep.subr.bf16.mxu0 0
        %2578 = vmatpush1.bf16.msra.mxu0 0
        %2579 = vmatprep.subr.bf16.mxu0 0
        %2580 = vmatpush1.bf16.msra.mxu0 0
        %2581 = vmatprep.subr.bf16.mxu0 0
        %2582 = vmatpush1.bf16.msra.mxu0 0
        %2583 = vmatprep.subr.bf16.mxu0 0
        %2584 = vmatpush1.bf16.msra.mxu0 0
        %2585 = vmatprep.subr.bf16.mxu0 0
        %2586 = vmatpush1.bf16.msra.mxu0 0
        %2587 = vmatprep.mubr.bf16.mxu0 0
        %2588 = vmatmul.mubr.bf16.gmra.mrb[0].mxu0 %v2505
        %v2589 = vpop.f32.mrb[0].mxu0
        %v2590 = vadd.f32 0.0, %v2589
        %v2591 = vpop.f32.mrb[0].mxu0
        %v2592 = vpop.f32.mrb[0].mxu0
        %v2593 = vadd.f32 0.0, %v2592
        %v2594 = vpop.f32.mrb[0].mxu0
        %2595 = vmatprep.mubr.bf16.mxu0 0
        %2596 = vmatmul.mubr.bf16.gmra.mrb[0].mxu0 %v2508
        %v2597 = vpop.f32.mrb[0].mxu0
        %v2598 = vadd.f32 0.0, %v2597
        %v2599 = vpop.f32.mrb[0].mxu0
        %v2600 = vpop.f32.mrb[0].mxu0
        %v2601 = vadd.f32 0.0, %v2600
        %v2602 = vpop.f32.mrb[0].mxu0
        %2603 = vmatprep.mubr.bf16.mxu0 0
        %2604 = vmatmul.mubr.bf16.gmra.mrb[0].mxu0 %v2511
        %v2605 = vpop.f32.mrb[0].mxu0
        %v2606 = vadd.f32 0.0, %v2605
        %v2607 = vpop.f32.mrb[0].mxu0
        %v2608 = vpop.f32.mrb[0].mxu0
        %v2609 = vadd.f32 0.0, %v2608
        %v2610 = vpop.f32.mrb[0].mxu0
        %2611 = vmatprep.mubr.bf16.mxu0 0
        %2612 = vmatmul.mubr.bf16.gmra.mrb[0].mxu0 %v2514
        %v2613 = vpop.f32.mrb[0].mxu0
        %v2614 = vadd.f32 0.0, %v2613
        %v2615 = vpop.f32.mrb[0].mxu0
        %v2616 = vpop.f32.mrb[0].mxu0
        %v2617 = vadd.f32 0.0, %v2616
        %v2618 = vpop.f32.mrb[0].mxu0
        %2619 = vmatprep.mubr.bf16.mxu0 0
        %2620 = vmatmul.mubr.bf16.gmra.mrb[0].mxu0 %v2517
        %v2621 = vpop.f32.mrb[0].mxu0
        %v2622 = vadd.f32 0.0, %v2621
        %v2623 = vpop.f32.mrb[0].mxu0
        %v2624 = vpop.f32.mrb[0].mxu0
        %v2625 = vadd.f32 0.0, %v2624
        %v2626 = vpop.f32.mrb[0].mxu0
        %2627 = vmatprep.mubr.bf16.mxu0 0
        %2628 = vmatmul.mubr.bf16.gmra.mrb[0].mxu0 %v2520
        %v2629 = vpop.f32.mrb[0].mxu0
        %v2630 = vadd.f32 0.0, %v2629
        %v2631 = vpop.f32.mrb[0].mxu0
        %v2632 = vpop.f32.mrb[0].mxu0
        %v2633 = vadd.f32 0.0, %v2632
        %v2634 = vpop.f32.mrb[0].mxu0
        %2635 = vmatprep.mubr.bf16.mxu0 0
        %2636 = vmatmul.mubr.bf16.gmra.mrb[0].mxu0 %v2523
        %v2637 = vpop.f32.mrb[0].mxu0
        %v2638 = vadd.f32 0.0, %v2637
        %v2639 = vpop.f32.mrb[0].mxu0
        %v2640 = vpop.f32.mrb[0].mxu0
        %v2641 = vadd.f32 0.0, %v2640
        %v2642 = vpop.f32.mrb[0].mxu0
        %2643 = vmatprep.mubr.bf16.mxu0 0
        %2644 = vmatmul.mubr.bf16.gmra.mrb[0].mxu0 %v2526
        %v2645 = vpop.f32.mrb[0].mxu0
        %v2646 = vadd.f32 0.0, %v2645
        %v2647 = vpop.f32.mrb[0].mxu0
        %v2648 = vpop.f32.mrb[0].mxu0
        %v2649 = vadd.f32 0.0, %v2648
        %v2650 = vpop.f32.mrb[0].mxu0
        %2651 = vmatprep.mubr.bf16.mxu0 0
        %2652 = vmatmul.mubr.bf16.gmra.mrb[0].mxu0 %v2529
        %v2653 = vpop.f32.mrb[0].mxu0
        %v2654 = vadd.f32 0.0, %v2653
        %v2655 = vpop.f32.mrb[0].mxu0
        %v2656 = vpop.f32.mrb[0].mxu0
        %v2657 = vadd.f32 0.0, %v2656
        %v2658 = vpop.f32.mrb[0].mxu0
        %2659 = vmatprep.mubr.bf16.mxu0 0
        %2660 = vmatmul.mubr.bf16.gmra.mrb[0].mxu0 %v2532
        %v2661 = vpop.f32.mrb[0].mxu0
        %v2662 = vadd.f32 0.0, %v2661
        %v2663 = vpop.f32.mrb[0].mxu0
        %v2664 = vpop.f32.mrb[0].mxu0
        %v2665 = vadd.f32 0.0, %v2664
        %v2666 = vpop.f32.mrb[0].mxu0
        %2667 = vmatprep.mubr.bf16.mxu0 0
        %2668 = vmatmul.mubr.bf16.gmra.mrb[0].mxu0 %v2535
        %v2669 = vpop.f32.mrb[0].mxu0
        %v2670 = vadd.f32 0.0, %v2669
        %v2671 = vpop.f32.mrb[0].mxu0
        %v2672 = vpop.f32.mrb[0].mxu0
        %v2673 = vadd.f32 0.0, %v2672
        %v2674 = vpop.f32.mrb[0].mxu0
        %2675 = vmatprep.mubr.bf16.mxu0 0
        %2676 = vmatmul.mubr.bf16.gmra.mrb[0].mxu0 %v2538
        %v2677 = vpop.f32.mrb[0].mxu0
        %v2678 = vadd.f32 0.0, %v2677
        %v2679 = vpop.f32.mrb[0].mxu0
        %v2680 = vpop.f32.mrb[0].mxu0
        %v2681 = vadd.f32 0.0, %v2680
        %v2682 = vpop.f32.mrb[0].mxu0
        %2683 = vmatprep.mubr.bf16.mxu0 0
        %2684 = vmatmul.mubr.bf16.gmra.mrb[0].mxu0 %v2541
        %v2685 = vpop.f32.mrb[0].mxu0
        %v2686 = vadd.f32 0.0, %v2685
        %v2687 = vpop.f32.mrb[0].mxu0
        %v2688 = vpop.f32.mrb[0].mxu0
        %v2689 = vadd.f32 0.0, %v2688
        %v2690 = vpop.f32.mrb[0].mxu0
        %2691 = vmatprep.mubr.bf16.mxu0 0
        %2692 = vmatmul.mubr.bf16.gmra.mrb[0].mxu0 %v2544
        %v2693 = vpop.f32.mrb[0].mxu0
        %v2694 = vadd.f32 0.0, %v2693
        %v2695 = vpop.f32.mrb[0].mxu0
        %v2696 = vpop.f32.mrb[0].mxu0
        %v2697 = vadd.f32 0.0, %v2696
        %v2698 = vpop.f32.mrb[0].mxu0
        %2699 = vmatprep.mubr.bf16.mxu0 0
        %2700 = vmatmul.mubr.bf16.gmra.mrb[0].mxu0 %v2547
        %v2701 = vpop.f32.mrb[0].mxu0
        %v2702 = vadd.f32 0.0, %v2701
        %v2703 = vpop.f32.mrb[0].mxu0
        %v2704 = vpop.f32.mrb[0].mxu0
        %v2705 = vadd.f32 0.0, %v2704
        %v2706 = vpop.f32.mrb[0].mxu0
        %2707 = vmatprep.mubr.bf16.mxu0 0
        %2708 = vmatmul.mubr.bf16.gmra.mrb[0].mxu0 %v2550
        %v2709 = vpop.f32.mrb[0].mxu0
        %v2710 = vadd.f32 0.0, %v2709
        %v2711 = vpop.f32.mrb[0].mxu0
        %v2712 = vpop.f32.mrb[0].mxu0
        %v2713 = vadd.f32 0.0, %v2712
        %v2714 = vpop.f32.mrb[0].mxu0
        %2715 = vdwg.mxu0
        %v2716 = vadd.f32 %v2422, %v2590
        %v2717 = vadd.f32 %v2423, %v2593
        %v2718 = vadd.f32 %v2424, %v2598
        %v2719 = vadd.f32 %v2425, %v2601
        %v2720 = vadd.f32 %v2426, %v2606
        %v2721 = vadd.f32 %v2427, %v2609
        %v2722 = vadd.f32 %v2428, %v2614
        %v2723 = vadd.f32 %v2429, %v2617
        %v2724 = vadd.f32 %v2430, %v2622
        %v2725 = vadd.f32 %v2431, %v2625
        %v2726 = vadd.f32 %v2432, %v2630
        %v2727 = vadd.f32 %v2433, %v2633
        %v2728 = vadd.f32 %v2434, %v2638
        %v2729 = vadd.f32 %v2435, %v2641
        %v2730 = vadd.f32 %v2436, %v2646
        %v2731 = vadd.f32 %v2437, %v2649
        %v2732 = vadd.f32 %v2438, %v2654
        %v2733 = vadd.f32 %v2439, %v2657
        %v2734 = vadd.f32 %v2440, %v2662
        %v2735 = vadd.f32 %v2441, %v2665
        %v2736 = vadd.f32 %v2442, %v2670
        %v2737 = vadd.f32 %v2443, %v2673
        %v2738 = vadd.f32 %v2444, %v2678
        %v2739 = vadd.f32 %v2445, %v2681
        %v2740 = vadd.f32 %v2446, %v2686
        %v2741 = vadd.f32 %v2447, %v2689
        %v2742 = vadd.f32 %v2448, %v2694
        %v2743 = vadd.f32 %v2449, %v2697
        %v2744 = vadd.f32 %v2450, %v2702
        %v2745 = vadd.f32 %v2451, %v2705
        %v2746 = vadd.f32 %v2452, %v2710
        %v2747 = vadd.f32 %v2453, %v2713
        %v2748 = vld [vmem:[%s2159 + $0x2] sm:$0xff]
        %v2749 = vld [vmem:[%s2159 + $0xa] sm:$0xff]
        %v2750 = vld [vmem:[%s2159 + $0x1a] sm:$0xff]
        %v2751 = vld [vmem:[%s2159 + $0x22] sm:$0xff]
        %v2752 = vld [vmem:[%s2159 + $0x32] sm:$0xff]
        %v2753 = vld [vmem:[%s2159 + $0x3a] sm:$0xff]
        %v2754 = vld [vmem:[%s2159 + $0x4a] sm:$0xff]
        %v2755 = vld [vmem:[%s2159 + $0x52] sm:$0xff]
        %v2756 = vld [vmem:[%s2159 + $0x62] sm:$0xff]
        %v2757 = vld [vmem:[%s2159 + $0x6a] sm:$0xff]
        %v2758 = vld [vmem:[%s2159 + $0x7a] sm:$0xff]
        %v2759 = vld [vmem:[%s2159 + $0x82] sm:$0xff]
        %v2760 = vld [vmem:[%s2159 + $0x92] sm:$0xff]
        %v2761 = vld [vmem:[%s2159 + $0x9a] sm:$0xff]
        %v2762 = vld [vmem:[%s2159 + $0xaa] sm:$0xff]
        %v2763 = vld [vmem:[%s2159 + $0xb2] sm:$0xff]
        %v2764 = vld [vmem:[%s2159 + $0xc2] sm:$0xff]
        %v2765 = vld [vmem:[%s2159 + $0xca] sm:$0xff]
        %v2766 = vld [vmem:[%s2159 + $0xda] sm:$0xff]
        %v2767 = vld [vmem:[%s2159 + $0xe2] sm:$0xff]
        %v2768 = vld [vmem:[%s2159 + $0xf2] sm:$0xff]
        %v2769 = vld [vmem:[%s2159 + $0xfa] sm:$0xff]
        %v2770 = vld [vmem:[%s2159 + $0x10a] sm:$0xff]
        %v2771 = vld [vmem:[%s2159 + $0x112] sm:$0xff]
        %v2772 = vld [vmem:[%s2159 + $0x122] sm:$0xff]
        %v2773 = vld [vmem:[%s2159 + $0x12a] sm:$0xff]
        %v2774 = vld [vmem:[%s2159 + $0x13a] sm:$0xff]
        %v2775 = vld [vmem:[%s2159 + $0x142] sm:$0xff]
        %v2776 = vld [vmem:[%s2159 + $0x152] sm:$0xff]
        %v2777 = vld [vmem:[%s2159 + $0x15a] sm:$0xff]
        %v2778 = vld [vmem:[%s2159 + $0x16a] sm:$0xff]
        %v2779 = vld [vmem:[%s2159 + $0x172] sm:$0xff]
        %v2780 = vpack.c.bf16 %v2749, %v2748
        %v2781 = vpack.c.bf16 %v2751, %v2750
        %v2782 = vpack.c.bf16 %v2753, %v2752
        %v2783 = vpack.c.bf16 %v2755, %v2754
        %v2784 = vpack.c.bf16 %v2757, %v2756
        %v2785 = vpack.c.bf16 %v2759, %v2758
        %v2786 = vpack.c.bf16 %v2761, %v2760
        %v2787 = vpack.c.bf16 %v2763, %v2762
        %v2788 = vpack.c.bf16 %v2765, %v2764
        %v2789 = vpack.c.bf16 %v2767, %v2766
        %v2790 = vpack.c.bf16 %v2769, %v2768
        %v2791 = vpack.c.bf16 %v2771, %v2770
        %v2792 = vpack.c.bf16 %v2773, %v2772
        %v2793 = vpack.c.bf16 %v2775, %v2774
        %v2794 = vpack.c.bf16 %v2777, %v2776
        %v2795 = vpack.c.bf16 %v2779, %v2778
        %s2796 = scalar_lea.vmem %s1, 16
        %v2797 = vld [vmem:[%s2796] sm:$0x3]
        %v2799 = vsel %vm402, %v2780, 0
        %v2802 = vsel %vm402, %v2781, 0
        %v2805 = vsel %vm402, %v2782, 0
        %v2808 = vsel %vm402, %v2783, 0
        %v2811 = vsel %vm402, %v2784, 0
        %v2814 = vsel %vm402, %v2785, 0
        %v2817 = vsel %vm402, %v2786, 0
        %v2820 = vsel %vm402, %v2787, 0
        %v2823 = vsel %vm402, %v2788, 0
        %v2826 = vsel %vm402, %v2789, 0
        %v2829 = vsel %vm402, %v2790, 0
        %v2832 = vsel %vm402, %v2791, 0
        %v2835 = vsel %vm402, %v2792, 0
        %v2838 = vsel %vm402, %v2793, 0
        %v2841 = vsel %vm402, %v2794, 0
        %v2844 = vsel %vm402, %v2795, 0
        %v2847 = vsel %vm606, %v2797, 0
        %2849 = vmatprep.subr.bf16.mxu0 0
        %2850 = vmatpush1.bf16.msra.mxu0 %v2847
        %2851 = vmatprep.subr.bf16.mxu0 0
        %2852 = vmatpush1.bf16.msra.mxu0 0
        %2853 = vmatprep.subr.bf16.mxu0 0
        %2854 = vmatpush1.bf16.msra.mxu0 0
        %2855 = vmatprep.subr.bf16.mxu0 0
        %2856 = vmatpush1.bf16.msra.mxu0 0
        %2857 = vmatprep.subr.bf16.mxu0 0
        %2858 = vmatpush1.bf16.msra.mxu0 0
        %2859 = vmatprep.subr.bf16.mxu0 0
        %2860 = vmatpush1.bf16.msra.mxu0 0
        %2861 = vmatprep.subr.bf16.mxu0 0
        %2862 = vmatpush1.bf16.msra.mxu0 0
        %2863 = vmatprep.subr.bf16.mxu0 0
        %2864 = vmatpush1.bf16.msra.mxu0 0
        %2865 = vmatprep.subr.bf16.mxu0 0
        %2866 = vmatpush1.bf16.msra.mxu0 0
        %2867 = vmatprep.subr.bf16.mxu0 0
        %2868 = vmatpush1.bf16.msra.mxu0 0
        %2869 = vmatprep.subr.bf16.mxu0 0
        %2870 = vmatpush1.bf16.msra.mxu0 0
        %2871 = vmatprep.subr.bf16.mxu0 0
        %2872 = vmatpush1.bf16.msra.mxu0 0
        %2873 = vmatprep.subr.bf16.mxu0 0
        %2874 = vmatpush1.bf16.msra.mxu0 0
        %2875 = vmatprep.subr.bf16.mxu0 0
        %2876 = vmatpush1.bf16.msra.mxu0 0
        %2877 = vmatprep.subr.bf16.mxu0 0
        %2878 = vmatpush1.bf16.msra.mxu0 0
        %2879 = vmatprep.subr.bf16.mxu0 0
        %2880 = vmatpush1.bf16.msra.mxu0 0
        %2881 = vmatprep.mubr.bf16.mxu0 0
        %2882 = vmatmul.mubr.bf16.gmra.mrb[0].mxu0 %v2799
        %v2883 = vpop.f32.mrb[0].mxu0
        %v2884 = vadd.f32 0.0, %v2883
        %v2885 = vpop.f32.mrb[0].mxu0
        %v2886 = vpop.f32.mrb[0].mxu0
        %v2887 = vadd.f32 0.0, %v2886
        %v2888 = vpop.f32.mrb[0].mxu0
        %2889 = vmatprep.mubr.bf16.mxu0 0
        %2890 = vmatmul.mubr.bf16.gmra.mrb[0].mxu0 %v2802
        %v2891 = vpop.f32.mrb[0].mxu0
        %v2892 = vadd.f32 0.0, %v2891
        %v2893 = vpop.f32.mrb[0].mxu0
        %v2894 = vpop.f32.mrb[0].mxu0
        %v2895 = vadd.f32 0.0, %v2894
        %v2896 = vpop.f32.mrb[0].mxu0
        %2897 = vmatprep.mubr.bf16.mxu0 0
        %2898 = vmatmul.mubr.bf16.gmra.mrb[0].mxu0 %v2805
        %v2899 = vpop.f32.mrb[0].mxu0
        %v2900 = vadd.f32 0.0, %v2899
        %v2901 = vpop.f32.mrb[0].mxu0
        %v2902 = vpop.f32.mrb[0].mxu0
        %v2903 = vadd.f32 0.0, %v2902
        %v2904 = vpop.f32.mrb[0].mxu0
        %2905 = vmatprep.mubr.bf16.mxu0 0
        %2906 = vmatmul.mubr.bf16.gmra.mrb[0].mxu0 %v2808
        %v2907 = vpop.f32.mrb[0].mxu0
        %v2908 = vadd.f32 0.0, %v2907
        %v2909 = vpop.f32.mrb[0].mxu0
        %v2910 = vpop.f32.mrb[0].mxu0
        %v2911 = vadd.f32 0.0, %v2910
        %v2912 = vpop.f32.mrb[0].mxu0
        %2913 = vmatprep.mubr.bf16.mxu0 0
        %2914 = vmatmul.mubr.bf16.gmra.mrb[0].mxu0 %v2811
        %v2915 = vpop.f32.mrb[0].mxu0
        %v2916 = vadd.f32 0.0, %v2915
        %v2917 = vpop.f32.mrb[0].mxu0
        %v2918 = vpop.f32.mrb[0].mxu0
        %v2919 = vadd.f32 0.0, %v2918
        %v2920 = vpop.f32.mrb[0].mxu0
        %2921 = vmatprep.mubr.bf16.mxu0 0
        %2922 = vmatmul.mubr.bf16.gmra.mrb[0].mxu0 %v2814
        %v2923 = vpop.f32.mrb[0].mxu0
        %v2924 = vadd.f32 0.0, %v2923
        %v2925 = vpop.f32.mrb[0].mxu0
        %v2926 = vpop.f32.mrb[0].mxu0
        %v2927 = vadd.f32 0.0, %v2926
        %v2928 = vpop.f32.mrb[0].mxu0
        %2929 = vmatprep.mubr.bf16.mxu0 0
        %2930 = vmatmul.mubr.bf16.gmra.mrb[0].mxu0 %v2817
        %v2931 = vpop.f32.mrb[0].mxu0
        %v2932 = vadd.f32 0.0, %v2931
        %v2933 = vpop.f32.mrb[0].mxu0
        %v2934 = vpop.f32.mrb[0].mxu0
        %v2935 = vadd.f32 0.0, %v2934
        %v2936 = vpop.f32.mrb[0].mxu0
        %2937 = vmatprep.mubr.bf16.mxu0 0
        %2938 = vmatmul.mubr.bf16.gmra.mrb[0].mxu0 %v2820
        %v2939 = vpop.f32.mrb[0].mxu0
        %v2940 = vadd.f32 0.0, %v2939
        %v2941 = vpop.f32.mrb[0].mxu0
        %v2942 = vpop.f32.mrb[0].mxu0
        %v2943 = vadd.f32 0.0, %v2942
        %v2944 = vpop.f32.mrb[0].mxu0
        %2945 = vmatprep.mubr.bf16.mxu0 0
        %2946 = vmatmul.mubr.bf16.gmra.mrb[0].mxu0 %v2823
        %v2947 = vpop.f32.mrb[0].mxu0
        %v2948 = vadd.f32 0.0, %v2947
        %v2949 = vpop.f32.mrb[0].mxu0
        %v2950 = vpop.f32.mrb[0].mxu0
        %v2951 = vadd.f32 0.0, %v2950
        %v2952 = vpop.f32.mrb[0].mxu0
        %2953 = vmatprep.mubr.bf16.mxu0 0
        %2954 = vmatmul.mubr.bf16.gmra.mrb[0].mxu0 %v2826
        %v2955 = vpop.f32.mrb[0].mxu0
        %v2956 = vadd.f32 0.0, %v2955
        %v2957 = vpop.f32.mrb[0].mxu0
        %v2958 = vpop.f32.mrb[0].mxu0
        %v2959 = vadd.f32 0.0, %v2958
        %v2960 = vpop.f32.mrb[0].mxu0
        %2961 = vmatprep.mubr.bf16.mxu0 0
        %2962 = vmatmul.mubr.bf16.gmra.mrb[0].mxu0 %v2829
        %v2963 = vpop.f32.mrb[0].mxu0
        %v2964 = vadd.f32 0.0, %v2963
        %v2965 = vpop.f32.mrb[0].mxu0
        %v2966 = vpop.f32.mrb[0].mxu0
        %v2967 = vadd.f32 0.0, %v2966
        %v2968 = vpop.f32.mrb[0].mxu0
        %2969 = vmatprep.mubr.bf16.mxu0 0
        %2970 = vmatmul.mubr.bf16.gmra.mrb[0].mxu0 %v2832
        %v2971 = vpop.f32.mrb[0].mxu0
        %v2972 = vadd.f32 0.0, %v2971
        %v2973 = vpop.f32.mrb[0].mxu0
        %v2974 = vpop.f32.mrb[0].mxu0
        %v2975 = vadd.f32 0.0, %v2974
        %v2976 = vpop.f32.mrb[0].mxu0
        %2977 = vmatprep.mubr.bf16.mxu0 0
        %2978 = vmatmul.mubr.bf16.gmra.mrb[0].mxu0 %v2835
        %v2979 = vpop.f32.mrb[0].mxu0
        %v2980 = vadd.f32 0.0, %v2979
        %v2981 = vpop.f32.mrb[0].mxu0
        %v2982 = vpop.f32.mrb[0].mxu0
        %v2983 = vadd.f32 0.0, %v2982
        %v2984 = vpop.f32.mrb[0].mxu0
        %2985 = vmatprep.mubr.bf16.mxu0 0
        %2986 = vmatmul.mubr.bf16.gmra.mrb[0].mxu0 %v2838
        %v2987 = vpop.f32.mrb[0].mxu0
        %v2988 = vadd.f32 0.0, %v2987
        %v2989 = vpop.f32.mrb[0].mxu0
        %v2990 = vpop.f32.mrb[0].mxu0
        %v2991 = vadd.f32 0.0, %v2990
        %v2992 = vpop.f32.mrb[0].mxu0
        %2993 = vmatprep.mubr.bf16.mxu0 0
        %2994 = vmatmul.mubr.bf16.gmra.mrb[0].mxu0 %v2841
        %v2995 = vpop.f32.mrb[0].mxu0
        %v2996 = vadd.f32 0.0, %v2995
        %v2997 = vpop.f32.mrb[0].mxu0
        %v2998 = vpop.f32.mrb[0].mxu0
        %v2999 = vadd.f32 0.0, %v2998
        %v3000 = vpop.f32.mrb[0].mxu0
        %3001 = vmatprep.mubr.bf16.mxu0 0
        %3002 = vmatmul.mubr.bf16.gmra.mrb[0].mxu0 %v2844
        %v3003 = vpop.f32.mrb[0].mxu0
        %v3004 = vadd.f32 0.0, %v3003
        %v3005 = vpop.f32.mrb[0].mxu0
        %v3006 = vpop.f32.mrb[0].mxu0
        %v3007 = vadd.f32 0.0, %v3006
        %v3008 = vpop.f32.mrb[0].mxu0
        %3009 = vdwg.mxu0
        %v3010 = vadd.f32 %v2716, %v2884
        %v3011 = vadd.f32 %v2717, %v2887
        %v3012 = vadd.f32 %v2718, %v2892
        %v3013 = vadd.f32 %v2719, %v2895
        %v3014 = vadd.f32 %v2720, %v2900
        %v3015 = vadd.f32 %v2721, %v2903
        %v3016 = vadd.f32 %v2722, %v2908
        %v3017 = vadd.f32 %v2723, %v2911
        %v3018 = vadd.f32 %v2724, %v2916
        %v3019 = vadd.f32 %v2725, %v2919
        %v3020 = vadd.f32 %v2726, %v2924
        %v3021 = vadd.f32 %v2727, %v2927
        %v3022 = vadd.f32 %v2728, %v2932
        %v3023 = vadd.f32 %v2729, %v2935
        %v3024 = vadd.f32 %v2730, %v2940
        %v3025 = vadd.f32 %v2731, %v2943
        %v3026 = vadd.f32 %v2732, %v2948
        %v3027 = vadd.f32 %v2733, %v2951
        %v3028 = vadd.f32 %v2734, %v2956
        %v3029 = vadd.f32 %v2735, %v2959
        %v3030 = vadd.f32 %v2736, %v2964
        %v3031 = vadd.f32 %v2737, %v2967
        %v3032 = vadd.f32 %v2738, %v2972
        %v3033 = vadd.f32 %v2739, %v2975
        %v3034 = vadd.f32 %v2740, %v2980
        %v3035 = vadd.f32 %v2741, %v2983
        %v3036 = vadd.f32 %v2742, %v2988
        %v3037 = vadd.f32 %v2743, %v2991
        %v3038 = vadd.f32 %v2744, %v2996
        %v3039 = vadd.f32 %v2745, %v2999
        %v3040 = vadd.f32 %v2746, %v3004
        %v3041 = vadd.f32 %v2747, %v3007
        %v3042 = vld [vmem:[%s2] sm:$0x1]
        %v3044 = vlaneseq
        %v3045 = vshrl.u32 %v3044, 7
        %v3046 = vsub.s32 0, %v3045
        %v3047 = vrot.slane %v3042, %v3046
        %v3049 = vadd.f32 %v3010, %v3047
        %v3050 = vadd.f32 %v3011, %v3047
        %v3051 = vadd.f32 %v3012, %v3047
        %v3052 = vadd.f32 %v3013, %v3047
        %v3053 = vadd.f32 %v3014, %v3047
        %v3054 = vadd.f32 %v3015, %v3047
        %v3055 = vadd.f32 %v3016, %v3047
        %v3056 = vadd.f32 %v3017, %v3047
        %v3057 = vadd.f32 %v3018, %v3047
        %v3058 = vadd.f32 %v3019, %v3047
        %v3059 = vadd.f32 %v3020, %v3047
        %v3060 = vadd.f32 %v3021, %v3047
        %v3061 = vadd.f32 %v3022, %v3047
        %v3062 = vadd.f32 %v3023, %v3047
        %v3063 = vadd.f32 %v3024, %v3047
        %v3064 = vadd.f32 %v3025, %v3047
        %v3065 = vadd.f32 %v3026, %v3047
        %v3066 = vadd.f32 %v3027, %v3047
        %v3067 = vadd.f32 %v3028, %v3047
        %v3068 = vadd.f32 %v3029, %v3047
        %v3069 = vadd.f32 %v3030, %v3047
        %v3070 = vadd.f32 %v3031, %v3047
        %v3071 = vadd.f32 %v3032, %v3047
        %v3072 = vadd.f32 %v3033, %v3047
        %v3073 = vadd.f32 %v3034, %v3047
        %v3074 = vadd.f32 %v3035, %v3047
        %v3075 = vadd.f32 %v3036, %v3047
        %v3076 = vadd.f32 %v3037, %v3047
        %v3077 = vadd.f32 %v3038, %v3047
        %v3078 = vadd.f32 %v3039, %v3047
        %v3079 = vadd.f32 %v3040, %v3047
        %v3080 = vadd.f32 %v3041, %v3047
        %v3081 = vmax.f32 %v3049, 0.0
        %v3082 = vmax.f32 %v3050, 0.0
        %v3083 = vmax.f32 %v3051, 0.0
        %v3084 = vmax.f32 %v3052, 0.0
        %v3085 = vmax.f32 %v3053, 0.0
        %v3086 = vmax.f32 %v3054, 0.0
        %v3087 = vmax.f32 %v3055, 0.0
        %v3088 = vmax.f32 %v3056, 0.0
        %v3089 = vmax.f32 %v3057, 0.0
        %v3090 = vmax.f32 %v3058, 0.0
        %v3091 = vmax.f32 %v3059, 0.0
        %v3092 = vmax.f32 %v3060, 0.0
        %v3093 = vmax.f32 %v3061, 0.0
        %v3094 = vmax.f32 %v3062, 0.0
        %v3095 = vmax.f32 %v3063, 0.0
        %v3096 = vmax.f32 %v3064, 0.0
        %v3097 = vmax.f32 %v3065, 0.0
        %v3098 = vmax.f32 %v3066, 0.0
        %v3099 = vmax.f32 %v3067, 0.0
        %v3100 = vmax.f32 %v3068, 0.0
        %v3101 = vmax.f32 %v3069, 0.0
        %v3102 = vmax.f32 %v3070, 0.0
        %v3103 = vmax.f32 %v3071, 0.0
        %v3104 = vmax.f32 %v3072, 0.0
        %v3105 = vmax.f32 %v3073, 0.0
        %v3106 = vmax.f32 %v3074, 0.0
        %v3107 = vmax.f32 %v3075, 0.0
        %v3108 = vmax.f32 %v3076, 0.0
        %v3109 = vmax.f32 %v3077, 0.0
        %v3110 = vmax.f32 %v3078, 0.0
        %v3111 = vmax.f32 %v3079, 0.0
        %v3112 = vmax.f32 %v3080, 0.0
        %v3129 = vrot.slane %v3082, 7
        %v3130 = vrot.slane %v3084, 7
        %v3131 = vrot.slane %v3086, 7
        %v3132 = vrot.slane %v3088, 7
        %v3133 = vrot.slane %v3090, 7
        %v3134 = vrot.slane %v3092, 7
        %v3135 = vrot.slane %v3094, 7
        %v3136 = vrot.slane %v3096, 7
        %v3137 = vrot.slane %v3098, 7
        %v3138 = vrot.slane %v3100, 7
        %v3139 = vrot.slane %v3102, 7
        %v3140 = vrot.slane %v3104, 7
        %v3141 = vrot.slane %v3106, 7
        %v3142 = vrot.slane %v3108, 7
        %v3143 = vrot.slane %v3110, 7
        %v3144 = vrot.slane %v3112, 7
        %v3177 = vrot.slane %v3081, 7
        %v3178 = vsel %vm320, %v3177, %v3129
        %v3179 = vrot.slane %v3083, 7
        %v3180 = vsel %vm320, %v3179, %v3130
        %v3181 = vrot.slane %v3085, 7
        %v3182 = vsel %vm320, %v3181, %v3131
        %v3183 = vrot.slane %v3087, 7
        %v3184 = vsel %vm320, %v3183, %v3132
        %v3185 = vrot.slane %v3089, 7
        %v3186 = vsel %vm320, %v3185, %v3133
        %v3187 = vrot.slane %v3091, 7
        %v3188 = vsel %vm320, %v3187, %v3134
        %v3189 = vrot.slane %v3093, 7
        %v3190 = vsel %vm320, %v3189, %v3135
        %v3191 = vrot.slane %v3095, 7
        %v3192 = vsel %vm320, %v3191, %v3136
        %v3193 = vrot.slane %v3097, 7
        %v3194 = vsel %vm320, %v3193, %v3137
        %v3195 = vrot.slane %v3099, 7
        %v3196 = vsel %vm320, %v3195, %v3138
        %v3197 = vrot.slane %v3101, 7
        %v3198 = vsel %vm320, %v3197, %v3139
        %v3199 = vrot.slane %v3103, 7
        %v3200 = vsel %vm320, %v3199, %v3140
        %v3201 = vrot.slane %v3105, 7
        %v3202 = vsel %vm320, %v3201, %v3141
        %v3203 = vrot.slane %v3107, 7
        %v3204 = vsel %vm320, %v3203, %v3142
        %v3205 = vrot.slane %v3109, 7
        %v3206 = vsel %vm320, %v3205, %v3143
        %v3207 = vrot.slane %v3111, 7
        %v3208 = vsel %vm320, %v3207, %v3144
        %v3241 = vsel %vm320, %v3129, %v3177
        %v3242 = vsel %vm320, %v3130, %v3179
        %v3243 = vsel %vm320, %v3131, %v3181
        %v3244 = vsel %vm320, %v3132, %v3183
        %v3245 = vsel %vm320, %v3133, %v3185
        %v3246 = vsel %vm320, %v3134, %v3187
        %v3247 = vsel %vm320, %v3135, %v3189
        %v3248 = vsel %vm320, %v3136, %v3191
        %v3249 = vsel %vm320, %v3137, %v3193
        %v3250 = vsel %vm320, %v3138, %v3195
        %v3251 = vsel %vm320, %v3139, %v3197
        %v3252 = vsel %vm320, %v3140, %v3199
        %v3253 = vsel %vm320, %v3141, %v3201
        %v3254 = vsel %vm320, %v3142, %v3203
        %v3255 = vsel %vm320, %v3143, %v3205
        %v3256 = vsel %vm320, %v3144, %v3207
        %s3257 = scalar_lea.vmem [#allocation3], 24
        %vm3258 = vcmask 523264
        %3259 = vst.msk [vmem:[%s3257] sm:$0xff] %vm3258, %v3241
        %3260 = vst.msk [vmem:[%s3257 + $0x8] sm:$0xff] %vm3258, %v3178
        %vm3261 = vcmask 517120
        %3262 = vst.msk [vmem:[%s3257 + $0x10] sm:$0x3] %vm3261, %v3241
        %3263 = vst.msk [vmem:[%s3257 + $0x18] sm:$0xff] %vm3258, %v3242
        %3264 = vst.msk [vmem:[%s3257 + $0x20] sm:$0xff] %vm3258, %v3180
        %3265 = vst.msk [vmem:[%s3257 + $0x28] sm:$0x3] %vm3261, %v3242
        %3266 = vst.msk [vmem:[%s3257 + $0x30] sm:$0xff] %vm3258, %v3243
        %3267 = vst.msk [vmem:[%s3257 + $0x38] sm:$0xff] %vm3258, %v3182
        %3268 = vst.msk [vmem:[%s3257 + $0x40] sm:$0x3] %vm3261, %v3243
        %3269 = vst.msk [vmem:[%s3257 + $0x48] sm:$0xff] %vm3258, %v3244
        %3270 = vst.msk [vmem:[%s3257 + $0x50] sm:$0xff] %vm3258, %v3184
        %3271 = vst.msk [vmem:[%s3257 + $0x58] sm:$0x3] %vm3261, %v3244
        %3272 = vst.msk [vmem:[%s3257 + $0x60] sm:$0xff] %vm3258, %v3245
        %3273 = vst.msk [vmem:[%s3257 + $0x68] sm:$0xff] %vm3258, %v3186
        %3274 = vst.msk [vmem:[%s3257 + $0x70] sm:$0x3] %vm3261, %v3245
        %3275 = vst.msk [vmem:[%s3257 + $0x78] sm:$0xff] %vm3258, %v3246
        %3276 = vst.msk [vmem:[%s3257 + $0x80] sm:$0xff] %vm3258, %v3188
        %3277 = vst.msk [vmem:[%s3257 + $0x88] sm:$0x3] %vm3261, %v3246
        %3278 = vst.msk [vmem:[%s3257 + $0x90] sm:$0xff] %vm3258, %v3247
        %3279 = vst.msk [vmem:[%s3257 + $0x98] sm:$0xff] %vm3258, %v3190
        %3280 = vst.msk [vmem:[%s3257 + $0xa0] sm:$0x3] %vm3261, %v3247
        %3281 = vst.msk [vmem:[%s3257 + $0xa8] sm:$0xff] %vm3258, %v3248
        %3282 = vst.msk [vmem:[%s3257 + $0xb0] sm:$0xff] %vm3258, %v3192
        %3283 = vst.msk [vmem:[%s3257 + $0xb8] sm:$0x3] %vm3261, %v3248
        %3284 = vst.msk [vmem:[%s3257 + $0xc0] sm:$0xff] %vm3258, %v3249
        %3285 = vst.msk [vmem:[%s3257 + $0xc8] sm:$0xff] %vm3258, %v3194
        %3286 = vst.msk [vmem:[%s3257 + $0xd0] sm:$0x3] %vm3261, %v3249
        %3287 = vst.msk [vmem:[%s3257 + $0xd8] sm:$0xff] %vm3258, %v3250
        %3288 = vst.msk [vmem:[%s3257 + $0xe0] sm:$0xff] %vm3258, %v3196
        %3289 = vst.msk [vmem:[%s3257 + $0xe8] sm:$0x3] %vm3261, %v3250
        %3290 = vst.msk [vmem:[%s3257 + $0xf0] sm:$0xff] %vm3258, %v3251
        %3291 = vst.msk [vmem:[%s3257 + $0xf8] sm:$0xff] %vm3258, %v3198
        %3292 = vst.msk [vmem:[%s3257 + $0x100] sm:$0x3] %vm3261, %v3251
        %3293 = vst.msk [vmem:[%s3257 + $0x108] sm:$0xff] %vm3258, %v3252
        %3294 = vst.msk [vmem:[%s3257 + $0x110] sm:$0xff] %vm3258, %v3200
        %3295 = vst.msk [vmem:[%s3257 + $0x118] sm:$0x3] %vm3261, %v3252
        %3296 = vst.msk [vmem:[%s3257 + $0x120] sm:$0xff] %vm3258, %v3253
        %3297 = vst.msk [vmem:[%s3257 + $0x128] sm:$0xff] %vm3258, %v3202
        %3298 = vst.msk [vmem:[%s3257 + $0x130] sm:$0x3] %vm3261, %v3253
        %3299 = vst.msk [vmem:[%s3257 + $0x138] sm:$0xff] %vm3258, %v3254
        %3300 = vst.msk [vmem:[%s3257 + $0x140] sm:$0xff] %vm3258, %v3204
        %3301 = vst.msk [vmem:[%s3257 + $0x148] sm:$0x3] %vm3261, %v3254
        %3302 = vst.msk [vmem:[%s3257 + $0x150] sm:$0xff] %vm3258, %v3255
        %3303 = vst.msk [vmem:[%s3257 + $0x158] sm:$0xff] %vm3258, %v3206
        %3304 = vst.msk [vmem:[%s3257 + $0x160] sm:$0x3] %vm3261, %v3255
        %3305 = vst.msk [vmem:[%s3257 + $0x168] sm:$0xff] %vm3258, %v3256
        %3306 = vst.msk [vmem:[%s3257 + $0x170] sm:$0xff] %vm3258, %v3208
        %3307 = vst.msk [vmem:[%s3257 + $0x178] sm:$0x3] %vm3261, %v3256
        %3308 = vst.msk [vmem:[#allocation3] sm:$0xff] %vm3258, 0.0
        %3309 = vst.msk [vmem:[#allocation3 + $0x8] sm:$0xff] %vm3258, 0.0
        %3310 = vst.msk [vmem:[#allocation3 + $0x10] sm:$0x3] %vm3261, 0.0
        %s3311 = scalar_lea.vmem [#allocation3], 408
        %3312 = vst.msk [vmem:[%s3311] sm:$0xff] %vm3258, 0.0
        %3313 = vst.msk [vmem:[%s3311 + $0x8] sm:$0xff] %vm3258, 0.0
        %3314 = vst.msk [vmem:[%s3311 + $0x10] sm:$0x3] %vm3261, 0.0
        %v3315 = vld [vmem:[#allocation3] sm:$0xff]
        %v3316 = vld [vmem:[#allocation3 + $0x8] sm:$0xff]
        %v3317 = vld [vmem:[#allocation3 + $0x18] sm:$0xff]
        %v3318 = vld [vmem:[#allocation3 + $0x20] sm:$0xff]
        %v3319 = vld [vmem:[#allocation3 + $0x30] sm:$0xff]
        %v3320 = vld [vmem:[#allocation3 + $0x38] sm:$0xff]
        %v3321 = vld [vmem:[#allocation3 + $0x48] sm:$0xff]
        %v3322 = vld [vmem:[#allocation3 + $0x50] sm:$0xff]
        %v3323 = vld [vmem:[#allocation3 + $0x60] sm:$0xff]
        %v3324 = vld [vmem:[#allocation3 + $0x68] sm:$0xff]
        %v3325 = vld [vmem:[#allocation3 + $0x78] sm:$0xff]
        %v3326 = vld [vmem:[#allocation3 + $0x80] sm:$0xff]
        %v3327 = vld [vmem:[#allocation3 + $0x90] sm:$0xff]
        %v3328 = vld [vmem:[#allocation3 + $0x98] sm:$0xff]
        %v3329 = vld [vmem:[#allocation3 + $0xa8] sm:$0xff]
        %v3330 = vld [vmem:[#allocation3 + $0xb0] sm:$0xff]
        %v3331 = vld [vmem:[#allocation3 + $0xc0] sm:$0xff]
        %v3332 = vld [vmem:[#allocation3 + $0xc8] sm:$0xff]
        %v3333 = vld [vmem:[#allocation3 + $0xd8] sm:$0xff]
        %v3334 = vld [vmem:[#allocation3 + $0xe0] sm:$0xff]
        %v3335 = vld [vmem:[#allocation3 + $0xf0] sm:$0xff]
        %v3336 = vld [vmem:[#allocation3 + $0xf8] sm:$0xff]
        %v3337 = vld [vmem:[#allocation3 + $0x108] sm:$0xff]
        %v3338 = vld [vmem:[#allocation3 + $0x110] sm:$0xff]
        %v3339 = vld [vmem:[#allocation3 + $0x120] sm:$0xff]
        %v3340 = vld [vmem:[#allocation3 + $0x128] sm:$0xff]
        %v3341 = vld [vmem:[#allocation3 + $0x138] sm:$0xff]
        %v3342 = vld [vmem:[#allocation3 + $0x140] sm:$0xff]
        %v3343 = vld [vmem:[#allocation3 + $0x150] sm:$0xff]
        %v3344 = vld [vmem:[#allocation3 + $0x158] sm:$0xff]
        %v3345 = vld [vmem:[#allocation3 + $0x168] sm:$0xff]
        %v3346 = vld [vmem:[#allocation3 + $0x170] sm:$0xff]
        %v3347 = vpack.c.bf16 %v3316, %v3315
        %v3348 = vpack.c.bf16 %v3318, %v3317
        %v3349 = vpack.c.bf16 %v3320, %v3319
        %v3350 = vpack.c.bf16 %v3322, %v3321
        %v3351 = vpack.c.bf16 %v3324, %v3323
        %v3352 = vpack.c.bf16 %v3326, %v3325
        %v3353 = vpack.c.bf16 %v3328, %v3327
        %v3354 = vpack.c.bf16 %v3330, %v3329
        %v3355 = vpack.c.bf16 %v3332, %v3331
        %v3356 = vpack.c.bf16 %v3334, %v3333
        %v3357 = vpack.c.bf16 %v3336, %v3335
        %v3358 = vpack.c.bf16 %v3338, %v3337
        %v3359 = vpack.c.bf16 %v3340, %v3339
        %v3360 = vpack.c.bf16 %v3342, %v3341
        %v3361 = vpack.c.bf16 %v3344, %v3343
        %v3362 = vpack.c.bf16 %v3346, %v3345
        %v3363 = vld [vmem:[%s3] sm:$0xf]
        %v3364 = vld [vmem:[%s3 + $0x4] sm:$0xf]
        %v3365 = vld [vmem:[%s3 + $0x8] sm:$0xf]
        %v3366 = vld [vmem:[%s3 + $0xc] sm:$0xf]
        %v3367 = vld [vmem:[%s3 + $0x10] sm:$0xf]
        %v3368 = vld [vmem:[%s3 + $0x14] sm:$0xf]
        %v3369 = vld [vmem:[%s3 + $0x18] sm:$0xf]
        %v3370 = vld [vmem:[%s3 + $0x1c] sm:$0xf]
        %v3371 = vld [vmem:[#allocation3 + $0x1] sm:$0xff]
        %v3372 = vld [vmem:[#allocation3 + $0x9] sm:$0xff]
        %v3373 = vld [vmem:[#allocation3 + $0x19] sm:$0xff]
        %v3374 = vld [vmem:[#allocation3 + $0x21] sm:$0xff]
        %v3375 = vld [vmem:[#allocation3 + $0x31] sm:$0xff]
        %v3376 = vld [vmem:[#allocation3 + $0x39] sm:$0xff]
        %v3377 = vld [vmem:[#allocation3 + $0x49] sm:$0xff]
        %v3378 = vld [vmem:[#allocation3 + $0x51] sm:$0xff]
        %v3379 = vld [vmem:[#allocation3 + $0x61] sm:$0xff]
        %v3380 = vld [vmem:[#allocation3 + $0x69] sm:$0xff]
        %v3381 = vld [vmem:[#allocation3 + $0x79] sm:$0xff]
        %v3382 = vld [vmem:[#allocation3 + $0x81] sm:$0xff]
        %v3383 = vld [vmem:[#allocation3 + $0x91] sm:$0xff]
        %v3384 = vld [vmem:[#allocation3 + $0x99] sm:$0xff]
        %v3385 = vld [vmem:[#allocation3 + $0xa9] sm:$0xff]
        %v3386 = vld [vmem:[#allocation3 + $0xb1] sm:$0xff]
        %v3387 = vld [vmem:[#allocation3 + $0xc1] sm:$0xff]
        %v3388 = vld [vmem:[#allocation3 + $0xc9] sm:$0xff]
        %v3389 = vld [vmem:[#allocation3 + $0xd9] sm:$0xff]
        %v3390 = vld [vmem:[#allocation3 + $0xe1] sm:$0xff]
        %v3391 = vld [vmem:[#allocation3 + $0xf1] sm:$0xff]
        %v3392 = vld [vmem:[#allocation3 + $0xf9] sm:$0xff]
        %v3393 = vld [vmem:[#allocation3 + $0x109] sm:$0xff]
        %v3394 = vld [vmem:[#allocation3 + $0x111] sm:$0xff]
        %v3395 = vld [vmem:[#allocation3 + $0x121] sm:$0xff]
        %v3396 = vld [vmem:[#allocation3 + $0x129] sm:$0xff]
        %v3397 = vld [vmem:[#allocation3 + $0x139] sm:$0xff]
        %v3398 = vld [vmem:[#allocation3 + $0x141] sm:$0xff]
        %v3399 = vld [vmem:[#allocation3 + $0x151] sm:$0xff]
        %v3400 = vld [vmem:[#allocation3 + $0x159] sm:$0xff]
        %v3401 = vld [vmem:[#allocation3 + $0x169] sm:$0xff]
        %v3402 = vld [vmem:[#allocation3 + $0x171] sm:$0xff]
        %v3403 = vpack.c.bf16 %v3372, %v3371
        %v3404 = vpack.c.bf16 %v3374, %v3373
        %v3405 = vpack.c.bf16 %v3376, %v3375
        %v3406 = vpack.c.bf16 %v3378, %v3377
        %v3407 = vpack.c.bf16 %v3380, %v3379
        %v3408 = vpack.c.bf16 %v3382, %v3381
        %v3409 = vpack.c.bf16 %v3384, %v3383
        %v3410 = vpack.c.bf16 %v3386, %v3385
        %v3411 = vpack.c.bf16 %v3388, %v3387
        %v3412 = vpack.c.bf16 %v3390, %v3389
        %v3413 = vpack.c.bf16 %v3392, %v3391
        %v3414 = vpack.c.bf16 %v3394, %v3393
        %v3415 = vpack.c.bf16 %v3396, %v3395
        %v3416 = vpack.c.bf16 %v3398, %v3397
        %v3417 = vpack.c.bf16 %v3400, %v3399
        %v3418 = vpack.c.bf16 %v3402, %v3401
        %s3419 = scalar_lea.vmem %s3, 32
        %v3420 = vld [vmem:[%s3419] sm:$0xf]
        %v3421 = vld [vmem:[%s3419 + $0x4] sm:$0xf]
        %v3422 = vld [vmem:[%s3419 + $0x8] sm:$0xf]
        %v3423 = vld [vmem:[%s3419 + $0xc] sm:$0xf]
        %v3424 = vld [vmem:[%s3419 + $0x10] sm:$0xf]
        %v3425 = vld [vmem:[%s3419 + $0x14] sm:$0xf]
        %v3426 = vld [vmem:[%s3419 + $0x18] sm:$0xf]
        %v3427 = vld [vmem:[%s3419 + $0x1c] sm:$0xf]
        %v3436 = vunpack.c.l.b16 %v3420
        %v3437 = vunpack.c.l.b16 %v3421
        %v3438 = vunpack.c.l.b16 %v3422
        %v3439 = vunpack.c.l.b16 %v3423
        %v3440 = vunpack.c.l.b16 %v3424
        %v3441 = vunpack.c.l.b16 %v3425
        %v3442 = vunpack.c.l.b16 %v3426
        %v3443 = vunpack.c.l.b16 %v3427
        %v3444 = vpack.c.b16 %v3437, %v3436
        %v3445 = vpack.c.b16 %v3439, %v3438
        %v3446 = vpack.c.b16 %v3441, %v3440
        %v3447 = vpack.c.b16 %v3443, %v3442
        %v3453 = vsel %vm3258, %v3403, 0
        %v3456 = vsel %vm3258, %v3404, 0
        %v3459 = vsel %vm3258, %v3405, 0
        %v3462 = vsel %vm3258, %v3406, 0
        %v3465 = vsel %vm3258, %v3407, 0
        %v3468 = vsel %vm3258, %v3408, 0
        %v3471 = vsel %vm3258, %v3409, 0
        %v3474 = vsel %vm3258, %v3410, 0
        %v3477 = vsel %vm3258, %v3411, 0
        %v3480 = vsel %vm3258, %v3412, 0
        %v3483 = vsel %vm3258, %v3413, 0
        %v3486 = vsel %vm3258, %v3414, 0
        %v3489 = vsel %vm3258, %v3415, 0
        %v3492 = vsel %vm3258, %v3416, 0
        %v3495 = vsel %vm3258, %v3417, 0
        %v3498 = vsel %vm3258, %v3418, 0
        %3500 = vmatprep.subr.bf16.mxu0 0
        %3501 = vmatpush1.bf16.msra.mxu0 %v3444
        %3502 = vmatprep.subr.bf16.mxu0 0
        %3503 = vmatpush1.bf16.msra.mxu0 %v3445
        %3504 = vmatprep.subr.bf16.mxu0 0
        %3505 = vmatpush1.bf16.msra.mxu0 %v3446
        %3506 = vmatprep.subr.bf16.mxu0 0
        %3507 = vmatpush1.bf16.msra.mxu0 %v3447
        %3508 = vmatprep.subr.bf16.mxu0 0
        %3509 = vmatpush1.bf16.msra.mxu0 0
        %3510 = vmatprep.subr.bf16.mxu0 0
        %3511 = vmatpush1.bf16.msra.mxu0 0
        %3512 = vmatprep.subr.bf16.mxu0 0
        %3513 = vmatpush1.bf16.msra.mxu0 0
        %3514 = vmatprep.subr.bf16.mxu0 0
        %3515 = vmatpush1.bf16.msra.mxu0 0
        %3516 = vmatprep.subr.bf16.mxu0 0
        %3517 = vmatpush1.bf16.msra.mxu0 0
        %3518 = vmatprep.subr.bf16.mxu0 0
        %3519 = vmatpush1.bf16.msra.mxu0 0
        %3520 = vmatprep.subr.bf16.mxu0 0
        %3521 = vmatpush1.bf16.msra.mxu0 0
        %3522 = vmatprep.subr.bf16.mxu0 0
        %3523 = vmatpush1.bf16.msra.mxu0 0
        %3524 = vmatprep.subr.bf16.mxu0 0
        %3525 = vmatpush1.bf16.msra.mxu0 0
        %3526 = vmatprep.subr.bf16.mxu0 0
        %3527 = vmatpush1.bf16.msra.mxu0 0
        %3528 = vmatprep.subr.bf16.mxu0 0
        %3529 = vmatpush1.bf16.msra.mxu0 0
        %3530 = vmatprep.subr.bf16.mxu0 0
        %3531 = vmatpush1.bf16.msra.mxu0 0
        %3532 = vmatprep.mubr.bf16.mxu0 0
        %3533 = vmatmul.mubr.bf16.gmra.mrb[0].mxu0 %v3453
        %v3534 = vpop.f32.mrb[0].mxu0
        %v3535 = vadd.f32 0.0, %v3534
        %v3536 = vpop.f32.mrb[0].mxu0
        %v3537 = vpop.f32.mrb[0].mxu0
        %v3538 = vadd.f32 0.0, %v3537
        %v3539 = vpop.f32.mrb[0].mxu0
        %3540 = vmatprep.mubr.bf16.mxu0 0
        %3541 = vmatmul.mubr.bf16.gmra.mrb[0].mxu0 %v3456
        %v3542 = vpop.f32.mrb[0].mxu0
        %v3543 = vadd.f32 0.0, %v3542
        %v3544 = vpop.f32.mrb[0].mxu0
        %v3545 = vpop.f32.mrb[0].mxu0
        %v3546 = vadd.f32 0.0, %v3545
        %v3547 = vpop.f32.mrb[0].mxu0
        %3548 = vmatprep.mubr.bf16.mxu0 0
        %3549 = vmatmul.mubr.bf16.gmra.mrb[0].mxu0 %v3459
        %v3550 = vpop.f32.mrb[0].mxu0
        %v3551 = vadd.f32 0.0, %v3550
        %v3552 = vpop.f32.mrb[0].mxu0
        %v3553 = vpop.f32.mrb[0].mxu0
        %v3554 = vadd.f32 0.0, %v3553
        %v3555 = vpop.f32.mrb[0].mxu0
        %3556 = vmatprep.mubr.bf16.mxu0 0
        %3557 = vmatmul.mubr.bf16.gmra.mrb[0].mxu0 %v3462
        %v3558 = vpop.f32.mrb[0].mxu0
        %v3559 = vadd.f32 0.0, %v3558
        %v3560 = vpop.f32.mrb[0].mxu0
        %v3561 = vpop.f32.mrb[0].mxu0
        %v3562 = vadd.f32 0.0, %v3561
        %v3563 = vpop.f32.mrb[0].mxu0
        %3564 = vmatprep.mubr.bf16.mxu0 0
        %3565 = vmatmul.mubr.bf16.gmra.mrb[0].mxu0 %v3465
        %v3566 = vpop.f32.mrb[0].mxu0
        %v3567 = vadd.f32 0.0, %v3566
        %v3568 = vpop.f32.mrb[0].mxu0
        %v3569 = vpop.f32.mrb[0].mxu0
        %v3570 = vadd.f32 0.0, %v3569
        %v3571 = vpop.f32.mrb[0].mxu0
        %3572 = vmatprep.mubr.bf16.mxu0 0
        %3573 = vmatmul.mubr.bf16.gmra.mrb[0].mxu0 %v3468
        %v3574 = vpop.f32.mrb[0].mxu0
        %v3575 = vadd.f32 0.0, %v3574
        %v3576 = vpop.f32.mrb[0].mxu0
        %v3577 = vpop.f32.mrb[0].mxu0
        %v3578 = vadd.f32 0.0, %v3577
        %v3579 = vpop.f32.mrb[0].mxu0
        %3580 = vmatprep.mubr.bf16.mxu0 0
        %3581 = vmatmul.mubr.bf16.gmra.mrb[0].mxu0 %v3471
        %v3582 = vpop.f32.mrb[0].mxu0
        %v3583 = vadd.f32 0.0, %v3582
        %v3584 = vpop.f32.mrb[0].mxu0
        %v3585 = vpop.f32.mrb[0].mxu0
        %v3586 = vadd.f32 0.0, %v3585
        %v3587 = vpop.f32.mrb[0].mxu0
        %3588 = vmatprep.mubr.bf16.mxu0 0
        %3589 = vmatmul.mubr.bf16.gmra.mrb[0].mxu0 %v3474
        %v3590 = vpop.f32.mrb[0].mxu0
        %v3591 = vadd.f32 0.0, %v3590
        %v3592 = vpop.f32.mrb[0].mxu0
        %v3593 = vpop.f32.mrb[0].mxu0
        %v3594 = vadd.f32 0.0, %v3593
        %v3595 = vpop.f32.mrb[0].mxu0
        %3596 = vmatprep.mubr.bf16.mxu0 0
        %3597 = vmatmul.mubr.bf16.gmra.mrb[0].mxu0 %v3477
        %v3598 = vpop.f32.mrb[0].mxu0
        %v3599 = vadd.f32 0.0, %v3598
        %v3600 = vpop.f32.mrb[0].mxu0
        %v3601 = vpop.f32.mrb[0].mxu0
        %v3602 = vadd.f32 0.0, %v3601
        %v3603 = vpop.f32.mrb[0].mxu0
        %3604 = vmatprep.mubr.bf16.mxu0 0
        %3605 = vmatmul.mubr.bf16.gmra.mrb[0].mxu0 %v3480
        %v3606 = vpop.f32.mrb[0].mxu0
        %v3607 = vadd.f32 0.0, %v3606
        %v3608 = vpop.f32.mrb[0].mxu0
        %v3609 = vpop.f32.mrb[0].mxu0
        %v3610 = vadd.f32 0.0, %v3609
        %v3611 = vpop.f32.mrb[0].mxu0
        %3612 = vmatprep.mubr.bf16.mxu0 0
        %3613 = vmatmul.mubr.bf16.gmra.mrb[0].mxu0 %v3483
        %v3614 = vpop.f32.mrb[0].mxu0
        %v3615 = vadd.f32 0.0, %v3614
        %v3616 = vpop.f32.mrb[0].mxu0
        %v3617 = vpop.f32.mrb[0].mxu0
        %v3618 = vadd.f32 0.0, %v3617
        %v3619 = vpop.f32.mrb[0].mxu0
        %3620 = vmatprep.mubr.bf16.mxu0 0
        %3621 = vmatmul.mubr.bf16.gmra.mrb[0].mxu0 %v3486
        %v3622 = vpop.f32.mrb[0].mxu0
        %v3623 = vadd.f32 0.0, %v3622
        %v3624 = vpop.f32.mrb[0].mxu0
        %v3625 = vpop.f32.mrb[0].mxu0
        %v3626 = vadd.f32 0.0, %v3625
        %v3627 = vpop.f32.mrb[0].mxu0
        %3628 = vmatprep.mubr.bf16.mxu0 0
        %3629 = vmatmul.mubr.bf16.gmra.mrb[0].mxu0 %v3489
        %v3630 = vpop.f32.mrb[0].mxu0
        %v3631 = vadd.f32 0.0, %v3630
        %v3632 = vpop.f32.mrb[0].mxu0
        %v3633 = vpop.f32.mrb[0].mxu0
        %v3634 = vadd.f32 0.0, %v3633
        %v3635 = vpop.f32.mrb[0].mxu0
        %3636 = vmatprep.mubr.bf16.mxu0 0
        %3637 = vmatmul.mubr.bf16.gmra.mrb[0].mxu0 %v3492
        %v3638 = vpop.f32.mrb[0].mxu0
        %v3639 = vadd.f32 0.0, %v3638
        %v3640 = vpop.f32.mrb[0].mxu0
        %v3641 = vpop.f32.mrb[0].mxu0
        %v3642 = vadd.f32 0.0, %v3641
        %v3643 = vpop.f32.mrb[0].mxu0
        %3644 = vmatprep.mubr.bf16.mxu0 0
        %3645 = vmatmul.mubr.bf16.gmra.mrb[0].mxu0 %v3495
        %v3646 = vpop.f32.mrb[0].mxu0
        %v3647 = vadd.f32 0.0, %v3646
        %v3648 = vpop.f32.mrb[0].mxu0
        %v3649 = vpop.f32.mrb[0].mxu0
        %v3650 = vadd.f32 0.0, %v3649
        %v3651 = vpop.f32.mrb[0].mxu0
        %3652 = vmatprep.mubr.bf16.mxu0 0
        %3653 = vmatmul.mubr.bf16.gmra.mrb[0].mxu0 %v3498
        %v3654 = vpop.f32.mrb[0].mxu0
        %v3655 = vadd.f32 0.0, %v3654
        %v3656 = vpop.f32.mrb[0].mxu0
        %v3657 = vpop.f32.mrb[0].mxu0
        %v3658 = vadd.f32 0.0, %v3657
        %v3659 = vpop.f32.mrb[0].mxu0
        %3660 = vdwg.mxu0
        %v3669 = vunpack.c.l.b16 %v3363
        %v3670 = vunpack.c.l.b16 %v3364
        %v3671 = vunpack.c.l.b16 %v3365
        %v3672 = vunpack.c.l.b16 %v3366
        %v3673 = vunpack.c.l.b16 %v3367
        %v3674 = vunpack.c.l.b16 %v3368
        %v3675 = vunpack.c.l.b16 %v3369
        %v3676 = vunpack.c.l.b16 %v3370
        %v3677 = vpack.c.b16 %v3670, %v3669
        %v3678 = vpack.c.b16 %v3672, %v3671
        %v3679 = vpack.c.b16 %v3674, %v3673
        %v3680 = vpack.c.b16 %v3676, %v3675
        %v3686 = vsel %vm3258, %v3347, 0
        %v3689 = vsel %vm3258, %v3348, 0
        %v3692 = vsel %vm3258, %v3349, 0
        %v3695 = vsel %vm3258, %v3350, 0
        %v3698 = vsel %vm3258, %v3351, 0
        %v3701 = vsel %vm3258, %v3352, 0
        %v3704 = vsel %vm3258, %v3353, 0
        %v3707 = vsel %vm3258, %v3354, 0
        %v3710 = vsel %vm3258, %v3355, 0
        %v3713 = vsel %vm3258, %v3356, 0
        %v3716 = vsel %vm3258, %v3357, 0
        %v3719 = vsel %vm3258, %v3358, 0
        %v3722 = vsel %vm3258, %v3359, 0
        %v3725 = vsel %vm3258, %v3360, 0
        %v3728 = vsel %vm3258, %v3361, 0
        %v3731 = vsel %vm3258, %v3362, 0
        %3733 = vmatprep.subr.bf16.mxu0 0
        %3734 = vmatpush1.bf16.msra.mxu0 %v3677
        %3735 = vmatprep.subr.bf16.mxu0 0
        %3736 = vmatpush1.bf16.msra.mxu0 %v3678
        %3737 = vmatprep.subr.bf16.mxu0 0
        %3738 = vmatpush1.bf16.msra.mxu0 %v3679
        %3739 = vmatprep.subr.bf16.mxu0 0
        %3740 = vmatpush1.bf16.msra.mxu0 %v3680
        %3741 = vmatprep.subr.bf16.mxu0 0
        %3742 = vmatpush1.bf16.msra.mxu0 0
        %3743 = vmatprep.subr.bf16.mxu0 0
        %3744 = vmatpush1.bf16.msra.mxu0 0
        %3745 = vmatprep.subr.bf16.mxu0 0
        %3746 = vmatpush1.bf16.msra.mxu0 0
        %3747 = vmatprep.subr.bf16.mxu0 0
        %3748 = vmatpush1.bf16.msra.mxu0 0
        %3749 = vmatprep.subr.bf16.mxu0 0
        %3750 = vmatpush1.bf16.msra.mxu0 0
        %3751 = vmatprep.subr.bf16.mxu0 0
        %3752 = vmatpush1.bf16.msra.mxu0 0
        %3753 = vmatprep.subr.bf16.mxu0 0
        %3754 = vmatpush1.bf16.msra.mxu0 0
        %3755 = vmatprep.subr.bf16.mxu0 0
        %3756 = vmatpush1.bf16.msra.mxu0 0
        %3757 = vmatprep.subr.bf16.mxu0 0
        %3758 = vmatpush1.bf16.msra.mxu0 0
        %3759 = vmatprep.subr.bf16.mxu0 0
        %3760 = vmatpush1.bf16.msra.mxu0 0
        %3761 = vmatprep.subr.bf16.mxu0 0
        %3762 = vmatpush1.bf16.msra.mxu0 0
        %3763 = vmatprep.subr.bf16.mxu0 0
        %3764 = vmatpush1.bf16.msra.mxu0 0
        %3765 = vmatprep.mubr.bf16.mxu0 0
        %3766 = vmatmul.mubr.bf16.gmra.mrb[0].mxu0 %v3686
        %v3767 = vpop.f32.mrb[0].mxu0
        %v3768 = vadd.f32 %v3535, %v3767
        %v3769 = vpop.f32.mrb[0].mxu0
        %v3770 = vpop.f32.mrb[0].mxu0
        %v3771 = vadd.f32 %v3538, %v3770
        %v3772 = vpop.f32.mrb[0].mxu0
        %3773 = vmatprep.mubr.bf16.mxu0 0
        %3774 = vmatmul.mubr.bf16.gmra.mrb[0].mxu0 %v3689
        %v3775 = vpop.f32.mrb[0].mxu0
        %v3776 = vadd.f32 %v3543, %v3775
        %v3777 = vpop.f32.mrb[0].mxu0
        %v3778 = vpop.f32.mrb[0].mxu0
        %v3779 = vadd.f32 %v3546, %v3778
        %v3780 = vpop.f32.mrb[0].mxu0
        %3781 = vmatprep.mubr.bf16.mxu0 0
        %3782 = vmatmul.mubr.bf16.gmra.mrb[0].mxu0 %v3692
        %v3783 = vpop.f32.mrb[0].mxu0
        %v3784 = vadd.f32 %v3551, %v3783
        %v3785 = vpop.f32.mrb[0].mxu0
        %v3786 = vpop.f32.mrb[0].mxu0
        %v3787 = vadd.f32 %v3554, %v3786
        %v3788 = vpop.f32.mrb[0].mxu0
        %3789 = vmatprep.mubr.bf16.mxu0 0
        %3790 = vmatmul.mubr.bf16.gmra.mrb[0].mxu0 %v3695
        %v3791 = vpop.f32.mrb[0].mxu0
        %v3792 = vadd.f32 %v3559, %v3791
        %v3793 = vpop.f32.mrb[0].mxu0
        %v3794 = vpop.f32.mrb[0].mxu0
        %v3795 = vadd.f32 %v3562, %v3794
        %v3796 = vpop.f32.mrb[0].mxu0
        %3797 = vmatprep.mubr.bf16.mxu0 0
        %3798 = vmatmul.mubr.bf16.gmra.mrb[0].mxu0 %v3698
        %v3799 = vpop.f32.mrb[0].mxu0
        %v3800 = vadd.f32 %v3567, %v3799
        %v3801 = vpop.f32.mrb[0].mxu0
        %v3802 = vpop.f32.mrb[0].mxu0
        %v3803 = vadd.f32 %v3570, %v3802
        %v3804 = vpop.f32.mrb[0].mxu0
        %3805 = vmatprep.mubr.bf16.mxu0 0
        %3806 = vmatmul.mubr.bf16.gmra.mrb[0].mxu0 %v3701
        %v3807 = vpop.f32.mrb[0].mxu0
        %v3808 = vadd.f32 %v3575, %v3807
        %v3809 = vpop.f32.mrb[0].mxu0
        %v3810 = vpop.f32.mrb[0].mxu0
        %v3811 = vadd.f32 %v3578, %v3810
        %v3812 = vpop.f32.mrb[0].mxu0
        %3813 = vmatprep.mubr.bf16.mxu0 0
        %3814 = vmatmul.mubr.bf16.gmra.mrb[0].mxu0 %v3704
        %v3815 = vpop.f32.mrb[0].mxu0
        %v3816 = vadd.f32 %v3583, %v3815
        %v3817 = vpop.f32.mrb[0].mxu0
        %v3818 = vpop.f32.mrb[0].mxu0
        %v3819 = vadd.f32 %v3586, %v3818
        %v3820 = vpop.f32.mrb[0].mxu0
        %3821 = vmatprep.mubr.bf16.mxu0 0
        %3822 = vmatmul.mubr.bf16.gmra.mrb[0].mxu0 %v3707
        %v3823 = vpop.f32.mrb[0].mxu0
        %v3824 = vadd.f32 %v3591, %v3823
        %v3825 = vpop.f32.mrb[0].mxu0
        %v3826 = vpop.f32.mrb[0].mxu0
        %v3827 = vadd.f32 %v3594, %v3826
        %v3828 = vpop.f32.mrb[0].mxu0
        %3829 = vmatprep.mubr.bf16.mxu0 0
        %3830 = vmatmul.mubr.bf16.gmra.mrb[0].mxu0 %v3710
        %v3831 = vpop.f32.mrb[0].mxu0
        %v3832 = vadd.f32 %v3599, %v3831
        %v3833 = vpop.f32.mrb[0].mxu0
        %v3834 = vpop.f32.mrb[0].mxu0
        %v3835 = vadd.f32 %v3602, %v3834
        %v3836 = vpop.f32.mrb[0].mxu0
        %3837 = vmatprep.mubr.bf16.mxu0 0
        %3838 = vmatmul.mubr.bf16.gmra.mrb[0].mxu0 %v3713
        %v3839 = vpop.f32.mrb[0].mxu0
        %v3840 = vadd.f32 %v3607, %v3839
        %v3841 = vpop.f32.mrb[0].mxu0
        %v3842 = vpop.f32.mrb[0].mxu0
        %v3843 = vadd.f32 %v3610, %v3842
        %v3844 = vpop.f32.mrb[0].mxu0
        %3845 = vmatprep.mubr.bf16.mxu0 0
        %3846 = vmatmul.mubr.bf16.gmra.mrb[0].mxu0 %v3716
        %v3847 = vpop.f32.mrb[0].mxu0
        %v3848 = vadd.f32 %v3615, %v3847
        %v3849 = vpop.f32.mrb[0].mxu0
        %v3850 = vpop.f32.mrb[0].mxu0
        %v3851 = vadd.f32 %v3618, %v3850
        %v3852 = vpop.f32.mrb[0].mxu0
        %3853 = vmatprep.mubr.bf16.mxu0 0
        %3854 = vmatmul.mubr.bf16.gmra.mrb[0].mxu0 %v3719
        %v3855 = vpop.f32.mrb[0].mxu0
        %v3856 = vadd.f32 %v3623, %v3855
        %v3857 = vpop.f32.mrb[0].mxu0
        %v3858 = vpop.f32.mrb[0].mxu0
        %v3859 = vadd.f32 %v3626, %v3858
        %v3860 = vpop.f32.mrb[0].mxu0
        %3861 = vmatprep.mubr.bf16.mxu0 0
        %3862 = vmatmul.mubr.bf16.gmra.mrb[0].mxu0 %v3722
        %v3863 = vpop.f32.mrb[0].mxu0
        %v3864 = vadd.f32 %v3631, %v3863
        %v3865 = vpop.f32.mrb[0].mxu0
        %v3866 = vpop.f32.mrb[0].mxu0
        %v3867 = vadd.f32 %v3634, %v3866
        %v3868 = vpop.f32.mrb[0].mxu0
        %3869 = vmatprep.mubr.bf16.mxu0 0
        %3870 = vmatmul.mubr.bf16.gmra.mrb[0].mxu0 %v3725
        %v3871 = vpop.f32.mrb[0].mxu0
        %v3872 = vadd.f32 %v3639, %v3871
        %v3873 = vpop.f32.mrb[0].mxu0
        %v3874 = vpop.f32.mrb[0].mxu0
        %v3875 = vadd.f32 %v3642, %v3874
        %v3876 = vpop.f32.mrb[0].mxu0
        %3877 = vmatprep.mubr.bf16.mxu0 0
        %3878 = vmatmul.mubr.bf16.gmra.mrb[0].mxu0 %v3728
        %v3879 = vpop.f32.mrb[0].mxu0
        %v3880 = vadd.f32 %v3647, %v3879
        %v3881 = vpop.f32.mrb[0].mxu0
        %v3882 = vpop.f32.mrb[0].mxu0
        %v3883 = vadd.f32 %v3650, %v3882
        %v3884 = vpop.f32.mrb[0].mxu0
        %3885 = vmatprep.mubr.bf16.mxu0 0
        %3886 = vmatmul.mubr.bf16.gmra.mrb[0].mxu0 %v3731
        %v3887 = vpop.f32.mrb[0].mxu0
        %v3888 = vadd.f32 %v3655, %v3887
        %v3889 = vpop.f32.mrb[0].mxu0
        %v3890 = vpop.f32.mrb[0].mxu0
        %v3891 = vadd.f32 %v3658, %v3890
        %v3892 = vpop.f32.mrb[0].mxu0
        %3893 = vdwg.mxu0
        %v3894 = vld [vmem:[#allocation3 + $0x2] sm:$0xff]
        %v3895 = vld [vmem:[#allocation3 + $0xa] sm:$0xff]
        %v3896 = vld [vmem:[#allocation3 + $0x1a] sm:$0xff]
        %v3897 = vld [vmem:[#allocation3 + $0x22] sm:$0xff]
        %v3898 = vld [vmem:[#allocation3 + $0x32] sm:$0xff]
        %v3899 = vld [vmem:[#allocation3 + $0x3a] sm:$0xff]
        %v3900 = vld [vmem:[#allocation3 + $0x4a] sm:$0xff]
        %v3901 = vld [vmem:[#allocation3 + $0x52] sm:$0xff]
        %v3902 = vld [vmem:[#allocation3 + $0x62] sm:$0xff]
        %v3903 = vld [vmem:[#allocation3 + $0x6a] sm:$0xff]
        %v3904 = vld [vmem:[#allocation3 + $0x7a] sm:$0xff]
        %v3905 = vld [vmem:[#allocation3 + $0x82] sm:$0xff]
        %v3906 = vld [vmem:[#allocation3 + $0x92] sm:$0xff]
        %v3907 = vld [vmem:[#allocation3 + $0x9a] sm:$0xff]
        %v3908 = vld [vmem:[#allocation3 + $0xaa] sm:$0xff]
        %v3909 = vld [vmem:[#allocation3 + $0xb2] sm:$0xff]
        %v3910 = vld [vmem:[#allocation3 + $0xc2] sm:$0xff]
        %v3911 = vld [vmem:[#allocation3 + $0xca] sm:$0xff]
        %v3912 = vld [vmem:[#allocation3 + $0xda] sm:$0xff]
        %v3913 = vld [vmem:[#allocation3 + $0xe2] sm:$0xff]
        %v3914 = vld [vmem:[#allocation3 + $0xf2] sm:$0xff]
        %v3915 = vld [vmem:[#allocation3 + $0xfa] sm:$0xff]
        %v3916 = vld [vmem:[#allocation3 + $0x10a] sm:$0xff]
        %v3917 = vld [vmem:[#allocation3 + $0x112] sm:$0xff]
        %v3918 = vld [vmem:[#allocation3 + $0x122] sm:$0xff]
        %v3919 = vld [vmem:[#allocation3 + $0x12a] sm:$0xff]
        %v3920 = vld [vmem:[#allocation3 + $0x13a] sm:$0xff]
        %v3921 = vld [vmem:[#allocation3 + $0x142] sm:$0xff]
        %v3922 = vld [vmem:[#allocation3 + $0x152] sm:$0xff]
        %v3923 = vld [vmem:[#allocation3 + $0x15a] sm:$0xff]
        %v3924 = vld [vmem:[#allocation3 + $0x16a] sm:$0xff]
        %v3925 = vld [vmem:[#allocation3 + $0x172] sm:$0xff]
        %v3926 = vpack.c.bf16 %v3895, %v3894
        %v3927 = vpack.c.bf16 %v3897, %v3896
        %v3928 = vpack.c.bf16 %v3899, %v3898
        %v3929 = vpack.c.bf16 %v3901, %v3900
        %v3930 = vpack.c.bf16 %v3903, %v3902
        %v3931 = vpack.c.bf16 %v3905, %v3904
        %v3932 = vpack.c.bf16 %v3907, %v3906
        %v3933 = vpack.c.bf16 %v3909, %v3908
        %v3934 = vpack.c.bf16 %v3911, %v3910
        %v3935 = vpack.c.bf16 %v3913, %v3912
        %v3936 = vpack.c.bf16 %v3915, %v3914
        %v3937 = vpack.c.bf16 %v3917, %v3916
        %v3938 = vpack.c.bf16 %v3919, %v3918
        %v3939 = vpack.c.bf16 %v3921, %v3920
        %v3940 = vpack.c.bf16 %v3923, %v3922
        %v3941 = vpack.c.bf16 %v3925, %v3924
        %s3942 = scalar_lea.vmem %s3, 64
        %v3943 = vld [vmem:[%s3942] sm:$0xf]
        %v3944 = vld [vmem:[%s3942 + $0x4] sm:$0xf]
        %v3945 = vld [vmem:[%s3942 + $0x8] sm:$0xf]
        %v3946 = vld [vmem:[%s3942 + $0xc] sm:$0xf]
        %v3947 = vld [vmem:[%s3942 + $0x10] sm:$0xf]
        %v3948 = vld [vmem:[%s3942 + $0x14] sm:$0xf]
        %v3949 = vld [vmem:[%s3942 + $0x18] sm:$0xf]
        %v3950 = vld [vmem:[%s3942 + $0x1c] sm:$0xf]
        %v3959 = vunpack.c.l.b16 %v3943
        %v3960 = vunpack.c.l.b16 %v3944
        %v3961 = vunpack.c.l.b16 %v3945
        %v3962 = vunpack.c.l.b16 %v3946
        %v3963 = vunpack.c.l.b16 %v3947
        %v3964 = vunpack.c.l.b16 %v3948
        %v3965 = vunpack.c.l.b16 %v3949
        %v3966 = vunpack.c.l.b16 %v3950
        %v3967 = vpack.c.b16 %v3960, %v3959
        %v3968 = vpack.c.b16 %v3962, %v3961
        %v3969 = vpack.c.b16 %v3964, %v3963
        %v3970 = vpack.c.b16 %v3966, %v3965
        %v3976 = vsel %vm3258, %v3926, 0
        %v3979 = vsel %vm3258, %v3927, 0
        %v3982 = vsel %vm3258, %v3928, 0
        %v3985 = vsel %vm3258, %v3929, 0
        %v3988 = vsel %vm3258, %v3930, 0
        %v3991 = vsel %vm3258, %v3931, 0
        %v3994 = vsel %vm3258, %v3932, 0
        %v3997 = vsel %vm3258, %v3933, 0
        %v4000 = vsel %vm3258, %v3934, 0
        %v4003 = vsel %vm3258, %v3935, 0
        %v4006 = vsel %vm3258, %v3936, 0
        %v4009 = vsel %vm3258, %v3937, 0
        %v4012 = vsel %vm3258, %v3938, 0
        %v4015 = vsel %vm3258, %v3939, 0
        %v4018 = vsel %vm3258, %v3940, 0
        %v4021 = vsel %vm3258, %v3941, 0
        %4023 = vmatprep.subr.bf16.mxu0 0
        %4024 = vmatpush1.bf16.msra.mxu0 %v3967
        %4025 = vmatprep.subr.bf16.mxu0 0
        %4026 = vmatpush1.bf16.msra.mxu0 %v3968
        %4027 = vmatprep.subr.bf16.mxu0 0
        %4028 = vmatpush1.bf16.msra.mxu0 %v3969
        %4029 = vmatprep.subr.bf16.mxu0 0
        %4030 = vmatpush1.bf16.msra.mxu0 %v3970
        %4031 = vmatprep.subr.bf16.mxu0 0
        %4032 = vmatpush1.bf16.msra.mxu0 0
        %4033 = vmatprep.subr.bf16.mxu0 0
        %4034 = vmatpush1.bf16.msra.mxu0 0
        %4035 = vmatprep.subr.bf16.mxu0 0
        %4036 = vmatpush1.bf16.msra.mxu0 0
        %4037 = vmatprep.subr.bf16.mxu0 0
        %4038 = vmatpush1.bf16.msra.mxu0 0
        %4039 = vmatprep.subr.bf16.mxu0 0
        %4040 = vmatpush1.bf16.msra.mxu0 0
        %4041 = vmatprep.subr.bf16.mxu0 0
        %4042 = vmatpush1.bf16.msra.mxu0 0
        %4043 = vmatprep.subr.bf16.mxu0 0
        %4044 = vmatpush1.bf16.msra.mxu0 0
        %4045 = vmatprep.subr.bf16.mxu0 0
        %4046 = vmatpush1.bf16.msra.mxu0 0
        %4047 = vmatprep.subr.bf16.mxu0 0
        %4048 = vmatpush1.bf16.msra.mxu0 0
        %4049 = vmatprep.subr.bf16.mxu0 0
        %4050 = vmatpush1.bf16.msra.mxu0 0
        %4051 = vmatprep.subr.bf16.mxu0 0
        %4052 = vmatpush1.bf16.msra.mxu0 0
        %4053 = vmatprep.subr.bf16.mxu0 0
        %4054 = vmatpush1.bf16.msra.mxu0 0
        %4055 = vmatprep.mubr.bf16.mxu0 0
        %4056 = vmatmul.mubr.bf16.gmra.mrb[0].mxu0 %v3976
        %v4057 = vpop.f32.mrb[0].mxu0
        %v4058 = vadd.f32 0.0, %v4057
        %v4059 = vpop.f32.mrb[0].mxu0
        %v4060 = vpop.f32.mrb[0].mxu0
        %v4061 = vadd.f32 0.0, %v4060
        %v4062 = vpop.f32.mrb[0].mxu0
        %4063 = vmatprep.mubr.bf16.mxu0 0
        %4064 = vmatmul.mubr.bf16.gmra.mrb[0].mxu0 %v3979
        %v4065 = vpop.f32.mrb[0].mxu0
        %v4066 = vadd.f32 0.0, %v4065
        %v4067 = vpop.f32.mrb[0].mxu0
        %v4068 = vpop.f32.mrb[0].mxu0
        %v4069 = vadd.f32 0.0, %v4068
        %v4070 = vpop.f32.mrb[0].mxu0
        %4071 = vmatprep.mubr.bf16.mxu0 0
        %4072 = vmatmul.mubr.bf16.gmra.mrb[0].mxu0 %v3982
        %v4073 = vpop.f32.mrb[0].mxu0
        %v4074 = vadd.f32 0.0, %v4073
        %v4075 = vpop.f32.mrb[0].mxu0
        %v4076 = vpop.f32.mrb[0].mxu0
        %v4077 = vadd.f32 0.0, %v4076
        %v4078 = vpop.f32.mrb[0].mxu0
        %4079 = vmatprep.mubr.bf16.mxu0 0
        %4080 = vmatmul.mubr.bf16.gmra.mrb[0].mxu0 %v3985
        %v4081 = vpop.f32.mrb[0].mxu0
        %v4082 = vadd.f32 0.0, %v4081
        %v4083 = vpop.f32.mrb[0].mxu0
        %v4084 = vpop.f32.mrb[0].mxu0
        %v4085 = vadd.f32 0.0, %v4084
        %v4086 = vpop.f32.mrb[0].mxu0
        %4087 = vmatprep.mubr.bf16.mxu0 0
        %4088 = vmatmul.mubr.bf16.gmra.mrb[0].mxu0 %v3988
        %v4089 = vpop.f32.mrb[0].mxu0
        %v4090 = vadd.f32 0.0, %v4089
        %v4091 = vpop.f32.mrb[0].mxu0
        %v4092 = vpop.f32.mrb[0].mxu0
        %v4093 = vadd.f32 0.0, %v4092
        %v4094 = vpop.f32.mrb[0].mxu0
        %4095 = vmatprep.mubr.bf16.mxu0 0
        %4096 = vmatmul.mubr.bf16.gmra.mrb[0].mxu0 %v3991
        %v4097 = vpop.f32.mrb[0].mxu0
        %v4098 = vadd.f32 0.0, %v4097
        %v4099 = vpop.f32.mrb[0].mxu0
        %v4100 = vpop.f32.mrb[0].mxu0
        %v4101 = vadd.f32 0.0, %v4100
        %v4102 = vpop.f32.mrb[0].mxu0
        %4103 = vmatprep.mubr.bf16.mxu0 0
        %4104 = vmatmul.mubr.bf16.gmra.mrb[0].mxu0 %v3994
        %v4105 = vpop.f32.mrb[0].mxu0
        %v4106 = vadd.f32 0.0, %v4105
        %v4107 = vpop.f32.mrb[0].mxu0
        %v4108 = vpop.f32.mrb[0].mxu0
        %v4109 = vadd.f32 0.0, %v4108
        %v4110 = vpop.f32.mrb[0].mxu0
        %4111 = vmatprep.mubr.bf16.mxu0 0
        %4112 = vmatmul.mubr.bf16.gmra.mrb[0].mxu0 %v3997
        %v4113 = vpop.f32.mrb[0].mxu0
        %v4114 = vadd.f32 0.0, %v4113
        %v4115 = vpop.f32.mrb[0].mxu0
        %v4116 = vpop.f32.mrb[0].mxu0
        %v4117 = vadd.f32 0.0, %v4116
        %v4118 = vpop.f32.mrb[0].mxu0
        %4119 = vmatprep.mubr.bf16.mxu0 0
        %4120 = vmatmul.mubr.bf16.gmra.mrb[0].mxu0 %v4000
        %v4121 = vpop.f32.mrb[0].mxu0
        %v4122 = vadd.f32 0.0, %v4121
        %v4123 = vpop.f32.mrb[0].mxu0
        %v4124 = vpop.f32.mrb[0].mxu0
        %v4125 = vadd.f32 0.0, %v4124
        %v4126 = vpop.f32.mrb[0].mxu0
        %4127 = vmatprep.mubr.bf16.mxu0 0
        %4128 = vmatmul.mubr.bf16.gmra.mrb[0].mxu0 %v4003
        %v4129 = vpop.f32.mrb[0].mxu0
        %v4130 = vadd.f32 0.0, %v4129
        %v4131 = vpop.f32.mrb[0].mxu0
        %v4132 = vpop.f32.mrb[0].mxu0
        %v4133 = vadd.f32 0.0, %v4132
        %v4134 = vpop.f32.mrb[0].mxu0
        %4135 = vmatprep.mubr.bf16.mxu0 0
        %4136 = vmatmul.mubr.bf16.gmra.mrb[0].mxu0 %v4006
        %v4137 = vpop.f32.mrb[0].mxu0
        %v4138 = vadd.f32 0.0, %v4137
        %v4139 = vpop.f32.mrb[0].mxu0
        %v4140 = vpop.f32.mrb[0].mxu0
        %v4141 = vadd.f32 0.0, %v4140
        %v4142 = vpop.f32.mrb[0].mxu0
        %4143 = vmatprep.mubr.bf16.mxu0 0
        %4144 = vmatmul.mubr.bf16.gmra.mrb[0].mxu0 %v4009
        %v4145 = vpop.f32.mrb[0].mxu0
        %v4146 = vadd.f32 0.0, %v4145
        %v4147 = vpop.f32.mrb[0].mxu0
        %v4148 = vpop.f32.mrb[0].mxu0
        %v4149 = vadd.f32 0.0, %v4148
        %v4150 = vpop.f32.mrb[0].mxu0
        %4151 = vmatprep.mubr.bf16.mxu0 0
        %4152 = vmatmul.mubr.bf16.gmra.mrb[0].mxu0 %v4012
        %v4153 = vpop.f32.mrb[0].mxu0
        %v4154 = vadd.f32 0.0, %v4153
        %v4155 = vpop.f32.mrb[0].mxu0
        %v4156 = vpop.f32.mrb[0].mxu0
        %v4157 = vadd.f32 0.0, %v4156
        %v4158 = vpop.f32.mrb[0].mxu0
        %4159 = vmatprep.mubr.bf16.mxu0 0
        %4160 = vmatmul.mubr.bf16.gmra.mrb[0].mxu0 %v4015
        %v4161 = vpop.f32.mrb[0].mxu0
        %v4162 = vadd.f32 0.0, %v4161
        %v4163 = vpop.f32.mrb[0].mxu0
        %v4164 = vpop.f32.mrb[0].mxu0
        %v4165 = vadd.f32 0.0, %v4164
        %v4166 = vpop.f32.mrb[0].mxu0
        %4167 = vmatprep.mubr.bf16.mxu0 0
        %4168 = vmatmul.mubr.bf16.gmra.mrb[0].mxu0 %v4018
        %v4169 = vpop.f32.mrb[0].mxu0
        %v4170 = vadd.f32 0.0, %v4169
        %v4171 = vpop.f32.mrb[0].mxu0
        %v4172 = vpop.f32.mrb[0].mxu0
        %v4173 = vadd.f32 0.0, %v4172
        %v4174 = vpop.f32.mrb[0].mxu0
        %4175 = vmatprep.mubr.bf16.mxu0 0
        %4176 = vmatmul.mubr.bf16.gmra.mrb[0].mxu0 %v4021
        %v4177 = vpop.f32.mrb[0].mxu0
        %v4178 = vadd.f32 0.0, %v4177
        %v4179 = vpop.f32.mrb[0].mxu0
        %v4180 = vpop.f32.mrb[0].mxu0
        %v4181 = vadd.f32 0.0, %v4180
        %v4182 = vpop.f32.mrb[0].mxu0
        %4183 = vdwg.mxu0
        %v4184 = vadd.f32 %v3768, %v4058
        %v4185 = vadd.f32 %v3771, %v4061
        %v4186 = vadd.f32 %v3776, %v4066
        %v4187 = vadd.f32 %v3779, %v4069
        %v4188 = vadd.f32 %v3784, %v4074
        %v4189 = vadd.f32 %v3787, %v4077
        %v4190 = vadd.f32 %v3792, %v4082
        %v4191 = vadd.f32 %v3795, %v4085
        %v4192 = vadd.f32 %v3800, %v4090
        %v4193 = vadd.f32 %v3803, %v4093
        %v4194 = vadd.f32 %v3808, %v4098
        %v4195 = vadd.f32 %v3811, %v4101
        %v4196 = vadd.f32 %v3816, %v4106
        %v4197 = vadd.f32 %v3819, %v4109
        %v4198 = vadd.f32 %v3824, %v4114
        %v4199 = vadd.f32 %v3827, %v4117
        %v4200 = vadd.f32 %v3832, %v4122
        %v4201 = vadd.f32 %v3835, %v4125
        %v4202 = vadd.f32 %v3840, %v4130
        %v4203 = vadd.f32 %v3843, %v4133
        %v4204 = vadd.f32 %v3848, %v4138
        %v4205 = vadd.f32 %v3851, %v4141
        %v4206 = vadd.f32 %v3856, %v4146
        %v4207 = vadd.f32 %v3859, %v4149
        %v4208 = vadd.f32 %v3864, %v4154
        %v4209 = vadd.f32 %v3867, %v4157
        %v4210 = vadd.f32 %v3872, %v4162
        %v4211 = vadd.f32 %v3875, %v4165
        %v4212 = vadd.f32 %v3880, %v4170
        %v4213 = vadd.f32 %v3883, %v4173
        %v4214 = vadd.f32 %v3888, %v4178
        %v4215 = vadd.f32 %v3891, %v4181
        %v4216 = vld [vmem:[%s3257] sm:$0xff]
        %v4217 = vld [vmem:[%s3257 + $0x8] sm:$0xff]
        %v4218 = vld [vmem:[%s3257 + $0x18] sm:$0xff]
        %v4219 = vld [vmem:[%s3257 + $0x20] sm:$0xff]
        %v4220 = vld [vmem:[%s3257 + $0x30] sm:$0xff]
        %v4221 = vld [vmem:[%s3257 + $0x38] sm:$0xff]
        %v4222 = vld [vmem:[%s3257 + $0x48] sm:$0xff]
        %v4223 = vld [vmem:[%s3257 + $0x50] sm:$0xff]
        %v4224 = vld [vmem:[%s3257 + $0x60] sm:$0xff]
        %v4225 = vld [vmem:[%s3257 + $0x68] sm:$0xff]
        %v4226 = vld [vmem:[%s3257 + $0x78] sm:$0xff]
        %v4227 = vld [vmem:[%s3257 + $0x80] sm:$0xff]
        %v4228 = vld [vmem:[%s3257 + $0x90] sm:$0xff]
        %v4229 = vld [vmem:[%s3257 + $0x98] sm:$0xff]
        %v4230 = vld [vmem:[%s3257 + $0xa8] sm:$0xff]
        %v4231 = vld [vmem:[%s3257 + $0xb0] sm:$0xff]
        %v4232 = vld [vmem:[%s3257 + $0xc0] sm:$0xff]
        %v4233 = vld [vmem:[%s3257 + $0xc8] sm:$0xff]
        %v4234 = vld [vmem:[%s3257 + $0xd8] sm:$0xff]
        %v4235 = vld [vmem:[%s3257 + $0xe0] sm:$0xff]
        %v4236 = vld [vmem:[%s3257 + $0xf0] sm:$0xff]
        %v4237 = vld [vmem:[%s3257 + $0xf8] sm:$0xff]
        %v4238 = vld [vmem:[%s3257 + $0x108] sm:$0xff]
        %v4239 = vld [vmem:[%s3257 + $0x110] sm:$0xff]
        %v4240 = vld [vmem:[%s3257 + $0x120] sm:$0xff]
        %v4241 = vld [vmem:[%s3257 + $0x128] sm:$0xff]
        %v4242 = vld [vmem:[%s3257 + $0x138] sm:$0xff]
        %v4243 = vld [vmem:[%s3257 + $0x140] sm:$0xff]
        %v4244 = vld [vmem:[%s3257 + $0x150] sm:$0xff]
        %v4245 = vld [vmem:[%s3257 + $0x158] sm:$0xff]
        %v4246 = vld [vmem:[%s3257 + $0x168] sm:$0xff]
        %v4247 = vld [vmem:[%s3257 + $0x170] sm:$0xff]
        %v4248 = vpack.c.bf16 %v4217, %v4216
        %v4249 = vpack.c.bf16 %v4219, %v4218
        %v4250 = vpack.c.bf16 %v4221, %v4220
        %v4251 = vpack.c.bf16 %v4223, %v4222
        %v4252 = vpack.c.bf16 %v4225, %v4224
        %v4253 = vpack.c.bf16 %v4227, %v4226
        %v4254 = vpack.c.bf16 %v4229, %v4228
        %v4255 = vpack.c.bf16 %v4231, %v4230
        %v4256 = vpack.c.bf16 %v4233, %v4232
        %v4257 = vpack.c.bf16 %v4235, %v4234
        %v4258 = vpack.c.bf16 %v4237, %v4236
        %v4259 = vpack.c.bf16 %v4239, %v4238
        %v4260 = vpack.c.bf16 %v4241, %v4240
        %v4261 = vpack.c.bf16 %v4243, %v4242
        %v4262 = vpack.c.bf16 %v4245, %v4244
        %v4263 = vpack.c.bf16 %v4247, %v4246
        %s4264 = scalar_lea.vmem %s3, 96
        %v4265 = vld [vmem:[%s4264] sm:$0xf]
        %v4266 = vld [vmem:[%s4264 + $0x4] sm:$0xf]
        %v4267 = vld [vmem:[%s4264 + $0x8] sm:$0xf]
        %v4268 = vld [vmem:[%s4264 + $0xc] sm:$0xf]
        %v4269 = vld [vmem:[%s4264 + $0x10] sm:$0xf]
        %v4270 = vld [vmem:[%s4264 + $0x14] sm:$0xf]
        %v4271 = vld [vmem:[%s4264 + $0x18] sm:$0xf]
        %v4272 = vld [vmem:[%s4264 + $0x1c] sm:$0xf]
        %v4281 = vunpack.c.l.b16 %v4265
        %v4282 = vunpack.c.l.b16 %v4266
        %v4283 = vunpack.c.l.b16 %v4267
        %v4284 = vunpack.c.l.b16 %v4268
        %v4285 = vunpack.c.l.b16 %v4269
        %v4286 = vunpack.c.l.b16 %v4270
        %v4287 = vunpack.c.l.b16 %v4271
        %v4288 = vunpack.c.l.b16 %v4272
        %v4289 = vpack.c.b16 %v4282, %v4281
        %v4290 = vpack.c.b16 %v4284, %v4283
        %v4291 = vpack.c.b16 %v4286, %v4285
        %v4292 = vpack.c.b16 %v4288, %v4287
        %v4298 = vsel %vm3258, %v4248, 0
        %v4301 = vsel %vm3258, %v4249, 0
        %v4304 = vsel %vm3258, %v4250, 0
        %v4307 = vsel %vm3258, %v4251, 0
        %v4310 = vsel %vm3258, %v4252, 0
        %v4313 = vsel %vm3258, %v4253, 0
        %v4316 = vsel %vm3258, %v4254, 0
        %v4319 = vsel %vm3258, %v4255, 0
        %v4322 = vsel %vm3258, %v4256, 0
        %v4325 = vsel %vm3258, %v4257, 0
        %v4328 = vsel %vm3258, %v4258, 0
        %v4331 = vsel %vm3258, %v4259, 0
        %v4334 = vsel %vm3258, %v4260, 0
        %v4337 = vsel %vm3258, %v4261, 0
        %v4340 = vsel %vm3258, %v4262, 0
        %v4343 = vsel %vm3258, %v4263, 0
        %4345 = vmatprep.subr.bf16.mxu0 0
        %4346 = vmatpush1.bf16.msra.mxu0 %v4289
        %4347 = vmatprep.subr.bf16.mxu0 0
        %4348 = vmatpush1.bf16.msra.mxu0 %v4290
        %4349 = vmatprep.subr.bf16.mxu0 0
        %4350 = vmatpush1.bf16.msra.mxu0 %v4291
        %4351 = vmatprep.subr.bf16.mxu0 0
        %4352 = vmatpush1.bf16.msra.mxu0 %v4292
        %4353 = vmatprep.subr.bf16.mxu0 0
        %4354 = vmatpush1.bf16.msra.mxu0 0
        %4355 = vmatprep.subr.bf16.mxu0 0
        %4356 = vmatpush1.bf16.msra.mxu0 0
        %4357 = vmatprep.subr.bf16.mxu0 0
        %4358 = vmatpush1.bf16.msra.mxu0 0
        %4359 = vmatprep.subr.bf16.mxu0 0
        %4360 = vmatpush1.bf16.msra.mxu0 0
        %4361 = vmatprep.subr.bf16.mxu0 0
        %4362 = vmatpush1.bf16.msra.mxu0 0
        %4363 = vmatprep.subr.bf16.mxu0 0
        %4364 = vmatpush1.bf16.msra.mxu0 0
        %4365 = vmatprep.subr.bf16.mxu0 0
        %4366 = vmatpush1.bf16.msra.mxu0 0
        %4367 = vmatprep.subr.bf16.mxu0 0
        %4368 = vmatpush1.bf16.msra.mxu0 0
        %4369 = vmatprep.subr.bf16.mxu0 0
        %4370 = vmatpush1.bf16.msra.mxu0 0
        %4371 = vmatprep.subr.bf16.mxu0 0
        %4372 = vmatpush1.bf16.msra.mxu0 0
        %4373 = vmatprep.subr.bf16.mxu0 0
        %4374 = vmatpush1.bf16.msra.mxu0 0
        %4375 = vmatprep.subr.bf16.mxu0 0
        %4376 = vmatpush1.bf16.msra.mxu0 0
        %4377 = vmatprep.mubr.bf16.mxu0 0
        %4378 = vmatmul.mubr.bf16.gmra.mrb[0].mxu0 %v4298
        %v4379 = vpop.f32.mrb[0].mxu0
        %v4380 = vadd.f32 0.0, %v4379
        %v4381 = vpop.f32.mrb[0].mxu0
        %v4382 = vpop.f32.mrb[0].mxu0
        %v4383 = vadd.f32 0.0, %v4382
        %v4384 = vpop.f32.mrb[0].mxu0
        %4385 = vmatprep.mubr.bf16.mxu0 0
        %4386 = vmatmul.mubr.bf16.gmra.mrb[0].mxu0 %v4301
        %v4387 = vpop.f32.mrb[0].mxu0
        %v4388 = vadd.f32 0.0, %v4387
        %v4389 = vpop.f32.mrb[0].mxu0
        %v4390 = vpop.f32.mrb[0].mxu0
        %v4391 = vadd.f32 0.0, %v4390
        %v4392 = vpop.f32.mrb[0].mxu0
        %4393 = vmatprep.mubr.bf16.mxu0 0
        %4394 = vmatmul.mubr.bf16.gmra.mrb[0].mxu0 %v4304
        %v4395 = vpop.f32.mrb[0].mxu0
        %v4396 = vadd.f32 0.0, %v4395
        %v4397 = vpop.f32.mrb[0].mxu0
        %v4398 = vpop.f32.mrb[0].mxu0
        %v4399 = vadd.f32 0.0, %v4398
        %v4400 = vpop.f32.mrb[0].mxu0
        %4401 = vmatprep.mubr.bf16.mxu0 0
        %4402 = vmatmul.mubr.bf16.gmra.mrb[0].mxu0 %v4307
        %v4403 = vpop.f32.mrb[0].mxu0
        %v4404 = vadd.f32 0.0, %v4403
        %v4405 = vpop.f32.mrb[0].mxu0
        %v4406 = vpop.f32.mrb[0].mxu0
        %v4407 = vadd.f32 0.0, %v4406
        %v4408 = vpop.f32.mrb[0].mxu0
        %4409 = vmatprep.mubr.bf16.mxu0 0
        %4410 = vmatmul.mubr.bf16.gmra.mrb[0].mxu0 %v4310
        %v4411 = vpop.f32.mrb[0].mxu0
        %v4412 = vadd.f32 0.0, %v4411
        %v4413 = vpop.f32.mrb[0].mxu0
        %v4414 = vpop.f32.mrb[0].mxu0
        %v4415 = vadd.f32 0.0, %v4414
        %v4416 = vpop.f32.mrb[0].mxu0
        %4417 = vmatprep.mubr.bf16.mxu0 0
        %4418 = vmatmul.mubr.bf16.gmra.mrb[0].mxu0 %v4313
        %v4419 = vpop.f32.mrb[0].mxu0
        %v4420 = vadd.f32 0.0, %v4419
        %v4421 = vpop.f32.mrb[0].mxu0
        %v4422 = vpop.f32.mrb[0].mxu0
        %v4423 = vadd.f32 0.0, %v4422
        %v4424 = vpop.f32.mrb[0].mxu0
        %4425 = vmatprep.mubr.bf16.mxu0 0
        %4426 = vmatmul.mubr.bf16.gmra.mrb[0].mxu0 %v4316
        %v4427 = vpop.f32.mrb[0].mxu0
        %v4428 = vadd.f32 0.0, %v4427
        %v4429 = vpop.f32.mrb[0].mxu0
        %v4430 = vpop.f32.mrb[0].mxu0
        %v4431 = vadd.f32 0.0, %v4430
        %v4432 = vpop.f32.mrb[0].mxu0
        %4433 = vmatprep.mubr.bf16.mxu0 0
        %4434 = vmatmul.mubr.bf16.gmra.mrb[0].mxu0 %v4319
        %v4435 = vpop.f32.mrb[0].mxu0
        %v4436 = vadd.f32 0.0, %v4435
        %v4437 = vpop.f32.mrb[0].mxu0
        %v4438 = vpop.f32.mrb[0].mxu0
        %v4439 = vadd.f32 0.0, %v4438
        %v4440 = vpop.f32.mrb[0].mxu0
        %4441 = vmatprep.mubr.bf16.mxu0 0
        %4442 = vmatmul.mubr.bf16.gmra.mrb[0].mxu0 %v4322
        %v4443 = vpop.f32.mrb[0].mxu0
        %v4444 = vadd.f32 0.0, %v4443
        %v4445 = vpop.f32.mrb[0].mxu0
        %v4446 = vpop.f32.mrb[0].mxu0
        %v4447 = vadd.f32 0.0, %v4446
        %v4448 = vpop.f32.mrb[0].mxu0
        %4449 = vmatprep.mubr.bf16.mxu0 0
        %4450 = vmatmul.mubr.bf16.gmra.mrb[0].mxu0 %v4325
        %v4451 = vpop.f32.mrb[0].mxu0
        %v4452 = vadd.f32 0.0, %v4451
        %v4453 = vpop.f32.mrb[0].mxu0
        %v4454 = vpop.f32.mrb[0].mxu0
        %v4455 = vadd.f32 0.0, %v4454
        %v4456 = vpop.f32.mrb[0].mxu0
        %4457 = vmatprep.mubr.bf16.mxu0 0
        %4458 = vmatmul.mubr.bf16.gmra.mrb[0].mxu0 %v4328
        %v4459 = vpop.f32.mrb[0].mxu0
        %v4460 = vadd.f32 0.0, %v4459
        %v4461 = vpop.f32.mrb[0].mxu0
        %v4462 = vpop.f32.mrb[0].mxu0
        %v4463 = vadd.f32 0.0, %v4462
        %v4464 = vpop.f32.mrb[0].mxu0
        %4465 = vmatprep.mubr.bf16.mxu0 0
        %4466 = vmatmul.mubr.bf16.gmra.mrb[0].mxu0 %v4331
        %v4467 = vpop.f32.mrb[0].mxu0
        %v4468 = vadd.f32 0.0, %v4467
        %v4469 = vpop.f32.mrb[0].mxu0
        %v4470 = vpop.f32.mrb[0].mxu0
        %v4471 = vadd.f32 0.0, %v4470
        %v4472 = vpop.f32.mrb[0].mxu0
        %4473 = vmatprep.mubr.bf16.mxu0 0
        %4474 = vmatmul.mubr.bf16.gmra.mrb[0].mxu0 %v4334
        %v4475 = vpop.f32.mrb[0].mxu0
        %v4476 = vadd.f32 0.0, %v4475
        %v4477 = vpop.f32.mrb[0].mxu0
        %v4478 = vpop.f32.mrb[0].mxu0
        %v4479 = vadd.f32 0.0, %v4478
        %v4480 = vpop.f32.mrb[0].mxu0
        %4481 = vmatprep.mubr.bf16.mxu0 0
        %4482 = vmatmul.mubr.bf16.gmra.mrb[0].mxu0 %v4337
        %v4483 = vpop.f32.mrb[0].mxu0
        %v4484 = vadd.f32 0.0, %v4483
        %v4485 = vpop.f32.mrb[0].mxu0
        %v4486 = vpop.f32.mrb[0].mxu0
        %v4487 = vadd.f32 0.0, %v4486
        %v4488 = vpop.f32.mrb[0].mxu0
        %4489 = vmatprep.mubr.bf16.mxu0 0
        %4490 = vmatmul.mubr.bf16.gmra.mrb[0].mxu0 %v4340
        %v4491 = vpop.f32.mrb[0].mxu0
        %v4492 = vadd.f32 0.0, %v4491
        %v4493 = vpop.f32.mrb[0].mxu0
        %v4494 = vpop.f32.mrb[0].mxu0
        %v4495 = vadd.f32 0.0, %v4494
        %v4496 = vpop.f32.mrb[0].mxu0
        %4497 = vmatprep.mubr.bf16.mxu0 0
        %4498 = vmatmul.mubr.bf16.gmra.mrb[0].mxu0 %v4343
        %v4499 = vpop.f32.mrb[0].mxu0
        %v4500 = vadd.f32 0.0, %v4499
        %v4501 = vpop.f32.mrb[0].mxu0
        %v4502 = vpop.f32.mrb[0].mxu0
        %v4503 = vadd.f32 0.0, %v4502
        %v4504 = vpop.f32.mrb[0].mxu0
        %4505 = vdwg.mxu0
        %v4506 = vadd.f32 %v4184, %v4380
        %v4507 = vadd.f32 %v4185, %v4383
        %v4508 = vadd.f32 %v4186, %v4388
        %v4509 = vadd.f32 %v4187, %v4391
        %v4510 = vadd.f32 %v4188, %v4396
        %v4511 = vadd.f32 %v4189, %v4399
        %v4512 = vadd.f32 %v4190, %v4404
        %v4513 = vadd.f32 %v4191, %v4407
        %v4514 = vadd.f32 %v4192, %v4412
        %v4515 = vadd.f32 %v4193, %v4415
        %v4516 = vadd.f32 %v4194, %v4420
        %v4517 = vadd.f32 %v4195, %v4423
        %v4518 = vadd.f32 %v4196, %v4428
        %v4519 = vadd.f32 %v4197, %v4431
        %v4520 = vadd.f32 %v4198, %v4436
        %v4521 = vadd.f32 %v4199, %v4439
        %v4522 = vadd.f32 %v4200, %v4444
        %v4523 = vadd.f32 %v4201, %v4447
        %v4524 = vadd.f32 %v4202, %v4452
        %v4525 = vadd.f32 %v4203, %v4455
        %v4526 = vadd.f32 %v4204, %v4460
        %v4527 = vadd.f32 %v4205, %v4463
        %v4528 = vadd.f32 %v4206, %v4468
        %v4529 = vadd.f32 %v4207, %v4471
        %v4530 = vadd.f32 %v4208, %v4476
        %v4531 = vadd.f32 %v4209, %v4479
        %v4532 = vadd.f32 %v4210, %v4484
        %v4533 = vadd.f32 %v4211, %v4487
        %v4534 = vadd.f32 %v4212, %v4492
        %v4535 = vadd.f32 %v4213, %v4495
        %v4536 = vadd.f32 %v4214, %v4500
        %v4537 = vadd.f32 %v4215, %v4503
        %v4538 = vld [vmem:[%s3257 + $0x1] sm:$0xff]
        %v4539 = vld [vmem:[%s3257 + $0x9] sm:$0xff]
        %v4540 = vld [vmem:[%s3257 + $0x19] sm:$0xff]
        %v4541 = vld [vmem:[%s3257 + $0x21] sm:$0xff]
        %v4542 = vld [vmem:[%s3257 + $0x31] sm:$0xff]
        %v4543 = vld [vmem:[%s3257 + $0x39] sm:$0xff]
        %v4544 = vld [vmem:[%s3257 + $0x49] sm:$0xff]
        %v4545 = vld [vmem:[%s3257 + $0x51] sm:$0xff]
        %v4546 = vld [vmem:[%s3257 + $0x61] sm:$0xff]
        %v4547 = vld [vmem:[%s3257 + $0x69] sm:$0xff]
        %v4548 = vld [vmem:[%s3257 + $0x79] sm:$0xff]
        %v4549 = vld [vmem:[%s3257 + $0x81] sm:$0xff]
        %v4550 = vld [vmem:[%s3257 + $0x91] sm:$0xff]
        %v4551 = vld [vmem:[%s3257 + $0x99] sm:$0xff]
        %v4552 = vld [vmem:[%s3257 + $0xa9] sm:$0xff]
        %v4553 = vld [vmem:[%s3257 + $0xb1] sm:$0xff]
        %v4554 = vld [vmem:[%s3257 + $0xc1] sm:$0xff]
        %v4555 = vld [vmem:[%s3257 + $0xc9] sm:$0xff]
        %v4556 = vld [vmem:[%s3257 + $0xd9] sm:$0xff]
        %v4557 = vld [vmem:[%s3257 + $0xe1] sm:$0xff]
        %v4558 = vld [vmem:[%s3257 + $0xf1] sm:$0xff]
        %v4559 = vld [vmem:[%s3257 + $0xf9] sm:$0xff]
        %v4560 = vld [vmem:[%s3257 + $0x109] sm:$0xff]
        %v4561 = vld [vmem:[%s3257 + $0x111] sm:$0xff]
        %v4562 = vld [vmem:[%s3257 + $0x121] sm:$0xff]
        %v4563 = vld [vmem:[%s3257 + $0x129] sm:$0xff]
        %v4564 = vld [vmem:[%s3257 + $0x139] sm:$0xff]
        %v4565 = vld [vmem:[%s3257 + $0x141] sm:$0xff]
        %v4566 = vld [vmem:[%s3257 + $0x151] sm:$0xff]
        %v4567 = vld [vmem:[%s3257 + $0x159] sm:$0xff]
        %v4568 = vld [vmem:[%s3257 + $0x169] sm:$0xff]
        %v4569 = vld [vmem:[%s3257 + $0x171] sm:$0xff]
        %v4570 = vpack.c.bf16 %v4539, %v4538
        %v4571 = vpack.c.bf16 %v4541, %v4540
        %v4572 = vpack.c.bf16 %v4543, %v4542
        %v4573 = vpack.c.bf16 %v4545, %v4544
        %v4574 = vpack.c.bf16 %v4547, %v4546
        %v4575 = vpack.c.bf16 %v4549, %v4548
        %v4576 = vpack.c.bf16 %v4551, %v4550
        %v4577 = vpack.c.bf16 %v4553, %v4552
        %v4578 = vpack.c.bf16 %v4555, %v4554
        %v4579 = vpack.c.bf16 %v4557, %v4556
        %v4580 = vpack.c.bf16 %v4559, %v4558
        %v4581 = vpack.c.bf16 %v4561, %v4560
        %v4582 = vpack.c.bf16 %v4563, %v4562
        %v4583 = vpack.c.bf16 %v4565, %v4564
        %v4584 = vpack.c.bf16 %v4567, %v4566
        %v4585 = vpack.c.bf16 %v4569, %v4568
        %s4586 = scalar_lea.vmem %s3, 128
        %v4587 = vld [vmem:[%s4586] sm:$0xf]
        %v4588 = vld [vmem:[%s4586 + $0x4] sm:$0xf]
        %v4589 = vld [vmem:[%s4586 + $0x8] sm:$0xf]
        %v4590 = vld [vmem:[%s4586 + $0xc] sm:$0xf]
        %v4591 = vld [vmem:[%s4586 + $0x10] sm:$0xf]
        %v4592 = vld [vmem:[%s4586 + $0x14] sm:$0xf]
        %v4593 = vld [vmem:[%s4586 + $0x18] sm:$0xf]
        %v4594 = vld [vmem:[%s4586 + $0x1c] sm:$0xf]
        %v4603 = vunpack.c.l.b16 %v4587
        %v4604 = vunpack.c.l.b16 %v4588
        %v4605 = vunpack.c.l.b16 %v4589
        %v4606 = vunpack.c.l.b16 %v4590
        %v4607 = vunpack.c.l.b16 %v4591
        %v4608 = vunpack.c.l.b16 %v4592
        %v4609 = vunpack.c.l.b16 %v4593
        %v4610 = vunpack.c.l.b16 %v4594
        %v4611 = vpack.c.b16 %v4604, %v4603
        %v4612 = vpack.c.b16 %v4606, %v4605
        %v4613 = vpack.c.b16 %v4608, %v4607
        %v4614 = vpack.c.b16 %v4610, %v4609
        %v4620 = vsel %vm3258, %v4570, 0
        %v4623 = vsel %vm3258, %v4571, 0
        %v4626 = vsel %vm3258, %v4572, 0
        %v4629 = vsel %vm3258, %v4573, 0
        %v4632 = vsel %vm3258, %v4574, 0
        %v4635 = vsel %vm3258, %v4575, 0
        %v4638 = vsel %vm3258, %v4576, 0
        %v4641 = vsel %vm3258, %v4577, 0
        %v4644 = vsel %vm3258, %v4578, 0
        %v4647 = vsel %vm3258, %v4579, 0
        %v4650 = vsel %vm3258, %v4580, 0
        %v4653 = vsel %vm3258, %v4581, 0
        %v4656 = vsel %vm3258, %v4582, 0
        %v4659 = vsel %vm3258, %v4583, 0
        %v4662 = vsel %vm3258, %v4584, 0
        %v4665 = vsel %vm3258, %v4585, 0
        %4667 = vmatprep.subr.bf16.mxu0 0
        %4668 = vmatpush1.bf16.msra.mxu0 %v4611
        %4669 = vmatprep.subr.bf16.mxu0 0
        %4670 = vmatpush1.bf16.msra.mxu0 %v4612
        %4671 = vmatprep.subr.bf16.mxu0 0
        %4672 = vmatpush1.bf16.msra.mxu0 %v4613
        %4673 = vmatprep.subr.bf16.mxu0 0
        %4674 = vmatpush1.bf16.msra.mxu0 %v4614
        %4675 = vmatprep.subr.bf16.mxu0 0
        %4676 = vmatpush1.bf16.msra.mxu0 0
        %4677 = vmatprep.subr.bf16.mxu0 0
        %4678 = vmatpush1.bf16.msra.mxu0 0
        %4679 = vmatprep.subr.bf16.mxu0 0
        %4680 = vmatpush1.bf16.msra.mxu0 0
        %4681 = vmatprep.subr.bf16.mxu0 0
        %4682 = vmatpush1.bf16.msra.mxu0 0
        %4683 = vmatprep.subr.bf16.mxu0 0
        %4684 = vmatpush1.bf16.msra.mxu0 0
        %4685 = vmatprep.subr.bf16.mxu0 0
        %4686 = vmatpush1.bf16.msra.mxu0 0
        %4687 = vmatprep.subr.bf16.mxu0 0
        %4688 = vmatpush1.bf16.msra.mxu0 0
        %4689 = vmatprep.subr.bf16.mxu0 0
        %4690 = vmatpush1.bf16.msra.mxu0 0
        %4691 = vmatprep.subr.bf16.mxu0 0
        %4692 = vmatpush1.bf16.msra.mxu0 0
        %4693 = vmatprep.subr.bf16.mxu0 0
        %4694 = vmatpush1.bf16.msra.mxu0 0
        %4695 = vmatprep.subr.bf16.mxu0 0
        %4696 = vmatpush1.bf16.msra.mxu0 0
        %4697 = vmatprep.subr.bf16.mxu0 0
        %4698 = vmatpush1.bf16.msra.mxu0 0
        %4699 = vmatprep.mubr.bf16.mxu0 0
        %4700 = vmatmul.mubr.bf16.gmra.mrb[0].mxu0 %v4620
        %v4701 = vpop.f32.mrb[0].mxu0
        %v4702 = vadd.f32 0.0, %v4701
        %v4703 = vpop.f32.mrb[0].mxu0
        %v4704 = vpop.f32.mrb[0].mxu0
        %v4705 = vadd.f32 0.0, %v4704
        %v4706 = vpop.f32.mrb[0].mxu0
        %4707 = vmatprep.mubr.bf16.mxu0 0
        %4708 = vmatmul.mubr.bf16.gmra.mrb[0].mxu0 %v4623
        %v4709 = vpop.f32.mrb[0].mxu0
        %v4710 = vadd.f32 0.0, %v4709
        %v4711 = vpop.f32.mrb[0].mxu0
        %v4712 = vpop.f32.mrb[0].mxu0
        %v4713 = vadd.f32 0.0, %v4712
        %v4714 = vpop.f32.mrb[0].mxu0
        %4715 = vmatprep.mubr.bf16.mxu0 0
        %4716 = vmatmul.mubr.bf16.gmra.mrb[0].mxu0 %v4626
        %v4717 = vpop.f32.mrb[0].mxu0
        %v4718 = vadd.f32 0.0, %v4717
        %v4719 = vpop.f32.mrb[0].mxu0
        %v4720 = vpop.f32.mrb[0].mxu0
        %v4721 = vadd.f32 0.0, %v4720
        %v4722 = vpop.f32.mrb[0].mxu0
        %4723 = vmatprep.mubr.bf16.mxu0 0
        %4724 = vmatmul.mubr.bf16.gmra.mrb[0].mxu0 %v4629
        %v4725 = vpop.f32.mrb[0].mxu0
        %v4726 = vadd.f32 0.0, %v4725
        %v4727 = vpop.f32.mrb[0].mxu0
        %v4728 = vpop.f32.mrb[0].mxu0
        %v4729 = vadd.f32 0.0, %v4728
        %v4730 = vpop.f32.mrb[0].mxu0
        %4731 = vmatprep.mubr.bf16.mxu0 0
        %4732 = vmatmul.mubr.bf16.gmra.mrb[0].mxu0 %v4632
        %v4733 = vpop.f32.mrb[0].mxu0
        %v4734 = vadd.f32 0.0, %v4733
        %v4735 = vpop.f32.mrb[0].mxu0
        %v4736 = vpop.f32.mrb[0].mxu0
        %v4737 = vadd.f32 0.0, %v4736
        %v4738 = vpop.f32.mrb[0].mxu0
        %4739 = vmatprep.mubr.bf16.mxu0 0
        %4740 = vmatmul.mubr.bf16.gmra.mrb[0].mxu0 %v4635
        %v4741 = vpop.f32.mrb[0].mxu0
        %v4742 = vadd.f32 0.0, %v4741
        %v4743 = vpop.f32.mrb[0].mxu0
        %v4744 = vpop.f32.mrb[0].mxu0
        %v4745 = vadd.f32 0.0, %v4744
        %v4746 = vpop.f32.mrb[0].mxu0
        %4747 = vmatprep.mubr.bf16.mxu0 0
        %4748 = vmatmul.mubr.bf16.gmra.mrb[0].mxu0 %v4638
        %v4749 = vpop.f32.mrb[0].mxu0
        %v4750 = vadd.f32 0.0, %v4749
        %v4751 = vpop.f32.mrb[0].mxu0
        %v4752 = vpop.f32.mrb[0].mxu0
        %v4753 = vadd.f32 0.0, %v4752
        %v4754 = vpop.f32.mrb[0].mxu0
        %4755 = vmatprep.mubr.bf16.mxu0 0
        %4756 = vmatmul.mubr.bf16.gmra.mrb[0].mxu0 %v4641
        %v4757 = vpop.f32.mrb[0].mxu0
        %v4758 = vadd.f32 0.0, %v4757
        %v4759 = vpop.f32.mrb[0].mxu0
        %v4760 = vpop.f32.mrb[0].mxu0
        %v4761 = vadd.f32 0.0, %v4760
        %v4762 = vpop.f32.mrb[0].mxu0
        %4763 = vmatprep.mubr.bf16.mxu0 0
        %4764 = vmatmul.mubr.bf16.gmra.mrb[0].mxu0 %v4644
        %v4765 = vpop.f32.mrb[0].mxu0
        %v4766 = vadd.f32 0.0, %v4765
        %v4767 = vpop.f32.mrb[0].mxu0
        %v4768 = vpop.f32.mrb[0].mxu0
        %v4769 = vadd.f32 0.0, %v4768
        %v4770 = vpop.f32.mrb[0].mxu0
        %4771 = vmatprep.mubr.bf16.mxu0 0
        %4772 = vmatmul.mubr.bf16.gmra.mrb[0].mxu0 %v4647
        %v4773 = vpop.f32.mrb[0].mxu0
        %v4774 = vadd.f32 0.0, %v4773
        %v4775 = vpop.f32.mrb[0].mxu0
        %v4776 = vpop.f32.mrb[0].mxu0
        %v4777 = vadd.f32 0.0, %v4776
        %v4778 = vpop.f32.mrb[0].mxu0
        %4779 = vmatprep.mubr.bf16.mxu0 0
        %4780 = vmatmul.mubr.bf16.gmra.mrb[0].mxu0 %v4650
        %v4781 = vpop.f32.mrb[0].mxu0
        %v4782 = vadd.f32 0.0, %v4781
        %v4783 = vpop.f32.mrb[0].mxu0
        %v4784 = vpop.f32.mrb[0].mxu0
        %v4785 = vadd.f32 0.0, %v4784
        %v4786 = vpop.f32.mrb[0].mxu0
        %4787 = vmatprep.mubr.bf16.mxu0 0
        %4788 = vmatmul.mubr.bf16.gmra.mrb[0].mxu0 %v4653
        %v4789 = vpop.f32.mrb[0].mxu0
        %v4790 = vadd.f32 0.0, %v4789
        %v4791 = vpop.f32.mrb[0].mxu0
        %v4792 = vpop.f32.mrb[0].mxu0
        %v4793 = vadd.f32 0.0, %v4792
        %v4794 = vpop.f32.mrb[0].mxu0
        %4795 = vmatprep.mubr.bf16.mxu0 0
        %4796 = vmatmul.mubr.bf16.gmra.mrb[0].mxu0 %v4656
        %v4797 = vpop.f32.mrb[0].mxu0
        %v4798 = vadd.f32 0.0, %v4797
        %v4799 = vpop.f32.mrb[0].mxu0
        %v4800 = vpop.f32.mrb[0].mxu0
        %v4801 = vadd.f32 0.0, %v4800
        %v4802 = vpop.f32.mrb[0].mxu0
        %4803 = vmatprep.mubr.bf16.mxu0 0
        %4804 = vmatmul.mubr.bf16.gmra.mrb[0].mxu0 %v4659
        %v4805 = vpop.f32.mrb[0].mxu0
        %v4806 = vadd.f32 0.0, %v4805
        %v4807 = vpop.f32.mrb[0].mxu0
        %v4808 = vpop.f32.mrb[0].mxu0
        %v4809 = vadd.f32 0.0, %v4808
        %v4810 = vpop.f32.mrb[0].mxu0
        %4811 = vmatprep.mubr.bf16.mxu0 0
        %4812 = vmatmul.mubr.bf16.gmra.mrb[0].mxu0 %v4662
        %v4813 = vpop.f32.mrb[0].mxu0
        %v4814 = vadd.f32 0.0, %v4813
        %v4815 = vpop.f32.mrb[0].mxu0
        %v4816 = vpop.f32.mrb[0].mxu0
        %v4817 = vadd.f32 0.0, %v4816
        %v4818 = vpop.f32.mrb[0].mxu0
        %4819 = vmatprep.mubr.bf16.mxu0 0
        %4820 = vmatmul.mubr.bf16.gmra.mrb[0].mxu0 %v4665
        %v4821 = vpop.f32.mrb[0].mxu0
        %v4822 = vadd.f32 0.0, %v4821
        %v4823 = vpop.f32.mrb[0].mxu0
        %v4824 = vpop.f32.mrb[0].mxu0
        %v4825 = vadd.f32 0.0, %v4824
        %v4826 = vpop.f32.mrb[0].mxu0
        %4827 = vdwg.mxu0
        %v4828 = vadd.f32 %v4506, %v4702
        %v4829 = vadd.f32 %v4507, %v4705
        %v4830 = vadd.f32 %v4508, %v4710
        %v4831 = vadd.f32 %v4509, %v4713
        %v4832 = vadd.f32 %v4510, %v4718
        %v4833 = vadd.f32 %v4511, %v4721
        %v4834 = vadd.f32 %v4512, %v4726
        %v4835 = vadd.f32 %v4513, %v4729
        %v4836 = vadd.f32 %v4514, %v4734
        %v4837 = vadd.f32 %v4515, %v4737
        %v4838 = vadd.f32 %v4516, %v4742
        %v4839 = vadd.f32 %v4517, %v4745
        %v4840 = vadd.f32 %v4518, %v4750
        %v4841 = vadd.f32 %v4519, %v4753
        %v4842 = vadd.f32 %v4520, %v4758
        %v4843 = vadd.f32 %v4521, %v4761
        %v4844 = vadd.f32 %v4522, %v4766
        %v4845 = vadd.f32 %v4523, %v4769
        %v4846 = vadd.f32 %v4524, %v4774
        %v4847 = vadd.f32 %v4525, %v4777
        %v4848 = vadd.f32 %v4526, %v4782
        %v4849 = vadd.f32 %v4527, %v4785
        %v4850 = vadd.f32 %v4528, %v4790
        %v4851 = vadd.f32 %v4529, %v4793
        %v4852 = vadd.f32 %v4530, %v4798
        %v4853 = vadd.f32 %v4531, %v4801
        %v4854 = vadd.f32 %v4532, %v4806
        %v4855 = vadd.f32 %v4533, %v4809
        %v4856 = vadd.f32 %v4534, %v4814
        %v4857 = vadd.f32 %v4535, %v4817
        %v4858 = vadd.f32 %v4536, %v4822
        %v4859 = vadd.f32 %v4537, %v4825
        %v4860 = vld [vmem:[%s3257 + $0x2] sm:$0xff]
        %v4861 = vld [vmem:[%s3257 + $0xa] sm:$0xff]
        %v4862 = vld [vmem:[%s3257 + $0x1a] sm:$0xff]
        %v4863 = vld [vmem:[%s3257 + $0x22] sm:$0xff]
        %v4864 = vld [vmem:[%s3257 + $0x32] sm:$0xff]
        %v4865 = vld [vmem:[%s3257 + $0x3a] sm:$0xff]
        %v4866 = vld [vmem:[%s3257 + $0x4a] sm:$0xff]
        %v4867 = vld [vmem:[%s3257 + $0x52] sm:$0xff]
        %v4868 = vld [vmem:[%s3257 + $0x62] sm:$0xff]
        %v4869 = vld [vmem:[%s3257 + $0x6a] sm:$0xff]
        %v4870 = vld [vmem:[%s3257 + $0x7a] sm:$0xff]
        %v4871 = vld [vmem:[%s3257 + $0x82] sm:$0xff]
        %v4872 = vld [vmem:[%s3257 + $0x92] sm:$0xff]
        %v4873 = vld [vmem:[%s3257 + $0x9a] sm:$0xff]
        %v4874 = vld [vmem:[%s3257 + $0xaa] sm:$0xff]
        %v4875 = vld [vmem:[%s3257 + $0xb2] sm:$0xff]
        %v4876 = vld [vmem:[%s3257 + $0xc2] sm:$0xff]
        %v4877 = vld [vmem:[%s3257 + $0xca] sm:$0xff]
        %v4878 = vld [vmem:[%s3257 + $0xda] sm:$0xff]
        %v4879 = vld [vmem:[%s3257 + $0xe2] sm:$0xff]
        %v4880 = vld [vmem:[%s3257 + $0xf2] sm:$0xff]
        %v4881 = vld [vmem:[%s3257 + $0xfa] sm:$0xff]
        %v4882 = vld [vmem:[%s3257 + $0x10a] sm:$0xff]
        %v4883 = vld [vmem:[%s3257 + $0x112] sm:$0xff]
        %v4884 = vld [vmem:[%s3257 + $0x122] sm:$0xff]
        %v4885 = vld [vmem:[%s3257 + $0x12a] sm:$0xff]
        %v4886 = vld [vmem:[%s3257 + $0x13a] sm:$0xff]
        %v4887 = vld [vmem:[%s3257 + $0x142] sm:$0xff]
        %v4888 = vld [vmem:[%s3257 + $0x152] sm:$0xff]
        %v4889 = vld [vmem:[%s3257 + $0x15a] sm:$0xff]
        %v4890 = vld [vmem:[%s3257 + $0x16a] sm:$0xff]
        %v4891 = vld [vmem:[%s3257 + $0x172] sm:$0xff]
        %v4892 = vpack.c.bf16 %v4861, %v4860
        %v4893 = vpack.c.bf16 %v4863, %v4862
        %v4894 = vpack.c.bf16 %v4865, %v4864
        %v4895 = vpack.c.bf16 %v4867, %v4866
        %v4896 = vpack.c.bf16 %v4869, %v4868
        %v4897 = vpack.c.bf16 %v4871, %v4870
        %v4898 = vpack.c.bf16 %v4873, %v4872
        %v4899 = vpack.c.bf16 %v4875, %v4874
        %v4900 = vpack.c.bf16 %v4877, %v4876
        %v4901 = vpack.c.bf16 %v4879, %v4878
        %v4902 = vpack.c.bf16 %v4881, %v4880
        %v4903 = vpack.c.bf16 %v4883, %v4882
        %v4904 = vpack.c.bf16 %v4885, %v4884
        %v4905 = vpack.c.bf16 %v4887, %v4886
        %v4906 = vpack.c.bf16 %v4889, %v4888
        %v4907 = vpack.c.bf16 %v4891, %v4890
        %s4908 = scalar_lea.vmem %s3, 160
        %v4909 = vld [vmem:[%s4908] sm:$0xf]
        %v4910 = vld [vmem:[%s4908 + $0x4] sm:$0xf]
        %v4911 = vld [vmem:[%s4908 + $0x8] sm:$0xf]
        %v4912 = vld [vmem:[%s4908 + $0xc] sm:$0xf]
        %v4913 = vld [vmem:[%s4908 + $0x10] sm:$0xf]
        %v4914 = vld [vmem:[%s4908 + $0x14] sm:$0xf]
        %v4915 = vld [vmem:[%s4908 + $0x18] sm:$0xf]
        %v4916 = vld [vmem:[%s4908 + $0x1c] sm:$0xf]
        %v4925 = vunpack.c.l.b16 %v4909
        %v4926 = vunpack.c.l.b16 %v4910
        %v4927 = vunpack.c.l.b16 %v4911
        %v4928 = vunpack.c.l.b16 %v4912
        %v4929 = vunpack.c.l.b16 %v4913
        %v4930 = vunpack.c.l.b16 %v4914
        %v4931 = vunpack.c.l.b16 %v4915
        %v4932 = vunpack.c.l.b16 %v4916
        %v4933 = vpack.c.b16 %v4926, %v4925
        %v4934 = vpack.c.b16 %v4928, %v4927
        %v4935 = vpack.c.b16 %v4930, %v4929
        %v4936 = vpack.c.b16 %v4932, %v4931
        %v4942 = vsel %vm3258, %v4892, 0
        %v4945 = vsel %vm3258, %v4893, 0
        %v4948 = vsel %vm3258, %v4894, 0
        %v4951 = vsel %vm3258, %v4895, 0
        %v4954 = vsel %vm3258, %v4896, 0
        %v4957 = vsel %vm3258, %v4897, 0
        %v4960 = vsel %vm3258, %v4898, 0
        %v4963 = vsel %vm3258, %v4899, 0
        %v4966 = vsel %vm3258, %v4900, 0
        %v4969 = vsel %vm3258, %v4901, 0
        %v4972 = vsel %vm3258, %v4902, 0
        %v4975 = vsel %vm3258, %v4903, 0
        %v4978 = vsel %vm3258, %v4904, 0
        %v4981 = vsel %vm3258, %v4905, 0
        %v4984 = vsel %vm3258, %v4906, 0
        %v4987 = vsel %vm3258, %v4907, 0
        %4989 = vmatprep.subr.bf16.mxu0 0
        %4990 = vmatpush1.bf16.msra.mxu0 %v4933
        %4991 = vmatprep.subr.bf16.mxu0 0
        %4992 = vmatpush1.bf16.msra.mxu0 %v4934
        %4993 = vmatprep.subr.bf16.mxu0 0
        %4994 = vmatpush1.bf16.msra.mxu0 %v4935
        %4995 = vmatprep.subr.bf16.mxu0 0
        %4996 = vmatpush1.bf16.msra.mxu0 %v4936
        %4997 = vmatprep.subr.bf16.mxu0 0
        %4998 = vmatpush1.bf16.msra.mxu0 0
        %4999 = vmatprep.subr.bf16.mxu0 0
        %5000 = vmatpush1.bf16.msra.mxu0 0
        %5001 = vmatprep.subr.bf16.mxu0 0
        %5002 = vmatpush1.bf16.msra.mxu0 0
        %5003 = vmatprep.subr.bf16.mxu0 0
        %5004 = vmatpush1.bf16.msra.mxu0 0
        %5005 = vmatprep.subr.bf16.mxu0 0
        %5006 = vmatpush1.bf16.msra.mxu0 0
        %5007 = vmatprep.subr.bf16.mxu0 0
        %5008 = vmatpush1.bf16.msra.mxu0 0
        %5009 = vmatprep.subr.bf16.mxu0 0
        %5010 = vmatpush1.bf16.msra.mxu0 0
        %5011 = vmatprep.subr.bf16.mxu0 0
        %5012 = vmatpush1.bf16.msra.mxu0 0
        %5013 = vmatprep.subr.bf16.mxu0 0
        %5014 = vmatpush1.bf16.msra.mxu0 0
        %5015 = vmatprep.subr.bf16.mxu0 0
        %5016 = vmatpush1.bf16.msra.mxu0 0
        %5017 = vmatprep.subr.bf16.mxu0 0
        %5018 = vmatpush1.bf16.msra.mxu0 0
        %5019 = vmatprep.subr.bf16.mxu0 0
        %5020 = vmatpush1.bf16.msra.mxu0 0
        %5021 = vmatprep.mubr.bf16.mxu0 0
        %5022 = vmatmul.mubr.bf16.gmra.mrb[0].mxu0 %v4942
        %v5023 = vpop.f32.mrb[0].mxu0
        %v5024 = vadd.f32 0.0, %v5023
        %v5025 = vpop.f32.mrb[0].mxu0
        %v5026 = vpop.f32.mrb[0].mxu0
        %v5027 = vadd.f32 0.0, %v5026
        %v5028 = vpop.f32.mrb[0].mxu0
        %5029 = vmatprep.mubr.bf16.mxu0 0
        %5030 = vmatmul.mubr.bf16.gmra.mrb[0].mxu0 %v4945
        %v5031 = vpop.f32.mrb[0].mxu0
        %v5032 = vadd.f32 0.0, %v5031
        %v5033 = vpop.f32.mrb[0].mxu0
        %v5034 = vpop.f32.mrb[0].mxu0
        %v5035 = vadd.f32 0.0, %v5034
        %v5036 = vpop.f32.mrb[0].mxu0
        %5037 = vmatprep.mubr.bf16.mxu0 0
        %5038 = vmatmul.mubr.bf16.gmra.mrb[0].mxu0 %v4948
        %v5039 = vpop.f32.mrb[0].mxu0
        %v5040 = vadd.f32 0.0, %v5039
        %v5041 = vpop.f32.mrb[0].mxu0
        %v5042 = vpop.f32.mrb[0].mxu0
        %v5043 = vadd.f32 0.0, %v5042
        %v5044 = vpop.f32.mrb[0].mxu0
        %5045 = vmatprep.mubr.bf16.mxu0 0
        %5046 = vmatmul.mubr.bf16.gmra.mrb[0].mxu0 %v4951
        %v5047 = vpop.f32.mrb[0].mxu0
        %v5048 = vadd.f32 0.0, %v5047
        %v5049 = vpop.f32.mrb[0].mxu0
        %v5050 = vpop.f32.mrb[0].mxu0
        %v5051 = vadd.f32 0.0, %v5050
        %v5052 = vpop.f32.mrb[0].mxu0
        %5053 = vmatprep.mubr.bf16.mxu0 0
        %5054 = vmatmul.mubr.bf16.gmra.mrb[0].mxu0 %v4954
        %v5055 = vpop.f32.mrb[0].mxu0
        %v5056 = vadd.f32 0.0, %v5055
        %v5057 = vpop.f32.mrb[0].mxu0
        %v5058 = vpop.f32.mrb[0].mxu0
        %v5059 = vadd.f32 0.0, %v5058
        %v5060 = vpop.f32.mrb[0].mxu0
        %5061 = vmatprep.mubr.bf16.mxu0 0
        %5062 = vmatmul.mubr.bf16.gmra.mrb[0].mxu0 %v4957
        %v5063 = vpop.f32.mrb[0].mxu0
        %v5064 = vadd.f32 0.0, %v5063
        %v5065 = vpop.f32.mrb[0].mxu0
        %v5066 = vpop.f32.mrb[0].mxu0
        %v5067 = vadd.f32 0.0, %v5066
        %v5068 = vpop.f32.mrb[0].mxu0
        %5069 = vmatprep.mubr.bf16.mxu0 0
        %5070 = vmatmul.mubr.bf16.gmra.mrb[0].mxu0 %v4960
        %v5071 = vpop.f32.mrb[0].mxu0
        %v5072 = vadd.f32 0.0, %v5071
        %v5073 = vpop.f32.mrb[0].mxu0
        %v5074 = vpop.f32.mrb[0].mxu0
        %v5075 = vadd.f32 0.0, %v5074
        %v5076 = vpop.f32.mrb[0].mxu0
        %5077 = vmatprep.mubr.bf16.mxu0 0
        %5078 = vmatmul.mubr.bf16.gmra.mrb[0].mxu0 %v4963
        %v5079 = vpop.f32.mrb[0].mxu0
        %v5080 = vadd.f32 0.0, %v5079
        %v5081 = vpop.f32.mrb[0].mxu0
        %v5082 = vpop.f32.mrb[0].mxu0
        %v5083 = vadd.f32 0.0, %v5082
        %v5084 = vpop.f32.mrb[0].mxu0
        %5085 = vmatprep.mubr.bf16.mxu0 0
        %5086 = vmatmul.mubr.bf16.gmra.mrb[0].mxu0 %v4966
        %v5087 = vpop.f32.mrb[0].mxu0
        %v5088 = vadd.f32 0.0, %v5087
        %v5089 = vpop.f32.mrb[0].mxu0
        %v5090 = vpop.f32.mrb[0].mxu0
        %v5091 = vadd.f32 0.0, %v5090
        %v5092 = vpop.f32.mrb[0].mxu0
        %5093 = vmatprep.mubr.bf16.mxu0 0
        %5094 = vmatmul.mubr.bf16.gmra.mrb[0].mxu0 %v4969
        %v5095 = vpop.f32.mrb[0].mxu0
        %v5096 = vadd.f32 0.0, %v5095
        %v5097 = vpop.f32.mrb[0].mxu0
        %v5098 = vpop.f32.mrb[0].mxu0
        %v5099 = vadd.f32 0.0, %v5098
        %v5100 = vpop.f32.mrb[0].mxu0
        %5101 = vmatprep.mubr.bf16.mxu0 0
        %5102 = vmatmul.mubr.bf16.gmra.mrb[0].mxu0 %v4972
        %v5103 = vpop.f32.mrb[0].mxu0
        %v5104 = vadd.f32 0.0, %v5103
        %v5105 = vpop.f32.mrb[0].mxu0
        %v5106 = vpop.f32.mrb[0].mxu0
        %v5107 = vadd.f32 0.0, %v5106
        %v5108 = vpop.f32.mrb[0].mxu0
        %5109 = vmatprep.mubr.bf16.mxu0 0
        %5110 = vmatmul.mubr.bf16.gmra.mrb[0].mxu0 %v4975
        %v5111 = vpop.f32.mrb[0].mxu0
        %v5112 = vadd.f32 0.0, %v5111
        %v5113 = vpop.f32.mrb[0].mxu0
        %v5114 = vpop.f32.mrb[0].mxu0
        %v5115 = vadd.f32 0.0, %v5114
        %v5116 = vpop.f32.mrb[0].mxu0
        %5117 = vmatprep.mubr.bf16.mxu0 0
        %5118 = vmatmul.mubr.bf16.gmra.mrb[0].mxu0 %v4978
        %v5119 = vpop.f32.mrb[0].mxu0
        %v5120 = vadd.f32 0.0, %v5119
        %v5121 = vpop.f32.mrb[0].mxu0
        %v5122 = vpop.f32.mrb[0].mxu0
        %v5123 = vadd.f32 0.0, %v5122
        %v5124 = vpop.f32.mrb[0].mxu0
        %5125 = vmatprep.mubr.bf16.mxu0 0
        %5126 = vmatmul.mubr.bf16.gmra.mrb[0].mxu0 %v4981
        %v5127 = vpop.f32.mrb[0].mxu0
        %v5128 = vadd.f32 0.0, %v5127
        %v5129 = vpop.f32.mrb[0].mxu0
        %v5130 = vpop.f32.mrb[0].mxu0
        %v5131 = vadd.f32 0.0, %v5130
        %v5132 = vpop.f32.mrb[0].mxu0
        %5133 = vmatprep.mubr.bf16.mxu0 0
        %5134 = vmatmul.mubr.bf16.gmra.mrb[0].mxu0 %v4984
        %v5135 = vpop.f32.mrb[0].mxu0
        %v5136 = vadd.f32 0.0, %v5135
        %v5137 = vpop.f32.mrb[0].mxu0
        %v5138 = vpop.f32.mrb[0].mxu0
        %v5139 = vadd.f32 0.0, %v5138
        %v5140 = vpop.f32.mrb[0].mxu0
        %5141 = vmatprep.mubr.bf16.mxu0 0
        %5142 = vmatmul.mubr.bf16.gmra.mrb[0].mxu0 %v4987
        %v5143 = vpop.f32.mrb[0].mxu0
        %v5144 = vadd.f32 0.0, %v5143
        %v5145 = vpop.f32.mrb[0].mxu0
        %v5146 = vpop.f32.mrb[0].mxu0
        %v5147 = vadd.f32 0.0, %v5146
        %v5148 = vpop.f32.mrb[0].mxu0
        %5149 = vdwg.mxu0
        %v5150 = vadd.f32 %v4828, %v5024
        %v5151 = vadd.f32 %v4829, %v5027
        %v5152 = vadd.f32 %v4830, %v5032
        %v5153 = vadd.f32 %v4831, %v5035
        %v5154 = vadd.f32 %v4832, %v5040
        %v5155 = vadd.f32 %v4833, %v5043
        %v5156 = vadd.f32 %v4834, %v5048
        %v5157 = vadd.f32 %v4835, %v5051
        %v5158 = vadd.f32 %v4836, %v5056
        %v5159 = vadd.f32 %v4837, %v5059
        %v5160 = vadd.f32 %v4838, %v5064
        %v5161 = vadd.f32 %v4839, %v5067
        %v5162 = vadd.f32 %v4840, %v5072
        %v5163 = vadd.f32 %v4841, %v5075
        %v5164 = vadd.f32 %v4842, %v5080
        %v5165 = vadd.f32 %v4843, %v5083
        %v5166 = vadd.f32 %v4844, %v5088
        %v5167 = vadd.f32 %v4845, %v5091
        %v5168 = vadd.f32 %v4846, %v5096
        %v5169 = vadd.f32 %v4847, %v5099
        %v5170 = vadd.f32 %v4848, %v5104
        %v5171 = vadd.f32 %v4849, %v5107
        %v5172 = vadd.f32 %v4850, %v5112
        %v5173 = vadd.f32 %v4851, %v5115
        %v5174 = vadd.f32 %v4852, %v5120
        %v5175 = vadd.f32 %v4853, %v5123
        %v5176 = vadd.f32 %v4854, %v5128
        %v5177 = vadd.f32 %v4855, %v5131
        %v5178 = vadd.f32 %v4856, %v5136
        %v5179 = vadd.f32 %v4857, %v5139
        %v5180 = vadd.f32 %v4858, %v5144
        %v5181 = vadd.f32 %v4859, %v5147
        %s5182 = scalar_lea.vmem [#allocation3], 48
        %v5183 = vld [vmem:[%s5182] sm:$0xff]
        %v5184 = vld [vmem:[%s5182 + $0x8] sm:$0xff]
        %v5185 = vld [vmem:[%s5182 + $0x18] sm:$0xff]
        %v5186 = vld [vmem:[%s5182 + $0x20] sm:$0xff]
        %v5187 = vld [vmem:[%s5182 + $0x30] sm:$0xff]
        %v5188 = vld [vmem:[%s5182 + $0x38] sm:$0xff]
        %v5189 = vld [vmem:[%s5182 + $0x48] sm:$0xff]
        %v5190 = vld [vmem:[%s5182 + $0x50] sm:$0xff]
        %v5191 = vld [vmem:[%s5182 + $0x60] sm:$0xff]
        %v5192 = vld [vmem:[%s5182 + $0x68] sm:$0xff]
        %v5193 = vld [vmem:[%s5182 + $0x78] sm:$0xff]
        %v5194 = vld [vmem:[%s5182 + $0x80] sm:$0xff]
        %v5195 = vld [vmem:[%s5182 + $0x90] sm:$0xff]
        %v5196 = vld [vmem:[%s5182 + $0x98] sm:$0xff]
        %v5197 = vld [vmem:[%s5182 + $0xa8] sm:$0xff]
        %v5198 = vld [vmem:[%s5182 + $0xb0] sm:$0xff]
        %v5199 = vld [vmem:[%s5182 + $0xc0] sm:$0xff]
        %v5200 = vld [vmem:[%s5182 + $0xc8] sm:$0xff]
        %v5201 = vld [vmem:[%s5182 + $0xd8] sm:$0xff]
        %v5202 = vld [vmem:[%s5182 + $0xe0] sm:$0xff]
        %v5203 = vld [vmem:[%s5182 + $0xf0] sm:$0xff]
        %v5204 = vld [vmem:[%s5182 + $0xf8] sm:$0xff]
        %v5205 = vld [vmem:[%s5182 + $0x108] sm:$0xff]
        %v5206 = vld [vmem:[%s5182 + $0x110] sm:$0xff]
        %v5207 = vld [vmem:[%s5182 + $0x120] sm:$0xff]
        %v5208 = vld [vmem:[%s5182 + $0x128] sm:$0xff]
        %v5209 = vld [vmem:[%s5182 + $0x138] sm:$0xff]
        %v5210 = vld [vmem:[%s5182 + $0x140] sm:$0xff]
        %v5211 = vld [vmem:[%s5182 + $0x150] sm:$0xff]
        %v5212 = vld [vmem:[%s5182 + $0x158] sm:$0xff]
        %v5213 = vld [vmem:[%s5182 + $0x168] sm:$0xff]
        %v5214 = vld [vmem:[%s5182 + $0x170] sm:$0xff]
        %v5215 = vpack.c.bf16 %v5184, %v5183
        %v5216 = vpack.c.bf16 %v5186, %v5185
        %v5217 = vpack.c.bf16 %v5188, %v5187
        %v5218 = vpack.c.bf16 %v5190, %v5189
        %v5219 = vpack.c.bf16 %v5192, %v5191
        %v5220 = vpack.c.bf16 %v5194, %v5193
        %v5221 = vpack.c.bf16 %v5196, %v5195
        %v5222 = vpack.c.bf16 %v5198, %v5197
        %v5223 = vpack.c.bf16 %v5200, %v5199
        %v5224 = vpack.c.bf16 %v5202, %v5201
        %v5225 = vpack.c.bf16 %v5204, %v5203
        %v5226 = vpack.c.bf16 %v5206, %v5205
        %v5227 = vpack.c.bf16 %v5208, %v5207
        %v5228 = vpack.c.bf16 %v5210, %v5209
        %v5229 = vpack.c.bf16 %v5212, %v5211
        %v5230 = vpack.c.bf16 %v5214, %v5213
        %s5231 = scalar_lea.vmem %s3, 192
        %v5232 = vld [vmem:[%s5231] sm:$0xf]
        %v5233 = vld [vmem:[%s5231 + $0x4] sm:$0xf]
        %v5234 = vld [vmem:[%s5231 + $0x8] sm:$0xf]
        %v5235 = vld [vmem:[%s5231 + $0xc] sm:$0xf]
        %v5236 = vld [vmem:[%s5231 + $0x10] sm:$0xf]
        %v5237 = vld [vmem:[%s5231 + $0x14] sm:$0xf]
        %v5238 = vld [vmem:[%s5231 + $0x18] sm:$0xf]
        %v5239 = vld [vmem:[%s5231 + $0x1c] sm:$0xf]
        %v5248 = vunpack.c.l.b16 %v5232
        %v5249 = vunpack.c.l.b16 %v5233
        %v5250 = vunpack.c.l.b16 %v5234
        %v5251 = vunpack.c.l.b16 %v5235
        %v5252 = vunpack.c.l.b16 %v5236
        %v5253 = vunpack.c.l.b16 %v5237
        %v5254 = vunpack.c.l.b16 %v5238
        %v5255 = vunpack.c.l.b16 %v5239
        %v5256 = vpack.c.b16 %v5249, %v5248
        %v5257 = vpack.c.b16 %v5251, %v5250
        %v5258 = vpack.c.b16 %v5253, %v5252
        %v5259 = vpack.c.b16 %v5255, %v5254
        %v5265 = vsel %vm3258, %v5215, 0
        %v5268 = vsel %vm3258, %v5216, 0
        %v5271 = vsel %vm3258, %v5217, 0
        %v5274 = vsel %vm3258, %v5218, 0
        %v5277 = vsel %vm3258, %v5219, 0
        %v5280 = vsel %vm3258, %v5220, 0
        %v5283 = vsel %vm3258, %v5221, 0
        %v5286 = vsel %vm3258, %v5222, 0
        %v5289 = vsel %vm3258, %v5223, 0
        %v5292 = vsel %vm3258, %v5224, 0
        %v5295 = vsel %vm3258, %v5225, 0
        %v5298 = vsel %vm3258, %v5226, 0
        %v5301 = vsel %vm3258, %v5227, 0
        %v5304 = vsel %vm3258, %v5228, 0
        %v5307 = vsel %vm3258, %v5229, 0
        %v5310 = vsel %vm3258, %v5230, 0
        %5312 = vmatprep.subr.bf16.mxu0 0
        %5313 = vmatpush1.bf16.msra.mxu0 %v5256
        %5314 = vmatprep.subr.bf16.mxu0 0
        %5315 = vmatpush1.bf16.msra.mxu0 %v5257
        %5316 = vmatprep.subr.bf16.mxu0 0
        %5317 = vmatpush1.bf16.msra.mxu0 %v5258
        %5318 = vmatprep.subr.bf16.mxu0 0
        %5319 = vmatpush1.bf16.msra.mxu0 %v5259
        %5320 = vmatprep.subr.bf16.mxu0 0
        %5321 = vmatpush1.bf16.msra.mxu0 0
        %5322 = vmatprep.subr.bf16.mxu0 0
        %5323 = vmatpush1.bf16.msra.mxu0 0
        %5324 = vmatprep.subr.bf16.mxu0 0
        %5325 = vmatpush1.bf16.msra.mxu0 0
        %5326 = vmatprep.subr.bf16.mxu0 0
        %5327 = vmatpush1.bf16.msra.mxu0 0
        %5328 = vmatprep.subr.bf16.mxu0 0
        %5329 = vmatpush1.bf16.msra.mxu0 0
        %5330 = vmatprep.subr.bf16.mxu0 0
        %5331 = vmatpush1.bf16.msra.mxu0 0
        %5332 = vmatprep.subr.bf16.mxu0 0
        %5333 = vmatpush1.bf16.msra.mxu0 0
        %5334 = vmatprep.subr.bf16.mxu0 0
        %5335 = vmatpush1.bf16.msra.mxu0 0
        %5336 = vmatprep.subr.bf16.mxu0 0
        %5337 = vmatpush1.bf16.msra.mxu0 0
        %5338 = vmatprep.subr.bf16.mxu0 0
        %5339 = vmatpush1.bf16.msra.mxu0 0
        %5340 = vmatprep.subr.bf16.mxu0 0
        %5341 = vmatpush1.bf16.msra.mxu0 0
        %5342 = vmatprep.subr.bf16.mxu0 0
        %5343 = vmatpush1.bf16.msra.mxu0 0
        %5344 = vmatprep.mubr.bf16.mxu0 0
        %5345 = vmatmul.mubr.bf16.gmra.mrb[0].mxu0 %v5265
        %v5346 = vpop.f32.mrb[0].mxu0
        %v5347 = vadd.f32 0.0, %v5346
        %v5348 = vpop.f32.mrb[0].mxu0
        %v5349 = vpop.f32.mrb[0].mxu0
        %v5350 = vadd.f32 0.0, %v5349
        %v5351 = vpop.f32.mrb[0].mxu0
        %5352 = vmatprep.mubr.bf16.mxu0 0
        %5353 = vmatmul.mubr.bf16.gmra.mrb[0].mxu0 %v5268
        %v5354 = vpop.f32.mrb[0].mxu0
        %v5355 = vadd.f32 0.0, %v5354
        %v5356 = vpop.f32.mrb[0].mxu0
        %v5357 = vpop.f32.mrb[0].mxu0
        %v5358 = vadd.f32 0.0, %v5357
        %v5359 = vpop.f32.mrb[0].mxu0
        %5360 = vmatprep.mubr.bf16.mxu0 0
        %5361 = vmatmul.mubr.bf16.gmra.mrb[0].mxu0 %v5271
        %v5362 = vpop.f32.mrb[0].mxu0
        %v5363 = vadd.f32 0.0, %v5362
        %v5364 = vpop.f32.mrb[0].mxu0
        %v5365 = vpop.f32.mrb[0].mxu0
        %v5366 = vadd.f32 0.0, %v5365
        %v5367 = vpop.f32.mrb[0].mxu0
        %5368 = vmatprep.mubr.bf16.mxu0 0
        %5369 = vmatmul.mubr.bf16.gmra.mrb[0].mxu0 %v5274
        %v5370 = vpop.f32.mrb[0].mxu0
        %v5371 = vadd.f32 0.0, %v5370
        %v5372 = vpop.f32.mrb[0].mxu0
        %v5373 = vpop.f32.mrb[0].mxu0
        %v5374 = vadd.f32 0.0, %v5373
        %v5375 = vpop.f32.mrb[0].mxu0
        %5376 = vmatprep.mubr.bf16.mxu0 0
        %5377 = vmatmul.mubr.bf16.gmra.mrb[0].mxu0 %v5277
        %v5378 = vpop.f32.mrb[0].mxu0
        %v5379 = vadd.f32 0.0, %v5378
        %v5380 = vpop.f32.mrb[0].mxu0
        %v5381 = vpop.f32.mrb[0].mxu0
        %v5382 = vadd.f32 0.0, %v5381
        %v5383 = vpop.f32.mrb[0].mxu0
        %5384 = vmatprep.mubr.bf16.mxu0 0
        %5385 = vmatmul.mubr.bf16.gmra.mrb[0].mxu0 %v5280
        %v5386 = vpop.f32.mrb[0].mxu0
        %v5387 = vadd.f32 0.0, %v5386
        %v5388 = vpop.f32.mrb[0].mxu0
        %v5389 = vpop.f32.mrb[0].mxu0
        %v5390 = vadd.f32 0.0, %v5389
        %v5391 = vpop.f32.mrb[0].mxu0
        %5392 = vmatprep.mubr.bf16.mxu0 0
        %5393 = vmatmul.mubr.bf16.gmra.mrb[0].mxu0 %v5283
        %v5394 = vpop.f32.mrb[0].mxu0
        %v5395 = vadd.f32 0.0, %v5394
        %v5396 = vpop.f32.mrb[0].mxu0
        %v5397 = vpop.f32.mrb[0].mxu0
        %v5398 = vadd.f32 0.0, %v5397
        %v5399 = vpop.f32.mrb[0].mxu0
        %5400 = vmatprep.mubr.bf16.mxu0 0
        %5401 = vmatmul.mubr.bf16.gmra.mrb[0].mxu0 %v5286
        %v5402 = vpop.f32.mrb[0].mxu0
        %v5403 = vadd.f32 0.0, %v5402
        %v5404 = vpop.f32.mrb[0].mxu0
        %v5405 = vpop.f32.mrb[0].mxu0
        %v5406 = vadd.f32 0.0, %v5405
        %v5407 = vpop.f32.mrb[0].mxu0
        %5408 = vmatprep.mubr.bf16.mxu0 0
        %5409 = vmatmul.mubr.bf16.gmra.mrb[0].mxu0 %v5289
        %v5410 = vpop.f32.mrb[0].mxu0
        %v5411 = vadd.f32 0.0, %v5410
        %v5412 = vpop.f32.mrb[0].mxu0
        %v5413 = vpop.f32.mrb[0].mxu0
        %v5414 = vadd.f32 0.0, %v5413
        %v5415 = vpop.f32.mrb[0].mxu0
        %5416 = vmatprep.mubr.bf16.mxu0 0
        %5417 = vmatmul.mubr.bf16.gmra.mrb[0].mxu0 %v5292
        %v5418 = vpop.f32.mrb[0].mxu0
        %v5419 = vadd.f32 0.0, %v5418
        %v5420 = vpop.f32.mrb[0].mxu0
        %v5421 = vpop.f32.mrb[0].mxu0
        %v5422 = vadd.f32 0.0, %v5421
        %v5423 = vpop.f32.mrb[0].mxu0
        %5424 = vmatprep.mubr.bf16.mxu0 0
        %5425 = vmatmul.mubr.bf16.gmra.mrb[0].mxu0 %v5295
        %v5426 = vpop.f32.mrb[0].mxu0
        %v5427 = vadd.f32 0.0, %v5426
        %v5428 = vpop.f32.mrb[0].mxu0
        %v5429 = vpop.f32.mrb[0].mxu0
        %v5430 = vadd.f32 0.0, %v5429
        %v5431 = vpop.f32.mrb[0].mxu0
        %5432 = vmatprep.mubr.bf16.mxu0 0
        %5433 = vmatmul.mubr.bf16.gmra.mrb[0].mxu0 %v5298
        %v5434 = vpop.f32.mrb[0].mxu0
        %v5435 = vadd.f32 0.0, %v5434
        %v5436 = vpop.f32.mrb[0].mxu0
        %v5437 = vpop.f32.mrb[0].mxu0
        %v5438 = vadd.f32 0.0, %v5437
        %v5439 = vpop.f32.mrb[0].mxu0
        %5440 = vmatprep.mubr.bf16.mxu0 0
        %5441 = vmatmul.mubr.bf16.gmra.mrb[0].mxu0 %v5301
        %v5442 = vpop.f32.mrb[0].mxu0
        %v5443 = vadd.f32 0.0, %v5442
        %v5444 = vpop.f32.mrb[0].mxu0
        %v5445 = vpop.f32.mrb[0].mxu0
        %v5446 = vadd.f32 0.0, %v5445
        %v5447 = vpop.f32.mrb[0].mxu0
        %5448 = vmatprep.mubr.bf16.mxu0 0
        %5449 = vmatmul.mubr.bf16.gmra.mrb[0].mxu0 %v5304
        %v5450 = vpop.f32.mrb[0].mxu0
        %v5451 = vadd.f32 0.0, %v5450
        %v5452 = vpop.f32.mrb[0].mxu0
        %v5453 = vpop.f32.mrb[0].mxu0
        %v5454 = vadd.f32 0.0, %v5453
        %v5455 = vpop.f32.mrb[0].mxu0
        %5456 = vmatprep.mubr.bf16.mxu0 0
        %5457 = vmatmul.mubr.bf16.gmra.mrb[0].mxu0 %v5307
        %v5458 = vpop.f32.mrb[0].mxu0
        %v5459 = vadd.f32 0.0, %v5458
        %v5460 = vpop.f32.mrb[0].mxu0
        %v5461 = vpop.f32.mrb[0].mxu0
        %v5462 = vadd.f32 0.0, %v5461
        %v5463 = vpop.f32.mrb[0].mxu0
        %5464 = vmatprep.mubr.bf16.mxu0 0
        %5465 = vmatmul.mubr.bf16.gmra.mrb[0].mxu0 %v5310
        %v5466 = vpop.f32.mrb[0].mxu0
        %v5467 = vadd.f32 0.0, %v5466
        %v5468 = vpop.f32.mrb[0].mxu0
        %v5469 = vpop.f32.mrb[0].mxu0
        %v5470 = vadd.f32 0.0, %v5469
        %v5471 = vpop.f32.mrb[0].mxu0
        %5472 = vdwg.mxu0
        %v5473 = vadd.f32 %v5150, %v5347
        %v5474 = vadd.f32 %v5151, %v5350
        %v5475 = vadd.f32 %v5152, %v5355
        %v5476 = vadd.f32 %v5153, %v5358
        %v5477 = vadd.f32 %v5154, %v5363
        %v5478 = vadd.f32 %v5155, %v5366
        %v5479 = vadd.f32 %v5156, %v5371
        %v5480 = vadd.f32 %v5157, %v5374
        %v5481 = vadd.f32 %v5158, %v5379
        %v5482 = vadd.f32 %v5159, %v5382
        %v5483 = vadd.f32 %v5160, %v5387
        %v5484 = vadd.f32 %v5161, %v5390
        %v5485 = vadd.f32 %v5162, %v5395
        %v5486 = vadd.f32 %v5163, %v5398
        %v5487 = vadd.f32 %v5164, %v5403
        %v5488 = vadd.f32 %v5165, %v5406
        %v5489 = vadd.f32 %v5166, %v5411
        %v5490 = vadd.f32 %v5167, %v5414
        %v5491 = vadd.f32 %v5168, %v5419
        %v5492 = vadd.f32 %v5169, %v5422
        %v5493 = vadd.f32 %v5170, %v5427
        %v5494 = vadd.f32 %v5171, %v5430
        %v5495 = vadd.f32 %v5172, %v5435
        %v5496 = vadd.f32 %v5173, %v5438
        %v5497 = vadd.f32 %v5174, %v5443
        %v5498 = vadd.f32 %v5175, %v5446
        %v5499 = vadd.f32 %v5176, %v5451
        %v5500 = vadd.f32 %v5177, %v5454
        %v5501 = vadd.f32 %v5178, %v5459
        %v5502 = vadd.f32 %v5179, %v5462
        %v5503 = vadd.f32 %v5180, %v5467
        %v5504 = vadd.f32 %v5181, %v5470
        %v5505 = vld [vmem:[%s5182 + $0x1] sm:$0xff]
        %v5506 = vld [vmem:[%s5182 + $0x9] sm:$0xff]
        %v5507 = vld [vmem:[%s5182 + $0x19] sm:$0xff]
        %v5508 = vld [vmem:[%s5182 + $0x21] sm:$0xff]
        %v5509 = vld [vmem:[%s5182 + $0x31] sm:$0xff]
        %v5510 = vld [vmem:[%s5182 + $0x39] sm:$0xff]
        %v5511 = vld [vmem:[%s5182 + $0x49] sm:$0xff]
        %v5512 = vld [vmem:[%s5182 + $0x51] sm:$0xff]
        %v5513 = vld [vmem:[%s5182 + $0x61] sm:$0xff]
        %v5514 = vld [vmem:[%s5182 + $0x69] sm:$0xff]
        %v5515 = vld [vmem:[%s5182 + $0x79] sm:$0xff]
        %v5516 = vld [vmem:[%s5182 + $0x81] sm:$0xff]
        %v5517 = vld [vmem:[%s5182 + $0x91] sm:$0xff]
        %v5518 = vld [vmem:[%s5182 + $0x99] sm:$0xff]
        %v5519 = vld [vmem:[%s5182 + $0xa9] sm:$0xff]
        %v5520 = vld [vmem:[%s5182 + $0xb1] sm:$0xff]
        %v5521 = vld [vmem:[%s5182 + $0xc1] sm:$0xff]
        %v5522 = vld [vmem:[%s5182 + $0xc9] sm:$0xff]
        %v5523 = vld [vmem:[%s5182 + $0xd9] sm:$0xff]
        %v5524 = vld [vmem:[%s5182 + $0xe1] sm:$0xff]
        %v5525 = vld [vmem:[%s5182 + $0xf1] sm:$0xff]
        %v5526 = vld [vmem:[%s5182 + $0xf9] sm:$0xff]
        %v5527 = vld [vmem:[%s5182 + $0x109] sm:$0xff]
        %v5528 = vld [vmem:[%s5182 + $0x111] sm:$0xff]
        %v5529 = vld [vmem:[%s5182 + $0x121] sm:$0xff]
        %v5530 = vld [vmem:[%s5182 + $0x129] sm:$0xff]
        %v5531 = vld [vmem:[%s5182 + $0x139] sm:$0xff]
        %v5532 = vld [vmem:[%s5182 + $0x141] sm:$0xff]
        %v5533 = vld [vmem:[%s5182 + $0x151] sm:$0xff]
        %v5534 = vld [vmem:[%s5182 + $0x159] sm:$0xff]
        %v5535 = vld [vmem:[%s5182 + $0x169] sm:$0xff]
        %v5536 = vld [vmem:[%s5182 + $0x171] sm:$0xff]
        %v5537 = vpack.c.bf16 %v5506, %v5505
        %v5538 = vpack.c.bf16 %v5508, %v5507
        %v5539 = vpack.c.bf16 %v5510, %v5509
        %v5540 = vpack.c.bf16 %v5512, %v5511
        %v5541 = vpack.c.bf16 %v5514, %v5513
        %v5542 = vpack.c.bf16 %v5516, %v5515
        %v5543 = vpack.c.bf16 %v5518, %v5517
        %v5544 = vpack.c.bf16 %v5520, %v5519
        %v5545 = vpack.c.bf16 %v5522, %v5521
        %v5546 = vpack.c.bf16 %v5524, %v5523
        %v5547 = vpack.c.bf16 %v5526, %v5525
        %v5548 = vpack.c.bf16 %v5528, %v5527
        %v5549 = vpack.c.bf16 %v5530, %v5529
        %v5550 = vpack.c.bf16 %v5532, %v5531
        %v5551 = vpack.c.bf16 %v5534, %v5533
        %v5552 = vpack.c.bf16 %v5536, %v5535
        %s5553 = scalar_lea.vmem %s3, 224
        %v5554 = vld [vmem:[%s5553] sm:$0xf]
        %v5555 = vld [vmem:[%s5553 + $0x4] sm:$0xf]
        %v5556 = vld [vmem:[%s5553 + $0x8] sm:$0xf]
        %v5557 = vld [vmem:[%s5553 + $0xc] sm:$0xf]
        %v5558 = vld [vmem:[%s5553 + $0x10] sm:$0xf]
        %v5559 = vld [vmem:[%s5553 + $0x14] sm:$0xf]
        %v5560 = vld [vmem:[%s5553 + $0x18] sm:$0xf]
        %v5561 = vld [vmem:[%s5553 + $0x1c] sm:$0xf]
        %v5570 = vunpack.c.l.b16 %v5554
        %v5571 = vunpack.c.l.b16 %v5555
        %v5572 = vunpack.c.l.b16 %v5556
        %v5573 = vunpack.c.l.b16 %v5557
        %v5574 = vunpack.c.l.b16 %v5558
        %v5575 = vunpack.c.l.b16 %v5559
        %v5576 = vunpack.c.l.b16 %v5560
        %v5577 = vunpack.c.l.b16 %v5561
        %v5578 = vpack.c.b16 %v5571, %v5570
        %v5579 = vpack.c.b16 %v5573, %v5572
        %v5580 = vpack.c.b16 %v5575, %v5574
        %v5581 = vpack.c.b16 %v5577, %v5576
        %v5587 = vsel %vm3258, %v5537, 0
        %v5590 = vsel %vm3258, %v5538, 0
        %v5593 = vsel %vm3258, %v5539, 0
        %v5596 = vsel %vm3258, %v5540, 0
        %v5599 = vsel %vm3258, %v5541, 0
        %v5602 = vsel %vm3258, %v5542, 0
        %v5605 = vsel %vm3258, %v5543, 0
        %v5608 = vsel %vm3258, %v5544, 0
        %v5611 = vsel %vm3258, %v5545, 0
        %v5614 = vsel %vm3258, %v5546, 0
        %v5617 = vsel %vm3258, %v5547, 0
        %v5620 = vsel %vm3258, %v5548, 0
        %v5623 = vsel %vm3258, %v5549, 0
        %v5626 = vsel %vm3258, %v5550, 0
        %v5629 = vsel %vm3258, %v5551, 0
        %v5632 = vsel %vm3258, %v5552, 0
        %5634 = vmatprep.subr.bf16.mxu0 0
        %5635 = vmatpush1.bf16.msra.mxu0 %v5578
        %5636 = vmatprep.subr.bf16.mxu0 0
        %5637 = vmatpush1.bf16.msra.mxu0 %v5579
        %5638 = vmatprep.subr.bf16.mxu0 0
        %5639 = vmatpush1.bf16.msra.mxu0 %v5580
        %5640 = vmatprep.subr.bf16.mxu0 0
        %5641 = vmatpush1.bf16.msra.mxu0 %v5581
        %5642 = vmatprep.subr.bf16.mxu0 0
        %5643 = vmatpush1.bf16.msra.mxu0 0
        %5644 = vmatprep.subr.bf16.mxu0 0
        %5645 = vmatpush1.bf16.msra.mxu0 0
        %5646 = vmatprep.subr.bf16.mxu0 0
        %5647 = vmatpush1.bf16.msra.mxu0 0
        %5648 = vmatprep.subr.bf16.mxu0 0
        %5649 = vmatpush1.bf16.msra.mxu0 0
        %5650 = vmatprep.subr.bf16.mxu0 0
        %5651 = vmatpush1.bf16.msra.mxu0 0
        %5652 = vmatprep.subr.bf16.mxu0 0
        %5653 = vmatpush1.bf16.msra.mxu0 0
        %5654 = vmatprep.subr.bf16.mxu0 0
        %5655 = vmatpush1.bf16.msra.mxu0 0
        %5656 = vmatprep.subr.bf16.mxu0 0
        %5657 = vmatpush1.bf16.msra.mxu0 0
        %5658 = vmatprep.subr.bf16.mxu0 0
        %5659 = vmatpush1.bf16.msra.mxu0 0
        %5660 = vmatprep.subr.bf16.mxu0 0
        %5661 = vmatpush1.bf16.msra.mxu0 0
        %5662 = vmatprep.subr.bf16.mxu0 0
        %5663 = vmatpush1.bf16.msra.mxu0 0
        %5664 = vmatprep.subr.bf16.mxu0 0
        %5665 = vmatpush1.bf16.msra.mxu0 0
        %5666 = vmatprep.mubr.bf16.mxu0 0
        %5667 = vmatmul.mubr.bf16.gmra.mrb[0].mxu0 %v5587
        %v5668 = vpop.f32.mrb[0].mxu0
        %v5669 = vadd.f32 0.0, %v5668
        %v5670 = vpop.f32.mrb[0].mxu0
        %v5671 = vpop.f32.mrb[0].mxu0
        %v5672 = vadd.f32 0.0, %v5671
        %v5673 = vpop.f32.mrb[0].mxu0
        %5674 = vmatprep.mubr.bf16.mxu0 0
        %5675 = vmatmul.mubr.bf16.gmra.mrb[0].mxu0 %v5590
        %v5676 = vpop.f32.mrb[0].mxu0
        %v5677 = vadd.f32 0.0, %v5676
        %v5678 = vpop.f32.mrb[0].mxu0
        %v5679 = vpop.f32.mrb[0].mxu0
        %v5680 = vadd.f32 0.0, %v5679
        %v5681 = vpop.f32.mrb[0].mxu0
        %5682 = vmatprep.mubr.bf16.mxu0 0
        %5683 = vmatmul.mubr.bf16.gmra.mrb[0].mxu0 %v5593
        %v5684 = vpop.f32.mrb[0].mxu0
        %v5685 = vadd.f32 0.0, %v5684
        %v5686 = vpop.f32.mrb[0].mxu0
        %v5687 = vpop.f32.mrb[0].mxu0
        %v5688 = vadd.f32 0.0, %v5687
        %v5689 = vpop.f32.mrb[0].mxu0
        %5690 = vmatprep.mubr.bf16.mxu0 0
        %5691 = vmatmul.mubr.bf16.gmra.mrb[0].mxu0 %v5596
        %v5692 = vpop.f32.mrb[0].mxu0
        %v5693 = vadd.f32 0.0, %v5692
        %v5694 = vpop.f32.mrb[0].mxu0
        %v5695 = vpop.f32.mrb[0].mxu0
        %v5696 = vadd.f32 0.0, %v5695
        %v5697 = vpop.f32.mrb[0].mxu0
        %5698 = vmatprep.mubr.bf16.mxu0 0
        %5699 = vmatmul.mubr.bf16.gmra.mrb[0].mxu0 %v5599
        %v5700 = vpop.f32.mrb[0].mxu0
        %v5701 = vadd.f32 0.0, %v5700
        %v5702 = vpop.f32.mrb[0].mxu0
        %v5703 = vpop.f32.mrb[0].mxu0
        %v5704 = vadd.f32 0.0, %v5703
        %v5705 = vpop.f32.mrb[0].mxu0
        %5706 = vmatprep.mubr.bf16.mxu0 0
        %5707 = vmatmul.mubr.bf16.gmra.mrb[0].mxu0 %v5602
        %v5708 = vpop.f32.mrb[0].mxu0
        %v5709 = vadd.f32 0.0, %v5708
        %v5710 = vpop.f32.mrb[0].mxu0
        %v5711 = vpop.f32.mrb[0].mxu0
        %v5712 = vadd.f32 0.0, %v5711
        %v5713 = vpop.f32.mrb[0].mxu0
        %5714 = vmatprep.mubr.bf16.mxu0 0
        %5715 = vmatmul.mubr.bf16.gmra.mrb[0].mxu0 %v5605
        %v5716 = vpop.f32.mrb[0].mxu0
        %v5717 = vadd.f32 0.0, %v5716
        %v5718 = vpop.f32.mrb[0].mxu0
        %v5719 = vpop.f32.mrb[0].mxu0
        %v5720 = vadd.f32 0.0, %v5719
        %v5721 = vpop.f32.mrb[0].mxu0
        %5722 = vmatprep.mubr.bf16.mxu0 0
        %5723 = vmatmul.mubr.bf16.gmra.mrb[0].mxu0 %v5608
        %v5724 = vpop.f32.mrb[0].mxu0
        %v5725 = vadd.f32 0.0, %v5724
        %v5726 = vpop.f32.mrb[0].mxu0
        %v5727 = vpop.f32.mrb[0].mxu0
        %v5728 = vadd.f32 0.0, %v5727
        %v5729 = vpop.f32.mrb[0].mxu0
        %5730 = vmatprep.mubr.bf16.mxu0 0
        %5731 = vmatmul.mubr.bf16.gmra.mrb[0].mxu0 %v5611
        %v5732 = vpop.f32.mrb[0].mxu0
        %v5733 = vadd.f32 0.0, %v5732
        %v5734 = vpop.f32.mrb[0].mxu0
        %v5735 = vpop.f32.mrb[0].mxu0
        %v5736 = vadd.f32 0.0, %v5735
        %v5737 = vpop.f32.mrb[0].mxu0
        %5738 = vmatprep.mubr.bf16.mxu0 0
        %5739 = vmatmul.mubr.bf16.gmra.mrb[0].mxu0 %v5614
        %v5740 = vpop.f32.mrb[0].mxu0
        %v5741 = vadd.f32 0.0, %v5740
        %v5742 = vpop.f32.mrb[0].mxu0
        %v5743 = vpop.f32.mrb[0].mxu0
        %v5744 = vadd.f32 0.0, %v5743
        %v5745 = vpop.f32.mrb[0].mxu0
        %5746 = vmatprep.mubr.bf16.mxu0 0
        %5747 = vmatmul.mubr.bf16.gmra.mrb[0].mxu0 %v5617
        %v5748 = vpop.f32.mrb[0].mxu0
        %v5749 = vadd.f32 0.0, %v5748
        %v5750 = vpop.f32.mrb[0].mxu0
        %v5751 = vpop.f32.mrb[0].mxu0
        %v5752 = vadd.f32 0.0, %v5751
        %v5753 = vpop.f32.mrb[0].mxu0
        %5754 = vmatprep.mubr.bf16.mxu0 0
        %5755 = vmatmul.mubr.bf16.gmra.mrb[0].mxu0 %v5620
        %v5756 = vpop.f32.mrb[0].mxu0
        %v5757 = vadd.f32 0.0, %v5756
        %v5758 = vpop.f32.mrb[0].mxu0
        %v5759 = vpop.f32.mrb[0].mxu0
        %v5760 = vadd.f32 0.0, %v5759
        %v5761 = vpop.f32.mrb[0].mxu0
        %5762 = vmatprep.mubr.bf16.mxu0 0
        %5763 = vmatmul.mubr.bf16.gmra.mrb[0].mxu0 %v5623
        %v5764 = vpop.f32.mrb[0].mxu0
        %v5765 = vadd.f32 0.0, %v5764
        %v5766 = vpop.f32.mrb[0].mxu0
        %v5767 = vpop.f32.mrb[0].mxu0
        %v5768 = vadd.f32 0.0, %v5767
        %v5769 = vpop.f32.mrb[0].mxu0
        %5770 = vmatprep.mubr.bf16.mxu0 0
        %5771 = vmatmul.mubr.bf16.gmra.mrb[0].mxu0 %v5626
        %v5772 = vpop.f32.mrb[0].mxu0
        %v5773 = vadd.f32 0.0, %v5772
        %v5774 = vpop.f32.mrb[0].mxu0
        %v5775 = vpop.f32.mrb[0].mxu0
        %v5776 = vadd.f32 0.0, %v5775
        %v5777 = vpop.f32.mrb[0].mxu0
        %5778 = vmatprep.mubr.bf16.mxu0 0
        %5779 = vmatmul.mubr.bf16.gmra.mrb[0].mxu0 %v5629
        %v5780 = vpop.f32.mrb[0].mxu0
        %v5781 = vadd.f32 0.0, %v5780
        %v5782 = vpop.f32.mrb[0].mxu0
        %v5783 = vpop.f32.mrb[0].mxu0
        %v5784 = vadd.f32 0.0, %v5783
        %v5785 = vpop.f32.mrb[0].mxu0
        %5786 = vmatprep.mubr.bf16.mxu0 0
        %5787 = vmatmul.mubr.bf16.gmra.mrb[0].mxu0 %v5632
        %v5788 = vpop.f32.mrb[0].mxu0
        %v5789 = vadd.f32 0.0, %v5788
        %v5790 = vpop.f32.mrb[0].mxu0
        %v5791 = vpop.f32.mrb[0].mxu0
        %v5792 = vadd.f32 0.0, %v5791
        %v5793 = vpop.f32.mrb[0].mxu0
        %5794 = vdwg.mxu0
        %v5795 = vadd.f32 %v5473, %v5669
        %v5796 = vadd.f32 %v5474, %v5672
        %v5797 = vadd.f32 %v5475, %v5677
        %v5798 = vadd.f32 %v5476, %v5680
        %v5799 = vadd.f32 %v5477, %v5685
        %v5800 = vadd.f32 %v5478, %v5688
        %v5801 = vadd.f32 %v5479, %v5693
        %v5802 = vadd.f32 %v5480, %v5696
        %v5803 = vadd.f32 %v5481, %v5701
        %v5804 = vadd.f32 %v5482, %v5704
        %v5805 = vadd.f32 %v5483, %v5709
        %v5806 = vadd.f32 %v5484, %v5712
        %v5807 = vadd.f32 %v5485, %v5717
        %v5808 = vadd.f32 %v5486, %v5720
        %v5809 = vadd.f32 %v5487, %v5725
        %v5810 = vadd.f32 %v5488, %v5728
        %v5811 = vadd.f32 %v5489, %v5733
        %v5812 = vadd.f32 %v5490, %v5736
        %v5813 = vadd.f32 %v5491, %v5741
        %v5814 = vadd.f32 %v5492, %v5744
        %v5815 = vadd.f32 %v5493, %v5749
        %v5816 = vadd.f32 %v5494, %v5752
        %v5817 = vadd.f32 %v5495, %v5757
        %v5818 = vadd.f32 %v5496, %v5760
        %v5819 = vadd.f32 %v5497, %v5765
        %v5820 = vadd.f32 %v5498, %v5768
        %v5821 = vadd.f32 %v5499, %v5773
        %v5822 = vadd.f32 %v5500, %v5776
        %v5823 = vadd.f32 %v5501, %v5781
        %v5824 = vadd.f32 %v5502, %v5784
        %v5825 = vadd.f32 %v5503, %v5789
        %v5826 = vadd.f32 %v5504, %v5792
        %v5827 = vld [vmem:[%s5182 + $0x2] sm:$0xff]
        %v5828 = vld [vmem:[%s5182 + $0xa] sm:$0xff]
        %v5829 = vld [vmem:[%s5182 + $0x1a] sm:$0xff]
        %v5830 = vld [vmem:[%s5182 + $0x22] sm:$0xff]
        %v5831 = vld [vmem:[%s5182 + $0x32] sm:$0xff]
        %v5832 = vld [vmem:[%s5182 + $0x3a] sm:$0xff]
        %v5833 = vld [vmem:[%s5182 + $0x4a] sm:$0xff]
        %v5834 = vld [vmem:[%s5182 + $0x52] sm:$0xff]
        %v5835 = vld [vmem:[%s5182 + $0x62] sm:$0xff]
        %v5836 = vld [vmem:[%s5182 + $0x6a] sm:$0xff]
        %v5837 = vld [vmem:[%s5182 + $0x7a] sm:$0xff]
        %v5838 = vld [vmem:[%s5182 + $0x82] sm:$0xff]
        %v5839 = vld [vmem:[%s5182 + $0x92] sm:$0xff]
        %v5840 = vld [vmem:[%s5182 + $0x9a] sm:$0xff]
        %v5841 = vld [vmem:[%s5182 + $0xaa] sm:$0xff]
        %v5842 = vld [vmem:[%s5182 + $0xb2] sm:$0xff]
        %v5843 = vld [vmem:[%s5182 + $0xc2] sm:$0xff]
        %v5844 = vld [vmem:[%s5182 + $0xca] sm:$0xff]
        %v5845 = vld [vmem:[%s5182 + $0xda] sm:$0xff]
        %v5846 = vld [vmem:[%s5182 + $0xe2] sm:$0xff]
        %v5847 = vld [vmem:[%s5182 + $0xf2] sm:$0xff]
        %v5848 = vld [vmem:[%s5182 + $0xfa] sm:$0xff]
        %v5849 = vld [vmem:[%s5182 + $0x10a] sm:$0xff]
        %v5850 = vld [vmem:[%s5182 + $0x112] sm:$0xff]
        %v5851 = vld [vmem:[%s5182 + $0x122] sm:$0xff]
        %v5852 = vld [vmem:[%s5182 + $0x12a] sm:$0xff]
        %v5853 = vld [vmem:[%s5182 + $0x13a] sm:$0xff]
        %v5854 = vld [vmem:[%s5182 + $0x142] sm:$0xff]
        %v5855 = vld [vmem:[%s5182 + $0x152] sm:$0xff]
        %v5856 = vld [vmem:[%s5182 + $0x15a] sm:$0xff]
        %v5857 = vld [vmem:[%s5182 + $0x16a] sm:$0xff]
        %v5858 = vld [vmem:[%s5182 + $0x172] sm:$0xff]
        %v5859 = vpack.c.bf16 %v5828, %v5827
        %v5860 = vpack.c.bf16 %v5830, %v5829
        %v5861 = vpack.c.bf16 %v5832, %v5831
        %v5862 = vpack.c.bf16 %v5834, %v5833
        %v5863 = vpack.c.bf16 %v5836, %v5835
        %v5864 = vpack.c.bf16 %v5838, %v5837
        %v5865 = vpack.c.bf16 %v5840, %v5839
        %v5866 = vpack.c.bf16 %v5842, %v5841
        %v5867 = vpack.c.bf16 %v5844, %v5843
        %v5868 = vpack.c.bf16 %v5846, %v5845
        %v5869 = vpack.c.bf16 %v5848, %v5847
        %v5870 = vpack.c.bf16 %v5850, %v5849
        %v5871 = vpack.c.bf16 %v5852, %v5851
        %v5872 = vpack.c.bf16 %v5854, %v5853
        %v5873 = vpack.c.bf16 %v5856, %v5855
        %v5874 = vpack.c.bf16 %v5858, %v5857
        %s5875 = scalar_lea.vmem %s3, 256
        %v5876 = vld [vmem:[%s5875] sm:$0xf]
        %v5877 = vld [vmem:[%s5875 + $0x4] sm:$0xf]
        %v5878 = vld [vmem:[%s5875 + $0x8] sm:$0xf]
        %v5879 = vld [vmem:[%s5875 + $0xc] sm:$0xf]
        %v5880 = vld [vmem:[%s5875 + $0x10] sm:$0xf]
        %v5881 = vld [vmem:[%s5875 + $0x14] sm:$0xf]
        %v5882 = vld [vmem:[%s5875 + $0x18] sm:$0xf]
        %v5883 = vld [vmem:[%s5875 + $0x1c] sm:$0xf]
        %v5892 = vunpack.c.l.b16 %v5876
        %v5893 = vunpack.c.l.b16 %v5877
        %v5894 = vunpack.c.l.b16 %v5878
        %v5895 = vunpack.c.l.b16 %v5879
        %v5896 = vunpack.c.l.b16 %v5880
        %v5897 = vunpack.c.l.b16 %v5881
        %v5898 = vunpack.c.l.b16 %v5882
        %v5899 = vunpack.c.l.b16 %v5883
        %v5900 = vpack.c.b16 %v5893, %v5892
        %v5901 = vpack.c.b16 %v5895, %v5894
        %v5902 = vpack.c.b16 %v5897, %v5896
        %v5903 = vpack.c.b16 %v5899, %v5898
        %v5909 = vsel %vm3258, %v5859, 0
        %v5912 = vsel %vm3258, %v5860, 0
        %v5915 = vsel %vm3258, %v5861, 0
        %v5918 = vsel %vm3258, %v5862, 0
        %v5921 = vsel %vm3258, %v5863, 0
        %v5924 = vsel %vm3258, %v5864, 0
        %v5927 = vsel %vm3258, %v5865, 0
        %v5930 = vsel %vm3258, %v5866, 0
        %v5933 = vsel %vm3258, %v5867, 0
        %v5936 = vsel %vm3258, %v5868, 0
        %v5939 = vsel %vm3258, %v5869, 0
        %v5942 = vsel %vm3258, %v5870, 0
        %v5945 = vsel %vm3258, %v5871, 0
        %v5948 = vsel %vm3258, %v5872, 0
        %v5951 = vsel %vm3258, %v5873, 0
        %v5954 = vsel %vm3258, %v5874, 0
        %5956 = vmatprep.subr.bf16.mxu0 0
        %5957 = vmatpush1.bf16.msra.mxu0 %v5900
        %5958 = vmatprep.subr.bf16.mxu0 0
        %5959 = vmatpush1.bf16.msra.mxu0 %v5901
        %5960 = vmatprep.subr.bf16.mxu0 0
        %5961 = vmatpush1.bf16.msra.mxu0 %v5902
        %5962 = vmatprep.subr.bf16.mxu0 0
        %5963 = vmatpush1.bf16.msra.mxu0 %v5903
        %5964 = vmatprep.subr.bf16.mxu0 0
        %5965 = vmatpush1.bf16.msra.mxu0 0
        %5966 = vmatprep.subr.bf16.mxu0 0
        %5967 = vmatpush1.bf16.msra.mxu0 0
        %5968 = vmatprep.subr.bf16.mxu0 0
        %5969 = vmatpush1.bf16.msra.mxu0 0
        %5970 = vmatprep.subr.bf16.mxu0 0
        %5971 = vmatpush1.bf16.msra.mxu0 0
        %5972 = vmatprep.subr.bf16.mxu0 0
        %5973 = vmatpush1.bf16.msra.mxu0 0
        %5974 = vmatprep.subr.bf16.mxu0 0
        %5975 = vmatpush1.bf16.msra.mxu0 0
        %5976 = vmatprep.subr.bf16.mxu0 0
        %5977 = vmatpush1.bf16.msra.mxu0 0
        %5978 = vmatprep.subr.bf16.mxu0 0
        %5979 = vmatpush1.bf16.msra.mxu0 0
        %5980 = vmatprep.subr.bf16.mxu0 0
        %5981 = vmatpush1.bf16.msra.mxu0 0
        %5982 = vmatprep.subr.bf16.mxu0 0
        %5983 = vmatpush1.bf16.msra.mxu0 0
        %5984 = vmatprep.subr.bf16.mxu0 0
        %5985 = vmatpush1.bf16.msra.mxu0 0
        %5986 = vmatprep.subr.bf16.mxu0 0
        %5987 = vmatpush1.bf16.msra.mxu0 0
        %5988 = vmatprep.mubr.bf16.mxu0 0
        %5989 = vmatmul.mubr.bf16.gmra.mrb[0].mxu0 %v5909
        %v5990 = vpop.f32.mrb[0].mxu0
        %v5991 = vadd.f32 0.0, %v5990
        %v5992 = vpop.f32.mrb[0].mxu0
        %v5993 = vpop.f32.mrb[0].mxu0
        %v5994 = vadd.f32 0.0, %v5993
        %v5995 = vpop.f32.mrb[0].mxu0
        %5996 = vmatprep.mubr.bf16.mxu0 0
        %5997 = vmatmul.mubr.bf16.gmra.mrb[0].mxu0 %v5912
        %v5998 = vpop.f32.mrb[0].mxu0
        %v5999 = vadd.f32 0.0, %v5998
        %v6000 = vpop.f32.mrb[0].mxu0
        %v6001 = vpop.f32.mrb[0].mxu0
        %v6002 = vadd.f32 0.0, %v6001
        %v6003 = vpop.f32.mrb[0].mxu0
        %6004 = vmatprep.mubr.bf16.mxu0 0
        %6005 = vmatmul.mubr.bf16.gmra.mrb[0].mxu0 %v5915
        %v6006 = vpop.f32.mrb[0].mxu0
        %v6007 = vadd.f32 0.0, %v6006
        %v6008 = vpop.f32.mrb[0].mxu0
        %v6009 = vpop.f32.mrb[0].mxu0
        %v6010 = vadd.f32 0.0, %v6009
        %v6011 = vpop.f32.mrb[0].mxu0
        %6012 = vmatprep.mubr.bf16.mxu0 0
        %6013 = vmatmul.mubr.bf16.gmra.mrb[0].mxu0 %v5918
        %v6014 = vpop.f32.mrb[0].mxu0
        %v6015 = vadd.f32 0.0, %v6014
        %v6016 = vpop.f32.mrb[0].mxu0
        %v6017 = vpop.f32.mrb[0].mxu0
        %v6018 = vadd.f32 0.0, %v6017
        %v6019 = vpop.f32.mrb[0].mxu0
        %6020 = vmatprep.mubr.bf16.mxu0 0
        %6021 = vmatmul.mubr.bf16.gmra.mrb[0].mxu0 %v5921
        %v6022 = vpop.f32.mrb[0].mxu0
        %v6023 = vadd.f32 0.0, %v6022
        %v6024 = vpop.f32.mrb[0].mxu0
        %v6025 = vpop.f32.mrb[0].mxu0
        %v6026 = vadd.f32 0.0, %v6025
        %v6027 = vpop.f32.mrb[0].mxu0
        %6028 = vmatprep.mubr.bf16.mxu0 0
        %6029 = vmatmul.mubr.bf16.gmra.mrb[0].mxu0 %v5924
        %v6030 = vpop.f32.mrb[0].mxu0
        %v6031 = vadd.f32 0.0, %v6030
        %v6032 = vpop.f32.mrb[0].mxu0
        %v6033 = vpop.f32.mrb[0].mxu0
        %v6034 = vadd.f32 0.0, %v6033
        %v6035 = vpop.f32.mrb[0].mxu0
        %6036 = vmatprep.mubr.bf16.mxu0 0
        %6037 = vmatmul.mubr.bf16.gmra.mrb[0].mxu0 %v5927
        %v6038 = vpop.f32.mrb[0].mxu0
        %v6039 = vadd.f32 0.0, %v6038
        %v6040 = vpop.f32.mrb[0].mxu0
        %v6041 = vpop.f32.mrb[0].mxu0
        %v6042 = vadd.f32 0.0, %v6041
        %v6043 = vpop.f32.mrb[0].mxu0
        %6044 = vmatprep.mubr.bf16.mxu0 0
        %6045 = vmatmul.mubr.bf16.gmra.mrb[0].mxu0 %v5930
        %v6046 = vpop.f32.mrb[0].mxu0
        %v6047 = vadd.f32 0.0, %v6046
        %v6048 = vpop.f32.mrb[0].mxu0
        %v6049 = vpop.f32.mrb[0].mxu0
        %v6050 = vadd.f32 0.0, %v6049
        %v6051 = vpop.f32.mrb[0].mxu0
        %6052 = vmatprep.mubr.bf16.mxu0 0
        %6053 = vmatmul.mubr.bf16.gmra.mrb[0].mxu0 %v5933
        %v6054 = vpop.f32.mrb[0].mxu0
        %v6055 = vadd.f32 0.0, %v6054
        %v6056 = vpop.f32.mrb[0].mxu0
        %v6057 = vpop.f32.mrb[0].mxu0
        %v6058 = vadd.f32 0.0, %v6057
        %v6059 = vpop.f32.mrb[0].mxu0
        %6060 = vmatprep.mubr.bf16.mxu0 0
        %6061 = vmatmul.mubr.bf16.gmra.mrb[0].mxu0 %v5936
        %v6062 = vpop.f32.mrb[0].mxu0
        %v6063 = vadd.f32 0.0, %v6062
        %v6064 = vpop.f32.mrb[0].mxu0
        %v6065 = vpop.f32.mrb[0].mxu0
        %v6066 = vadd.f32 0.0, %v6065
        %v6067 = vpop.f32.mrb[0].mxu0
        %6068 = vmatprep.mubr.bf16.mxu0 0
        %6069 = vmatmul.mubr.bf16.gmra.mrb[0].mxu0 %v5939
        %v6070 = vpop.f32.mrb[0].mxu0
        %v6071 = vadd.f32 0.0, %v6070
        %v6072 = vpop.f32.mrb[0].mxu0
        %v6073 = vpop.f32.mrb[0].mxu0
        %v6074 = vadd.f32 0.0, %v6073
        %v6075 = vpop.f32.mrb[0].mxu0
        %6076 = vmatprep.mubr.bf16.mxu0 0
        %6077 = vmatmul.mubr.bf16.gmra.mrb[0].mxu0 %v5942
        %v6078 = vpop.f32.mrb[0].mxu0
        %v6079 = vadd.f32 0.0, %v6078
        %v6080 = vpop.f32.mrb[0].mxu0
        %v6081 = vpop.f32.mrb[0].mxu0
        %v6082 = vadd.f32 0.0, %v6081
        %v6083 = vpop.f32.mrb[0].mxu0
        %6084 = vmatprep.mubr.bf16.mxu0 0
        %6085 = vmatmul.mubr.bf16.gmra.mrb[0].mxu0 %v5945
        %v6086 = vpop.f32.mrb[0].mxu0
        %v6087 = vadd.f32 0.0, %v6086
        %v6088 = vpop.f32.mrb[0].mxu0
        %v6089 = vpop.f32.mrb[0].mxu0
        %v6090 = vadd.f32 0.0, %v6089
        %v6091 = vpop.f32.mrb[0].mxu0
        %6092 = vmatprep.mubr.bf16.mxu0 0
        %6093 = vmatmul.mubr.bf16.gmra.mrb[0].mxu0 %v5948
        %v6094 = vpop.f32.mrb[0].mxu0
        %v6095 = vadd.f32 0.0, %v6094
        %v6096 = vpop.f32.mrb[0].mxu0
        %v6097 = vpop.f32.mrb[0].mxu0
        %v6098 = vadd.f32 0.0, %v6097
        %v6099 = vpop.f32.mrb[0].mxu0
        %6100 = vmatprep.mubr.bf16.mxu0 0
        %6101 = vmatmul.mubr.bf16.gmra.mrb[0].mxu0 %v5951
        %v6102 = vpop.f32.mrb[0].mxu0
        %v6103 = vadd.f32 0.0, %v6102
        %v6104 = vpop.f32.mrb[0].mxu0
        %v6105 = vpop.f32.mrb[0].mxu0
        %v6106 = vadd.f32 0.0, %v6105
        %v6107 = vpop.f32.mrb[0].mxu0
        %6108 = vmatprep.mubr.bf16.mxu0 0
        %6109 = vmatmul.mubr.bf16.gmra.mrb[0].mxu0 %v5954
        %v6110 = vpop.f32.mrb[0].mxu0
        %v6111 = vadd.f32 0.0, %v6110
        %v6112 = vpop.f32.mrb[0].mxu0
        %v6113 = vpop.f32.mrb[0].mxu0
        %v6114 = vadd.f32 0.0, %v6113
        %v6115 = vpop.f32.mrb[0].mxu0
        %6116 = vdwg.mxu0
        %v6117 = vadd.f32 %v5795, %v5991
        %v6118 = vadd.f32 %v5796, %v5994
        %v6119 = vadd.f32 %v5797, %v5999
        %v6120 = vadd.f32 %v5798, %v6002
        %v6121 = vadd.f32 %v5799, %v6007
        %v6122 = vadd.f32 %v5800, %v6010
        %v6123 = vadd.f32 %v5801, %v6015
        %v6124 = vadd.f32 %v5802, %v6018
        %v6125 = vadd.f32 %v5803, %v6023
        %v6126 = vadd.f32 %v5804, %v6026
        %v6127 = vadd.f32 %v5805, %v6031
        %v6128 = vadd.f32 %v5806, %v6034
        %v6129 = vadd.f32 %v5807, %v6039
        %v6130 = vadd.f32 %v5808, %v6042
        %v6131 = vadd.f32 %v5809, %v6047
        %v6132 = vadd.f32 %v5810, %v6050
        %v6133 = vadd.f32 %v5811, %v6055
        %v6134 = vadd.f32 %v5812, %v6058
        %v6135 = vadd.f32 %v5813, %v6063
        %v6136 = vadd.f32 %v5814, %v6066
        %v6137 = vadd.f32 %v5815, %v6071
        %v6138 = vadd.f32 %v5816, %v6074
        %v6139 = vadd.f32 %v5817, %v6079
        %v6140 = vadd.f32 %v5818, %v6082
        %v6141 = vadd.f32 %v5819, %v6087
        %v6142 = vadd.f32 %v5820, %v6090
        %v6143 = vadd.f32 %v5821, %v6095
        %v6144 = vadd.f32 %v5822, %v6098
        %v6145 = vadd.f32 %v5823, %v6103
        %v6146 = vadd.f32 %v5824, %v6106
        %v6147 = vadd.f32 %v5825, %v6111
        %v6148 = vadd.f32 %v5826, %v6114
        %v6149 = vld [vmem:[%s4] sm:$0x1]
        %v6151 = vlaneseq
        %v6152 = vshrl.u32 %v6151, 7
        %v6153 = vsub.s32 0, %v6152
        %v6154 = vrot.slane %v6149, %v6153
        %v6156 = vadd.f32 %v6117, %v6154
        %v6157 = vadd.f32 %v6118, %v6154
        %v6158 = vadd.f32 %v6119, %v6154
        %v6159 = vadd.f32 %v6120, %v6154
        %v6160 = vadd.f32 %v6121, %v6154
        %v6161 = vadd.f32 %v6122, %v6154
        %v6162 = vadd.f32 %v6123, %v6154
        %v6163 = vadd.f32 %v6124, %v6154
        %v6164 = vadd.f32 %v6125, %v6154
        %v6165 = vadd.f32 %v6126, %v6154
        %v6166 = vadd.f32 %v6127, %v6154
        %v6167 = vadd.f32 %v6128, %v6154
        %v6168 = vadd.f32 %v6129, %v6154
        %v6169 = vadd.f32 %v6130, %v6154
        %v6170 = vadd.f32 %v6131, %v6154
        %v6171 = vadd.f32 %v6132, %v6154
        %v6172 = vadd.f32 %v6133, %v6154
        %v6173 = vadd.f32 %v6134, %v6154
        %v6174 = vadd.f32 %v6135, %v6154
        %v6175 = vadd.f32 %v6136, %v6154
        %v6176 = vadd.f32 %v6137, %v6154
        %v6177 = vadd.f32 %v6138, %v6154
        %v6178 = vadd.f32 %v6139, %v6154
        %v6179 = vadd.f32 %v6140, %v6154
        %v6180 = vadd.f32 %v6141, %v6154
        %v6181 = vadd.f32 %v6142, %v6154
        %v6182 = vadd.f32 %v6143, %v6154
        %v6183 = vadd.f32 %v6144, %v6154
        %v6184 = vadd.f32 %v6145, %v6154
        %v6185 = vadd.f32 %v6146, %v6154
        %v6186 = vadd.f32 %v6147, %v6154
        %v6187 = vadd.f32 %v6148, %v6154
        %v6188 = vmax.f32 %v6156, 0.0
        %v6189 = vmax.f32 %v6157, 0.0
        %v6190 = vmax.f32 %v6158, 0.0
        %v6191 = vmax.f32 %v6159, 0.0
        %v6192 = vmax.f32 %v6160, 0.0
        %v6193 = vmax.f32 %v6161, 0.0
        %v6194 = vmax.f32 %v6162, 0.0
        %v6195 = vmax.f32 %v6163, 0.0
        %v6196 = vmax.f32 %v6164, 0.0
        %v6197 = vmax.f32 %v6165, 0.0
        %v6198 = vmax.f32 %v6166, 0.0
        %v6199 = vmax.f32 %v6167, 0.0
        %v6200 = vmax.f32 %v6168, 0.0
        %v6201 = vmax.f32 %v6169, 0.0
        %v6202 = vmax.f32 %v6170, 0.0
        %v6203 = vmax.f32 %v6171, 0.0
        %v6204 = vmax.f32 %v6172, 0.0
        %v6205 = vmax.f32 %v6173, 0.0
        %v6206 = vmax.f32 %v6174, 0.0
        %v6207 = vmax.f32 %v6175, 0.0
        %v6208 = vmax.f32 %v6176, 0.0
        %v6209 = vmax.f32 %v6177, 0.0
        %v6210 = vmax.f32 %v6178, 0.0
        %v6211 = vmax.f32 %v6179, 0.0
        %v6212 = vmax.f32 %v6180, 0.0
        %v6213 = vmax.f32 %v6181, 0.0
        %v6214 = vmax.f32 %v6182, 0.0
        %v6215 = vmax.f32 %v6183, 0.0
        %v6216 = vmax.f32 %v6184, 0.0
        %v6217 = vmax.f32 %v6185, 0.0
        %v6218 = vmax.f32 %v6186, 0.0
        %v6219 = vmax.f32 %v6187, 0.0
        %6220 = vst.msk [vmem:[%s217] sm:$0xff] %vm3258, %v6188
        %6221 = vst.msk [vmem:[%s217 + $0x8] sm:$0xff] %vm3258, %v6189
        %6222 = vst.msk [vmem:[%s217 + $0x10] sm:$0xff] %vm3258, %v6190
        %6223 = vst.msk [vmem:[%s217 + $0x18] sm:$0xff] %vm3258, %v6191
        %6224 = vst.msk [vmem:[%s217 + $0x20] sm:$0xff] %vm3258, %v6192
        %6225 = vst.msk [vmem:[%s217 + $0x28] sm:$0xff] %vm3258, %v6193
        %6226 = vst.msk [vmem:[%s217 + $0x30] sm:$0xff] %vm3258, %v6194
        %6227 = vst.msk [vmem:[%s217 + $0x38] sm:$0xff] %vm3258, %v6195
        %6228 = vst.msk [vmem:[%s217 + $0x40] sm:$0xff] %vm3258, %v6196
        %6229 = vst.msk [vmem:[%s217 + $0x48] sm:$0xff] %vm3258, %v6197
        %6230 = vst.msk [vmem:[%s217 + $0x50] sm:$0xff] %vm3258, %v6198
        %6231 = vst.msk [vmem:[%s217 + $0x58] sm:$0xff] %vm3258, %v6199
        %6232 = vst.msk [vmem:[%s217 + $0x60] sm:$0xff] %vm3258, %v6200
        %6233 = vst.msk [vmem:[%s217 + $0x68] sm:$0xff] %vm3258, %v6201
        %6234 = vst.msk [vmem:[%s217 + $0x70] sm:$0xff] %vm3258, %v6202
        %6235 = vst.msk [vmem:[%s217 + $0x78] sm:$0xff] %vm3258, %v6203
        %6236 = vst.msk [vmem:[%s217 + $0x80] sm:$0xff] %vm3258, %v6204
        %6237 = vst.msk [vmem:[%s217 + $0x88] sm:$0xff] %vm3258, %v6205
        %6238 = vst.msk [vmem:[%s217 + $0x90] sm:$0xff] %vm3258, %v6206
        %6239 = vst.msk [vmem:[%s217 + $0x98] sm:$0xff] %vm3258, %v6207
        %6240 = vst.msk [vmem:[%s217 + $0xa0] sm:$0xff] %vm3258, %v6208
        %6241 = vst.msk [vmem:[%s217 + $0xa8] sm:$0xff] %vm3258, %v6209
        %6242 = vst.msk [vmem:[%s217 + $0xb0] sm:$0xff] %vm3258, %v6210
        %6243 = vst.msk [vmem:[%s217 + $0xb8] sm:$0xff] %vm3258, %v6211
        %6244 = vst.msk [vmem:[%s217 + $0xc0] sm:$0xff] %vm3258, %v6212
        %6245 = vst.msk [vmem:[%s217 + $0xc8] sm:$0xff] %vm3258, %v6213
        %6246 = vst.msk [vmem:[%s217 + $0xd0] sm:$0xff] %vm3258, %v6214
        %6247 = vst.msk [vmem:[%s217 + $0xd8] sm:$0xff] %vm3258, %v6215
        %6248 = vst.msk [vmem:[%s217 + $0xe0] sm:$0xff] %vm3258, %v6216
        %6249 = vst.msk [vmem:[%s217 + $0xe8] sm:$0xff] %vm3258, %v6217
        %6250 = vst.msk [vmem:[%s217 + $0xf0] sm:$0xff] %vm3258, %v6218
        %6251 = vst.msk [vmem:[%s217 + $0xf8] sm:$0xff] %vm3258, %v6219
        %s6252 = sand.u32 %s137, 1
        %s6253 = scalar_lea.sflag [#allocation5], %s6252
        %s6254 = sand.u32 %s137, 1
        %s6255 = smul.addr %s6254, 256
        %s6256 = scalar_lea.vmem [#allocation4], %s6255
        // Predicated region
        $region41: #{double_conv_circular.1} parent=39 // pred_check
          %p6257 = pneg %p147
        $region42: #{double_conv_circular.1} parent=39 // pred_check_branch
          %6259 = sbr.rel (%p6257) target = $region44
        $region43: #{double_conv_circular.1} parent=39 // pred_region
          %s6261 = ssub.s32 4096, 4096
          %6262 = vsyncadd %s6253, %s6261
          %s6263 = smul.addr %s19, 32
          %s6264 = smul.addr %s6263, 128
          %s6265 = scalar_lea.hbm %s5, %s6264
          %s6266 = sshll.u32 %s6256, 4
          %s6267 = int_to_ptr.vmem [resolvable:$true] %s6266
          %6272 = dma.vmem_to_hbm [thread:$0]  %s6267, 4096, %s6265, %s6253, 128, 128, 8
        $region44: #{double_conv_circular.1} parent=39 // pred_fallthru
          _
      $region40: #{double_conv_circular.1} parent=5 // pred_fallthru
        _
      %p6273 = scmp.le.s32.totalorder 2, %s14
      // Predicated region
      $region45: #{double_conv_circular.1} parent=5 // pred_check
        %p6274 = pneg %p6273
      $region46: #{double_conv_circular.1} parent=5 // pred_check_branch
        %6276 = sbr.rel (%p6274) target = $region48
      $region47: #{double_conv_circular.1} parent=5 // pred_region
        %s6277 = ssub.s32 %s14, 2
        // Predicated region
        $region49: #{double_conv_circular.1} parent=47 // pred_check
          %p6278 = pneg %p153
        $region50: #{double_conv_circular.1} parent=47 // pred_check_branch
          %6280 = sbr.rel (%p6278) target = $region52
        $region51: #{double_conv_circular.1} parent=47 // pred_region
          %s6281 = sand.u32 %s138, 1
          %s6282 = scalar_lea.sflag [#allocation5], %s6281
          %s6283 = sand.u32 %s138, 1
          %s6284 = smul.addr %s6283, 256
          %s6285 = scalar_lea.vmem [#allocation4], %s6284
          %6286 = dma.done %s6282, 4096
        $region52: #{double_conv_circular.1} parent=47 // pred_fallthru
          _
      $region48: #{double_conv_circular.1} parent=5 // pred_fallthru
        _
    $region6: #{double_conv_circular.1} parent=1 // loop_footer
      %s18 = sadd.s32 1, %s14
    $region7: #{double_conv_circular.1} parent=1 // loop_footer_branch
      %13 = sbr.rel target = $region3
    $region8: #{double_conv_circular.1} parent=1 // loop_exit
      _
    %6287 = vsyncpa [#allocation5], 1
    %s6288 = scalar_lea.sflag [#allocation5], 1
    %6289 = vsyncpa %s6288, 1

</llo_original>
